<compile_context>
chip_gen: v7x
topology: tpu7x:2x2x1
jax: 0.10.0
libtpu: 0.0.40
codegen_flags: <defaults>
</compile_context>

<pallas_src>
import jax
import jax.numpy as jnp
from jax import lax
from jax.experimental import pallas as pl
from jax.experimental.pallas import tpu as pltpu

LANE = 128      # f32 lane width
SUBLANE = 8     # f32 sublane height


def _round_up(x, m):
    return ((x + m - 1) // m) * m


# -----------------------------------------------------------------------------
# Fused per-layer kernel, grid=(L,).
#
# Packed layout (built once by pack_params):
#   Hp   = round_up(H, 128), Gp = 3*Hp   (gate g occupies cols [g*Hp, g*Hp+H))
#   Dmax = max(round_up(Din, 128), 2*Hp)
#   x    : (T, Bp, Dmax)       time-major, zero-padded batch/features
#   wih  : (L, 2, Dmax, Gp)    pre-transposed input weights; for layers >= 1
#                              rows [0:Hp) act on fwd activations and
#                              rows [Hp:2Hp) on bwd activations.
#   whh  : (L, 2*Hp, Gp)       stacked [whh_fwd ; whh_bwd], pre-transposed.
#   bih / bhh : (L, 2, 1, Gp)
# Padded gate columns have zero weights/bias, so padded hidden columns stay
# exactly zero through the recurrence and numerics match the unpadded GRU.
# -----------------------------------------------------------------------------
def _dialogue_gru_kernel(x_ref, wih_ref, whh_ref, bih_ref, bhh_ref,
                         pooled_ref, hid_ref,
                         act_ref, gif_ref, gib_ref):
    l = pl.program_id(0)
    L = pl.num_programs(0)
    T, Bp, Dmax = x_ref.shape
    Hp2 = whh_ref.shape[1]          # 2 * Hp
    Hp = Hp2 // 2
    Gp = 3 * Hp

    # ---- hoisted input-gate projections (one big MXU matmul / direction) ----
    @pl.when(l == 0)
    def _():
        xin = x_ref[...].reshape(T * Bp, Dmax)
        gi_f = jnp.dot(xin, wih_ref[0, 0], preferred_element_type=jnp.float32)
        gi_b = jnp.dot(xin, wih_ref[0, 1], preferred_element_type=jnp.float32)
        gif_ref[...] = (gi_f + bih_ref[0, 0]).reshape(T, Bp, Gp)
        gib_ref[...] = (gi_b + bih_ref[0, 1]).reshape(T, Bp, Gp)

    @pl.when(l > 0)
    def _():
        # Merged [fwd | bwd] hand-off buffer -> a single dot per direction.
        a = act_ref[...].reshape(T * Bp, Hp2)
        gi_f = jnp.dot(a, wih_ref[0, 0, 0:Hp2],
                       preferred_element_type=jnp.float32)
        gi_b = jnp.dot(a, wih_ref[0, 1, 0:Hp2],
                       preferred_element_type=jnp.float32)
        gif_ref[...] = (gi_f + bih_ref[0, 0]).reshape(T, Bp, Gp)
        gib_ref[...] = (gi_b + bih_ref[0, 1]).reshape(T, Bp, Gp)

    whh_fb = whh_ref[0]             # (2Hp, Gp): rows [0:Hp)=fwd, [Hp:2Hp)=bwd
    bhh_f = bhh_ref[0, 0]           # (1, Gp)
    bhh_b = bhh_ref[0, 1]

    zpad = jnp.zeros((Bp, Hp), jnp.float32)

    def gate(gi, gh, h):
        r = jax.nn.sigmoid(gi[:, 0:Hp] + gh[:, 0:Hp])
        z = jax.nn.sigmoid(gi[:, Hp:2 * Hp] + gh[:, Hp:2 * Hp])
        n = jnp.tanh(gi[:, 2 * Hp:] + r * gh[:, 2 * Hp:])
        return (1.0 - z) * n + z * h

    def step(t, carry):
        h_f, h_b, mx_f, mx_b = carry
        # Fused bidirectional recurrence matmul: ONE MXU op per timestep.
        # Block-diagonal LHS keeps directions (and padded rows) separate.
        lhs = jnp.concatenate(
            [jnp.concatenate([h_f, zpad], axis=1),
             jnp.concatenate([zpad, h_b], axis=1)], axis=0)         # (2Bp, 2Hp)
        gh = jnp.dot(lhs, whh_fb, preferred_element_type=jnp.float32)  # (2Bp, Gp)
        h_f = gate(gif_ref[t], gh[0:Bp] + bhh_f, h_f)
        h_b = gate(gib_ref[T - 1 - t], gh[Bp:2 * Bp] + bhh_b, h_b)
        # Layer hand-off into the merged buffer (harmless extra store on the
        # last layer).  Lane offsets are 128-multiples -> unmasked stores.
        act_ref[t, :, 0:Hp] = h_f
        act_ref[T - 1 - t, :, Hp:2 * Hp] = h_b
        # Running max over time (cheap VPU filler under the matmul latency).
        mx_f = jnp.maximum(mx_f, h_f)
        mx_b = jnp.maximum(mx_b, h_b)
        return (h_f, h_b, mx_f, mx_b)

    neg = jnp.full((Bp, Hp), -jnp.inf, jnp.float32)
    h_f, h_b, mx_f, mx_b = lax.fori_loop(
        0, T, step, (zpad, zpad, neg, neg), unroll=min(8, T))

    # PyTorch h_n ordering: [l0_fwd, l0_bwd, l1_fwd, l1_bwd, ...]
    hid_ref[0] = h_f
    hid_ref[1] = h_b

    @pl.when(l == L - 1)
    def _():
        # tanh -> max-pool over time -> tanh; tanh is monotone so
        # max_t tanh(y_t) == tanh(max_t y_t).
        pooled_ref[:, 0:Hp] = jnp.tanh(jnp.tanh(mx_f))
        pooled_ref[:, Hp:2 * Hp] = jnp.tanh(jnp.tanh(mx_b))


# -----------------------------------------------------------------------------
# Host-side packing: done ONCE (pre-transpose, pad, stack) — not per forward.
# -----------------------------------------------------------------------------
def pack_params(params, input_size, hidden, num_layers):
    H = hidden
    Hp = _round_up(H, LANE)
    Gp = 3 * Hp
    Dmax = max(_round_up(input_size, LANE), 2 * Hp)
    L = num_layers

    wih = jnp.zeros((L, 2, Dmax, Gp), jnp.float32)
    whh = jnp.zeros((L, 2 * Hp, Gp), jnp.float32)       # [fwd ; bwd] stacked
    bih = jnp.zeros((L, 2, 1, Gp), jnp.float32)
    bhh = jnp.zeros((L, 2, 1, Gp), jnp.float32)

    for l in range(L):
        for d, sfx in enumerate(("", "_rev")):
            w_ih = params[f"w_ih_l{l}{sfx}"].astype(jnp.float32)   # (3H, din)
            w_hh = params[f"w_hh_l{l}{sfx}"].astype(jnp.float32)   # (3H, H)
            b_ih = params[f"b_ih_l{l}{sfx}"].astype(jnp.float32)   # (3H,)
            b_hh = params[f"b_hh_l{l}{sfx}"].astype(jnp.float32)   # (3H,)
            for g in range(3):
                wg = w_ih[g * H:(g + 1) * H, :].T                  # (din, H)
                if l == 0:
                    wih = wih.at[l, d, 0:input_size,
                                 g * Hp:g * Hp + H].set(wg)
                else:
                    # Input of layer l>=1 is [fwd(H) | bwd(H)]; fwd rows go to
                    # [0:H) and bwd rows to [Hp:Hp+H) of the packed weight,
                    # matching the merged activation buffer layout.
                    wih = wih.at[l, d, 0:H, g * Hp:g * Hp + H].set(wg[0:H])
                    wih = wih.at[l, d, Hp:Hp + H,
                                 g * Hp:g * Hp + H].set(wg[H:2 * H])
                whh = whh.at[l, d * Hp:d * Hp + H, g * Hp:g * Hp + H].set(
                    w_hh[g * H:(g + 1) * H, :].T)
                bih = bih.at[l, d, 0, g * Hp:g * Hp + H].set(
                    b_ih[g * H:(g + 1) * H])
                bhh = bhh.at[l, d, 0, g * Hp:g * Hp + H].set(
                    b_hh[g * H:(g + 1) * H])
    return {"wih": wih, "whh": whh, "bih": bih, "bhh": bhh}


# -----------------------------------------------------------------------------
# Dialogue_net forward (inference).
# -----------------------------------------------------------------------------
def dialogue_net_forward(x, packed, *, hidden):
    """x: (B, T, Din).  Returns (pooled (B, 2H), gru_hid (2*num_layers, B, H))."""
    # nn.Dropout: identity at inference time.
    # TODO(synk): training-mode dropout mask not implemented (inference semantics).
    B, T, Din = x.shape
    H = hidden
    wih, whh, bih, bhh = packed["wih"], packed["whh"], packed["bih"], packed["bhh"]
    L = wih.shape[0]
    Dmax = wih.shape[2]
    Hp = whh.shape[1] // 2
    Gp = 3 * Hp
    Bp = _round_up(max(B, SUBLANE), SUBLANE)

    x_tm = jnp.transpose(x.astype(jnp.float32), (1, 0, 2))        # (T, B, Din)
    x_tm = jnp.pad(x_tm, ((0, 0), (0, Bp - B), (0, Dmax - Din)))  # (T, Bp, Dmax)

    # Scoped-VMEM budget sized to the actual resident footprint (defaults are
    # 16/32 MiB which is far below physical VMEM).
    fbytes = 4
    block_bytes = fbytes * (
        T * Bp * Dmax                  # x (resident, copied once)
        + 2 * Dmax * Gp                # wih block (one layer)
        + 2 * Hp * Gp                  # whh block (stacked fwd/bwd)
        + 2 * 2 * Gp                   # bih + bhh blocks
        + Bp * 2 * Hp                  # pooled output block
        + 2 * Bp * Hp)                 # hid output block
    scratch_bytes = fbytes * (T * Bp * 2 * Hp + 2 * T * Bp * Gp)
    need = 2 * block_bytes + scratch_bytes          # 2x for double buffering
    vmem_limit = int(min(max(2 * need, 32 << 20), 64 << 20))
    # TODO(synk): for very long T on 64-MiB-VMEM parts, chunk the hoisted gate
    # precompute over T (or store gates in bf16) instead of raising the limit.

    grid_spec = pltpu.PrefetchScalarGridSpec(
        num_scalar_prefetch=0,
        grid=(L,),
        in_specs=[
            # x: constant block index -> DMA'd into VMEM exactly once.
            pl.BlockSpec((T, Bp, Dmax), lambda l: (0, 0, 0)),
            # Per-layer weight blocks: layer l+1 prefetched under layer l.
            pl.BlockSpec((1, 2, Dmax, Gp), lambda l: (l, 0, 0, 0)),
            pl.BlockSpec((1, 2 * Hp, Gp), lambda l: (l, 0, 0)),
            pl.BlockSpec((1, 2, 1, Gp), lambda l: (l, 0, 0, 0)),
            pl.BlockSpec((1, 2, 1, Gp), lambda l: (l, 0, 0, 0)),
        ],
        out_specs=(
            # Pooled output resident across the layer axis, written on last l.
            pl.BlockSpec((Bp, 2 * Hp), lambda l: (0, 0)),
            # h_n rows [2l, 2l+2) per layer.
            pl.BlockSpec((2, Bp, Hp), lambda l: (l, 0, 0)),
        ),
        scratch_shapes=[
            pltpu.VMEM((T, Bp, 2 * Hp), jnp.float32),   # merged fwd|bwd hand-off
            pltpu.VMEM((T, Bp, Gp), jnp.float32),       # hoisted fwd input gates
            pltpu.VMEM((T, Bp, Gp), jnp.float32),       # hoisted bwd input gates
        ],
    )

    pooled_p, hid_p = pl.pallas_call(
        _dialogue_gru_kernel,
        out_shape=(
            jax.ShapeDtypeStruct((Bp, 2 * Hp), jnp.float32),
            jax.ShapeDtypeStruct((2 * L, Bp, Hp), jnp.float32),
        ),
        grid_spec=grid_spec,
        compiler_params=pltpu.CompilerParams(
            dimension_semantics=("arbitrary",),
            vmem_limit_bytes=vmem_limit),
    )(x_tm, wih, whh, bih, bhh)

    pooled = jnp.concatenate(
        [pooled_p[:B, 0:H], pooled_p[:B, Hp:Hp + H]], axis=-1)    # (B, 2H)
    gru_hid = hid_p[:, :B, :H]                                    # (2L, B, H)
    return pooled, gru_hid


# -----------------------------------------------------------------------------
# Deterministic parameter init (PyTorch GRU default: U(-1/sqrt(H), 1/sqrt(H)))
# -----------------------------------------------------------------------------
def init_params(key, input_size, hidden, num_layers):
    k = 1.0 / jnp.sqrt(hidden)
    params = {}
    for l in range(num_layers):
        din = input_size if l == 0 else 2 * hidden
        for suffix in ("", "_rev"):
            key, k1, k2, k3, k4 = jax.random.split(key, 5)
            params[f"w_ih_l{l}{suffix}"] = jax.random.uniform(
                k1, (3 * hidden, din), jnp.float32, -k, k)
            params[f"w_hh_l{l}{suffix}"] = jax.random.uniform(
                k2, (3 * hidden, hidden), jnp.float32, -k, k)
            params[f"b_ih_l{l}{suffix}"] = jax.random.uniform(
                k3, (3 * hidden,), jnp.float32, -k, k)
            params[f"b_hh_l{l}{suffix}"] = jax.random.uniform(
                k4, (3 * hidden,), jnp.float32, -k, k)
    # Note: self.hidden2label (Linear(2H, out_class)) is defined in __init__ but
    # never used in forward(), so it is intentionally omitted here.
    return params


# Pure-JAX reference (PyTorch semantics) for a correctness check.
def _reference_forward(x, params, hidden, num_layers):
    B, T, _ = x.shape
    H = hidden
    hi = lax.Precision.HIGHEST

    def run_dir(xs, w_ih, w_hh, b_ih, b_hh):
        def step(h, x_t):
            gi = jnp.dot(x_t, w_ih.T, precision=hi) + b_ih
            gh = jnp.dot(h, w_hh.T, precision=hi) + b_hh
            r = jax.nn.sigmoid(gi[:, :H] + gh[:, :H])
            z = jax.nn.sigmoid(gi[:, H:2 * H] + gh[:, H:2 * H])
            n = jnp.tanh(gi[:, 2 * H:] + r * gh[:, 2 * H:])
            h = (1.0 - z) * n + z * h
            return h, h
        h_last, hs = lax.scan(step, jnp.zeros((B, H), jnp.float32), xs)
        return hs, h_last

    layer_in = jnp.transpose(x, (1, 0, 2))
    hid = []
    for l in range(num_layers):
        hs_f, hl_f = run_dir(layer_in, params[f"w_ih_l{l}"], params[f"w_hh_l{l}"],
                             params[f"b_ih_l{l}"], params[f"b_hh_l{l}"])
        hs_b, hl_b = run_dir(layer_in[::-1], params[f"w_ih_l{l}_rev"],
                             params[f"w_hh_l{l}_rev"], params[f"b_ih_l{l}_rev"],
                             params[f"b_hh_l{l}_rev"])
        layer_in = jnp.concatenate([hs_f, hs_b[::-1]], axis=-1)
        hid += [hl_f, hl_b]
    gru_out = jnp.transpose(layer_in, (1, 0, 2))
    pooled = jnp.tanh(jnp.max(jnp.tanh(gru_out), axis=1))
    return pooled, jnp.stack(hid, axis=0)


if __name__ == "__main__":
    BATCH, SEQ, INPUT_SIZE = 2, 8, 16
    HIDDEN, NUM_LAYERS = 32, 2

    key = jax.random.PRNGKey(0)
    key, xkey = jax.random.split(key)
    x = jax.random.normal(xkey, (BATCH, SEQ, INPUT_SIZE), jnp.float32)
    params = init_params(key, INPUT_SIZE, HIDDEN, NUM_LAYERS)
    packed = pack_params(params, INPUT_SIZE, HIDDEN, NUM_LAYERS)

    fwd = jax.jit(dialogue_net_forward, static_argnames=("hidden",))
    pooled, gru_hid = fwd(x, packed, hidden=HIDDEN)
    jax.block_until_ready((pooled, gru_hid))

    assert pooled.shape == (BATCH, 2 * HIDDEN)
    assert gru_hid.shape == (2 * NUM_LAYERS, BATCH, HIDDEN)

    ref_pooled, ref_hid = _reference_forward(x, params, HIDDEN, NUM_LAYERS)
    assert bool(jnp.allclose(pooled, ref_pooled, atol=2e-3, rtol=2e-2)), \
        "pooled mismatch vs reference"
    assert bool(jnp.allclose(gru_hid, ref_hid, atol=2e-3, rtol=2e-2)), \
        "hidden-state mismatch vs reference"

    print("KERNEL_OK")
</pallas_src>

<mosaic_0001>
module attributes {stable_mosaic.version = 11 : i64} {
  func.func @_dialogue_gru_kernel(%arg0: i32, %arg1: memref<8x8x256xf32, #tpu.memory_space<vmem>>, %arg2: memref<1x2x256x384xf32, #tpu.memory_space<vmem>>, %arg3: memref<1x256x384xf32, #tpu.memory_space<vmem>>, %arg4: memref<1x2x1x384xf32, #tpu.memory_space<vmem>>, %arg5: memref<1x2x1x384xf32, #tpu.memory_space<vmem>>, %arg6: memref<8x256xf32, #tpu.memory_space<vmem>>, %arg7: memref<2x8x128xf32, #tpu.memory_space<vmem>>, %arg8: memref<8x8x256xf32, #tpu.memory_space<vmem>>, %arg9: memref<8x8x384xf32, #tpu.memory_space<vmem>>, %arg10: memref<8x8x384xf32, #tpu.memory_space<vmem>>) attributes {dimension_semantics = [#tpu.dimension_semantics<arbitrary>], iteration_bounds = array<i64: 2>, scalar_prefetch = 0 : i64, scratch_operands = 3 : i64, tpu.core_type = #tpu.core_type<tc>, window_params = [{pipeline_mode = #tpu.pipeline_mode<synchronous>, transform_indices = @transform_0, window_bounds = array<i64: 8, 8, 256>}, {transform_indices = @transform_1, window_bounds = array<i64: 1, 2, 256, 384>}, {transform_indices = @transform_2, window_bounds = array<i64: 1, 256, 384>}, {transform_indices = @transform_3, window_bounds = array<i64: 1, 2, 1, 384>}, {transform_indices = @transform_4, window_bounds = array<i64: 1, 2, 1, 384>}, {pipeline_mode = #tpu.pipeline_mode<synchronous>, transform_indices = @transform_5, window_bounds = array<i64: 8, 256>}, {transform_indices = @transform_6, window_bounds = array<i64: 2, 8, 128>}]} {
    %c0_i32 = arith.constant 0 : i32
    %0 = arith.cmpi eq, %arg0, %c0_i32 : i32
    %1 = arith.extui %0 : i1 to i32
    %c0_i32_0 = arith.constant 0 : i32
    %2 = arith.cmpi ne, %1, %c0_i32_0 : i32
    scf.if %2 {
      %c0_157 = arith.constant 0 : index
      %c0_158 = arith.constant 0 : index
      %c0_159 = arith.constant 0 : index
      %663 = vector.load %arg1[%c0_157, %c0_158, %c0_159] : memref<8x8x256xf32, #tpu.memory_space<vmem>>, vector<8x8x256xf32>
      %664 = vector.shape_cast %663 : vector<8x8x256xf32> to vector<64x256xf32>
      %c0_160 = arith.constant 0 : index
      %c0_161 = arith.constant 0 : index
      %c0_162 = arith.constant 0 : index
      %c0_163 = arith.constant 0 : index
      %665 = vector.load %arg2[%c0_160, %c0_161, %c0_162, %c0_163] : memref<1x2x256x384xf32, #tpu.memory_space<vmem>>, vector<1x1x256x384xf32>
      %666 = vector.shape_cast %665 : vector<1x1x256x384xf32> to vector<256x384xf32>
      %cst_164 = arith.constant dense<0.000000e+00> : vector<64x384xf32>
      %667 = tpu.matmul %664, %666, %cst_164 {dimension_numbers = #tpu.dot_dimension_numbers<[1], [0], [0], [1], [0, 0, 1, 1], [], []>} : vector<64x256xf32>, vector<256x384xf32>, vector<64x384xf32> -> vector<64x384xf32>
      %c0_165 = arith.constant 0 : index
      %c1_166 = arith.constant 1 : index
      %c0_167 = arith.constant 0 : index
      %c0_168 = arith.constant 0 : index
      %668 = vector.load %arg2[%c0_165, %c1_166, %c0_167, %c0_168] : memref<1x2x256x384xf32, #tpu.memory_space<vmem>>, vector<1x1x256x384xf32>
      %669 = vector.shape_cast %668 : vector<1x1x256x384xf32> to vector<256x384xf32>
      %cst_169 = arith.constant dense<0.000000e+00> : vector<64x384xf32>
      %670 = tpu.matmul %664, %669, %cst_169 {dimension_numbers = #tpu.dot_dimension_numbers<[1], [0], [0], [1], [0, 0, 1, 1], [], []>} : vector<64x256xf32>, vector<256x384xf32>, vector<64x384xf32> -> vector<64x384xf32>
      %c0_170 = arith.constant 0 : index
      %c0_171 = arith.constant 0 : index
      %c0_172 = arith.constant 0 : index
      %c0_173 = arith.constant 0 : index
      %671 = vector.load %arg4[%c0_170, %c0_171, %c0_172, %c0_173] : memref<1x2x1x384xf32, #tpu.memory_space<vmem>>, vector<1x1x1x384xf32>
      %672 = vector.shape_cast %671 : vector<1x1x1x384xf32> to vector<1x384xf32>
      %673 = vector.broadcast %672 : vector<1x384xf32> to vector<64x384xf32>
      %674 = arith.addf %667, %673 : vector<64x384xf32>
      %675 = vector.shape_cast %674 : vector<64x384xf32> to vector<8x8x384xf32>
      %c0_174 = arith.constant 0 : index
      %c0_175 = arith.constant 0 : index
      %c0_176 = arith.constant 0 : index
      %676 = vector.load %arg9[%c0_174, %c0_175, %c0_176] : memref<8x8x384xf32, #tpu.memory_space<vmem>>, vector<8x8x384xf32>
      tpu.vector_store %arg9[%c0_174, %c0_175, %c0_176], %675 {strides = array<i32>} : memref<8x8x384xf32, #tpu.memory_space<vmem>>, vector<8x8x384xf32>,
      %c0_177 = arith.constant 0 : index
      %c1_178 = arith.constant 1 : index
      %c0_179 = arith.constant 0 : index
      %c0_180 = arith.constant 0 : index
      %677 = vector.load %arg4[%c0_177, %c1_178, %c0_179, %c0_180] : memref<1x2x1x384xf32, #tpu.memory_space<vmem>>, vector<1x1x1x384xf32>
      %678 = vector.shape_cast %677 : vector<1x1x1x384xf32> to vector<1x384xf32>
      %679 = vector.broadcast %678 : vector<1x384xf32> to vector<64x384xf32>
      %680 = arith.addf %670, %679 : vector<64x384xf32>
      %681 = vector.shape_cast %680 : vector<64x384xf32> to vector<8x8x384xf32>
      %c0_181 = arith.constant 0 : index
      %c0_182 = arith.constant 0 : index
      %c0_183 = arith.constant 0 : index
      %682 = vector.load %arg10[%c0_181, %c0_182, %c0_183] : memref<8x8x384xf32, #tpu.memory_space<vmem>>, vector<8x8x384xf32>
      tpu.vector_store %arg10[%c0_181, %c0_182, %c0_183], %681 {strides = array<i32>} : memref<8x8x384xf32, #tpu.memory_space<vmem>>, vector<8x8x384xf32>,
    } else {
    }
    %c0_i32_1 = arith.constant 0 : i32
    %3 = arith.cmpi sgt, %arg0, %c0_i32_1 : i32
    %4 = arith.extui %3 : i1 to i32
    %c0_i32_2 = arith.constant 0 : i32
    %5 = arith.cmpi ne, %4, %c0_i32_2 : i32
    scf.if %5 {
      %c0_157 = arith.constant 0 : index
      %c0_158 = arith.constant 0 : index
      %c0_159 = arith.constant 0 : index
      %663 = vector.load %arg8[%c0_157, %c0_158, %c0_159] : memref<8x8x256xf32, #tpu.memory_space<vmem>>, vector<8x8x256xf32>
      %664 = vector.shape_cast %663 : vector<8x8x256xf32> to vector<64x256xf32>
      %c0_160 = arith.constant 0 : index
      %c0_161 = arith.constant 0 : index
      %c0_162 = arith.constant 0 : index
      %c0_163 = arith.constant 0 : index
      %665 = vector.load %arg2[%c0_160, %c0_161, %c0_162, %c0_163] : memref<1x2x256x384xf32, #tpu.memory_space<vmem>>, vector<1x1x256x384xf32>
      %666 = vector.shape_cast %665 : vector<1x1x256x384xf32> to vector<256x384xf32>
      %cst_164 = arith.constant dense<0.000000e+00> : vector<64x384xf32>
      %667 = tpu.matmul %664, %666, %cst_164 {dimension_numbers = #tpu.dot_dimension_numbers<[1], [0], [0], [1], [0, 0, 1, 1], [], []>} : vector<64x256xf32>, vector<256x384xf32>, vector<64x384xf32> -> vector<64x384xf32>
      %c0_165 = arith.constant 0 : index
      %c1_166 = arith.constant 1 : index
      %c0_167 = arith.constant 0 : index
      %c0_168 = arith.constant 0 : index
      %668 = vector.load %arg2[%c0_165, %c1_166, %c0_167, %c0_168] : memref<1x2x256x384xf32, #tpu.memory_space<vmem>>, vector<1x1x256x384xf32>
      %669 = vector.shape_cast %668 : vector<1x1x256x384xf32> to vector<256x384xf32>
      %cst_169 = arith.constant dense<0.000000e+00> : vector<64x384xf32>
      %670 = tpu.matmul %664, %669, %cst_169 {dimension_numbers = #tpu.dot_dimension_numbers<[1], [0], [0], [1], [0, 0, 1, 1], [], []>} : vector<64x256xf32>, vector<256x384xf32>, vector<64x384xf32> -> vector<64x384xf32>
      %c0_170 = arith.constant 0 : index
      %c0_171 = arith.constant 0 : index
      %c0_172 = arith.constant 0 : index
      %c0_173 = arith.constant 0 : index
      %671 = vector.load %arg4[%c0_170, %c0_171, %c0_172, %c0_173] : memref<1x2x1x384xf32, #tpu.memory_space<vmem>>, vector<1x1x1x384xf32>
      %672 = vector.shape_cast %671 : vector<1x1x1x384xf32> to vector<1x384xf32>
      %673 = vector.broadcast %672 : vector<1x384xf32> to vector<64x384xf32>
      %674 = arith.addf %667, %673 : vector<64x384xf32>
      %675 = vector.shape_cast %674 : vector<64x384xf32> to vector<8x8x384xf32>
      %c0_174 = arith.constant 0 : index
      %c0_175 = arith.constant 0 : index
      %c0_176 = arith.constant 0 : index
      %676 = vector.load %arg9[%c0_174, %c0_175, %c0_176] : memref<8x8x384xf32, #tpu.memory_space<vmem>>, vector<8x8x384xf32>
      tpu.vector_store %arg9[%c0_174, %c0_175, %c0_176], %675 {strides = array<i32>} : memref<8x8x384xf32, #tpu.memory_space<vmem>>, vector<8x8x384xf32>,
      %c0_177 = arith.constant 0 : index
      %c1_178 = arith.constant 1 : index
      %c0_179 = arith.constant 0 : index
      %c0_180 = arith.constant 0 : index
      %677 = vector.load %arg4[%c0_177, %c1_178, %c0_179, %c0_180] : memref<1x2x1x384xf32, #tpu.memory_space<vmem>>, vector<1x1x1x384xf32>
      %678 = vector.shape_cast %677 : vector<1x1x1x384xf32> to vector<1x384xf32>
      %679 = vector.broadcast %678 : vector<1x384xf32> to vector<64x384xf32>
      %680 = arith.addf %670, %679 : vector<64x384xf32>
      %681 = vector.shape_cast %680 : vector<64x384xf32> to vector<8x8x384xf32>
      %c0_181 = arith.constant 0 : index
      %c0_182 = arith.constant 0 : index
      %c0_183 = arith.constant 0 : index
      %682 = vector.load %arg10[%c0_181, %c0_182, %c0_183] : memref<8x8x384xf32, #tpu.memory_space<vmem>>, vector<8x8x384xf32>
      tpu.vector_store %arg10[%c0_181, %c0_182, %c0_183], %681 {strides = array<i32>} : memref<8x8x384xf32, #tpu.memory_space<vmem>>, vector<8x8x384xf32>,
    } else {
    }
    %c0 = arith.constant 0 : index
    %c0_3 = arith.constant 0 : index
    %c0_4 = arith.constant 0 : index
    %6 = vector.load %arg3[%c0, %c0_3, %c0_4] : memref<1x256x384xf32, #tpu.memory_space<vmem>>, vector<1x256x384xf32>
    %7 = vector.shape_cast %6 : vector<1x256x384xf32> to vector<256x384xf32>
    %c0_5 = arith.constant 0 : index
    %c0_6 = arith.constant 0 : index
    %c0_7 = arith.constant 0 : index
    %c0_8 = arith.constant 0 : index
    %8 = vector.load %arg5[%c0_5, %c0_6, %c0_7, %c0_8] : memref<1x2x1x384xf32, #tpu.memory_space<vmem>>, vector<1x1x1x384xf32>
    %9 = vector.shape_cast %8 : vector<1x1x1x384xf32> to vector<1x384xf32>
    %c0_9 = arith.constant 0 : index
    %c1 = arith.constant 1 : index
    %c0_10 = arith.constant 0 : index
    %c0_11 = arith.constant 0 : index
    %10 = vector.load %arg5[%c0_9, %c1, %c0_10, %c0_11] : memref<1x2x1x384xf32, #tpu.memory_space<vmem>>, vector<1x1x1x384xf32>
    %11 = vector.shape_cast %10 : vector<1x1x1x384xf32> to vector<1x384xf32>
    %cst = arith.constant 0.000000e+00 : f32
    %12 = vector.broadcast %cst : f32 to vector<8x128xf32>
    %cst_12 = arith.constant 0xFF800000 : f32
    %13 = vector.broadcast %cst_12 : f32 to vector<8x128xf32>
    %c0_i32_13 = arith.constant 0 : i32
    %14 = tpu.concatenate %12, %12 in 1 : vector<8x128xf32>, vector<8x128xf32> -> vector<8x256xf32>
    %15 = tpu.concatenate %12, %12 in 1 : vector<8x128xf32>, vector<8x128xf32> -> vector<8x256xf32>
    %16 = tpu.concatenate %14, %15 in 0 : vector<8x256xf32>, vector<8x256xf32> -> vector<16x256xf32>
    %cst_14 = arith.constant dense<0.000000e+00> : vector<16x384xf32>
    %17 = tpu.matmul %16, %7, %cst_14 {dimension_numbers = #tpu.dot_dimension_numbers<[1], [0], [0], [1], [0, 0, 1, 1], [], []>} : vector<16x256xf32>, vector<256x384xf32>, vector<16x384xf32> -> vector<16x384xf32>
    %18 = arith.index_cast %c0_i32_13 : i32 to index
    %c0_15 = arith.constant 0 : index
    %c0_16 = arith.constant 0 : index
    %19 = vector.load %arg9[%18, %c0_15, %c0_16] : memref<8x8x384xf32, #tpu.memory_space<vmem>>, vector<1x8x384xf32>
    %20 = vector.shape_cast %19 : vector<1x8x384xf32> to vector<8x384xf32>
    %21 = vector.extract_strided_slice %17 {offsets = [0, 0], sizes = [8, 384], strides = [1, 1]} : vector<16x384xf32> to vector<8x384xf32>
    %22 = vector.broadcast %9 : vector<1x384xf32> to vector<8x384xf32>
    %23 = arith.addf %21, %22 : vector<8x384xf32>
    %24 = vector.extract_strided_slice %20 {offsets = [0, 0], sizes = [8, 128], strides = [1, 1]} : vector<8x384xf32> to vector<8x128xf32>
    %25 = vector.extract_strided_slice %23 {offsets = [0, 0], sizes = [8, 128], strides = [1, 1]} : vector<8x384xf32> to vector<8x128xf32>
    %26 = arith.addf %24, %25 : vector<8x128xf32>
    %27 = arith.negf %26 : vector<8x128xf32>
    %28 = math.exp %27 : vector<8x128xf32>
    %cst_17 = arith.constant 1.000000e+00 : f32
    %29 = vector.broadcast %cst_17 : f32 to vector<8x128xf32>
    %30 = arith.addf %29, %28 : vector<8x128xf32>
    %31 = arith.divf %29, %30 : vector<8x128xf32>
    %32 = vector.extract_strided_slice %20 {offsets = [0, 128], sizes = [8, 128], strides = [1, 1]} : vector<8x384xf32> to vector<8x128xf32>
    %33 = vector.extract_strided_slice %23 {offsets = [0, 128], sizes = [8, 128], strides = [1, 1]} : vector<8x384xf32> to vector<8x128xf32>
    %34 = arith.addf %32, %33 : vector<8x128xf32>
    %35 = arith.negf %34 : vector<8x128xf32>
    %36 = math.exp %35 : vector<8x128xf32>
    %cst_18 = arith.constant 1.000000e+00 : f32
    %37 = vector.broadcast %cst_18 : f32 to vector<8x128xf32>
    %38 = arith.addf %37, %36 : vector<8x128xf32>
    %39 = arith.divf %37, %38 : vector<8x128xf32>
    %40 = vector.extract_strided_slice %20 {offsets = [0, 256], sizes = [8, 128], strides = [1, 1]} : vector<8x384xf32> to vector<8x128xf32>
    %41 = vector.extract_strided_slice %23 {offsets = [0, 256], sizes = [8, 128], strides = [1, 1]} : vector<8x384xf32> to vector<8x128xf32>
    %42 = arith.mulf %31, %41 : vector<8x128xf32>
    %43 = arith.addf %40, %42 : vector<8x128xf32>
    %44 = math.tanh %43 : vector<8x128xf32>
    %cst_19 = arith.constant 1.000000e+00 : f32
    %45 = vector.broadcast %cst_19 : f32 to vector<8x128xf32>
    %46 = arith.subf %45, %39 : vector<8x128xf32>
    %47 = arith.mulf %46, %44 : vector<8x128xf32>
    %48 = arith.mulf %39, %12 : vector<8x128xf32>
    %49 = arith.addf %47, %48 : vector<8x128xf32>
    %c7_i32 = arith.constant 7 : i32
    %50 = arith.subi %c7_i32, %c0_i32_13 : i32
    %51 = arith.index_cast %50 : i32 to index
    %c0_20 = arith.constant 0 : index
    %c0_21 = arith.constant 0 : index
    %52 = vector.load %arg10[%51, %c0_20, %c0_21] : memref<8x8x384xf32, #tpu.memory_space<vmem>>, vector<1x8x384xf32>
    %53 = vector.shape_cast %52 : vector<1x8x384xf32> to vector<8x384xf32>
    %54 = vector.extract_strided_slice %17 {offsets = [8, 0], sizes = [8, 384], strides = [1, 1]} : vector<16x384xf32> to vector<8x384xf32>
    %55 = vector.broadcast %11 : vector<1x384xf32> to vector<8x384xf32>
    %56 = arith.addf %54, %55 : vector<8x384xf32>
    %57 = vector.extract_strided_slice %53 {offsets = [0, 0], sizes = [8, 128], strides = [1, 1]} : vector<8x384xf32> to vector<8x128xf32>
    %58 = vector.extract_strided_slice %56 {offsets = [0, 0], sizes = [8, 128], strides = [1, 1]} : vector<8x384xf32> to vector<8x128xf32>
    %59 = arith.addf %57, %58 : vector<8x128xf32>
    %60 = arith.negf %59 : vector<8x128xf32>
    %61 = math.exp %60 : vector<8x128xf32>
    %cst_22 = arith.constant 1.000000e+00 : f32
    %62 = vector.broadcast %cst_22 : f32 to vector<8x128xf32>
    %63 = arith.addf %62, %61 : vector<8x128xf32>
    %64 = arith.divf %62, %63 : vector<8x128xf32>
    %65 = vector.extract_strided_slice %53 {offsets = [0, 128], sizes = [8, 128], strides = [1, 1]} : vector<8x384xf32> to vector<8x128xf32>
    %66 = vector.extract_strided_slice %56 {offsets = [0, 128], sizes = [8, 128], strides = [1, 1]} : vector<8x384xf32> to vector<8x128xf32>
    %67 = arith.addf %65, %66 : vector<8x128xf32>
    %68 = arith.negf %67 : vector<8x128xf32>
    %69 = math.exp %68 : vector<8x128xf32>
    %cst_23 = arith.constant 1.000000e+00 : f32
    %70 = vector.broadcast %cst_23 : f32 to vector<8x128xf32>
    %71 = arith.addf %70, %69 : vector<8x128xf32>
    %72 = arith.divf %70, %71 : vector<8x128xf32>
    %73 = vector.extract_strided_slice %53 {offsets = [0, 256], sizes = [8, 128], strides = [1, 1]} : vector<8x384xf32> to vector<8x128xf32>
    %74 = vector.extract_strided_slice %56 {offsets = [0, 256], sizes = [8, 128], strides = [1, 1]} : vector<8x384xf32> to vector<8x128xf32>
    %75 = arith.mulf %64, %74 : vector<8x128xf32>
    %76 = arith.addf %73, %75 : vector<8x128xf32>
    %77 = math.tanh %76 : vector<8x128xf32>
    %cst_24 = arith.constant 1.000000e+00 : f32
    %78 = vector.broadcast %cst_24 : f32 to vector<8x128xf32>
    %79 = arith.subf %78, %72 : vector<8x128xf32>
    %80 = arith.mulf %79, %77 : vector<8x128xf32>
    %81 = arith.mulf %72, %12 : vector<8x128xf32>
    %82 = arith.addf %80, %81 : vector<8x128xf32>
    %83 = arith.index_cast %c0_i32_13 : i32 to index
    %c0_25 = arith.constant 0 : index
    %c0_26 = arith.constant 0 : index
    %84 = vector.load %arg8[%83, %c0_25, %c0_26] : memref<8x8x256xf32, #tpu.memory_space<vmem>>, vector<1x8x128xf32>
    %85 = vector.shape_cast %84 : vector<1x8x128xf32> to vector<8x128xf32>
    %86 = vector.shape_cast %49 : vector<8x128xf32> to vector<1x8x128xf32>
    tpu.vector_store %arg8[%83, %c0_25, %c0_26], %86 {strides = array<i32>} : memref<8x8x256xf32, #tpu.memory_space<vmem>>, vector<1x8x128xf32>,
    %c7_i32_27 = arith.constant 7 : i32
    %87 = arith.subi %c7_i32_27, %c0_i32_13 : i32
    %88 = arith.index_cast %87 : i32 to index
    %c0_28 = arith.constant 0 : index
    %c128 = arith.constant 128 : index
    %89 = vector.load %arg8[%88, %c0_28, %c128] : memref<8x8x256xf32, #tpu.memory_space<vmem>>, vector<1x8x128xf32>
    %90 = vector.shape_cast %89 : vector<1x8x128xf32> to vector<8x128xf32>
    %91 = vector.shape_cast %82 : vector<8x128xf32> to vector<1x8x128xf32>
    tpu.vector_store %arg8[%88, %c0_28, %c128], %91 {strides = array<i32>} : memref<8x8x256xf32, #tpu.memory_space<vmem>>, vector<1x8x128xf32>,
    %92 = arith.maximumf %13, %49 : vector<8x128xf32>
    %93 = arith.maximumf %13, %82 : vector<8x128xf32>
    %c1_i32 = arith.constant 1 : i32
    %94 = tpu.concatenate %49, %12 in 1 : vector<8x128xf32>, vector<8x128xf32> -> vector<8x256xf32>
    %95 = tpu.concatenate %12, %82 in 1 : vector<8x128xf32>, vector<8x128xf32> -> vector<8x256xf32>
    %96 = tpu.concatenate %94, %95 in 0 : vector<8x256xf32>, vector<8x256xf32> -> vector<16x256xf32>
    %cst_29 = arith.constant dense<0.000000e+00> : vector<16x384xf32>
    %97 = tpu.matmul %96, %7, %cst_29 {dimension_numbers = #tpu.dot_dimension_numbers<[1], [0], [0], [1], [0, 0, 1, 1], [], []>} : vector<16x256xf32>, vector<256x384xf32>, vector<16x384xf32> -> vector<16x384xf32>
    %98 = arith.index_cast %c1_i32 : i32 to index
    %c0_30 = arith.constant 0 : index
    %c0_31 = arith.constant 0 : index
    %99 = vector.load %arg9[%98, %c0_30, %c0_31] : memref<8x8x384xf32, #tpu.memory_space<vmem>>, vector<1x8x384xf32>
    %100 = vector.shape_cast %99 : vector<1x8x384xf32> to vector<8x384xf32>
    %101 = vector.extract_strided_slice %97 {offsets = [0, 0], sizes = [8, 384], strides = [1, 1]} : vector<16x384xf32> to vector<8x384xf32>
    %102 = vector.broadcast %9 : vector<1x384xf32> to vector<8x384xf32>
    %103 = arith.addf %101, %102 : vector<8x384xf32>
    %104 = vector.extract_strided_slice %100 {offsets = [0, 0], sizes = [8, 128], strides = [1, 1]} : vector<8x384xf32> to vector<8x128xf32>
    %105 = vector.extract_strided_slice %103 {offsets = [0, 0], sizes = [8, 128], strides = [1, 1]} : vector<8x384xf32> to vector<8x128xf32>
    %106 = arith.addf %104, %105 : vector<8x128xf32>
    %107 = arith.negf %106 : vector<8x128xf32>
    %108 = math.exp %107 : vector<8x128xf32>
    %cst_32 = arith.constant 1.000000e+00 : f32
    %109 = vector.broadcast %cst_32 : f32 to vector<8x128xf32>
    %110 = arith.addf %109, %108 : vector<8x128xf32>
    %111 = arith.divf %109, %110 : vector<8x128xf32>
    %112 = vector.extract_strided_slice %100 {offsets = [0, 128], sizes = [8, 128], strides = [1, 1]} : vector<8x384xf32> to vector<8x128xf32>
    %113 = vector.extract_strided_slice %103 {offsets = [0, 128], sizes = [8, 128], strides = [1, 1]} : vector<8x384xf32> to vector<8x128xf32>
    %114 = arith.addf %112, %113 : vector<8x128xf32>
    %115 = arith.negf %114 : vector<8x128xf32>
    %116 = math.exp %115 : vector<8x128xf32>
    %cst_33 = arith.constant 1.000000e+00 : f32
    %117 = vector.broadcast %cst_33 : f32 to vector<8x128xf32>
    %118 = arith.addf %117, %116 : vector<8x128xf32>
    %119 = arith.divf %117, %118 : vector<8x128xf32>
    %120 = vector.extract_strided_slice %100 {offsets = [0, 256], sizes = [8, 128], strides = [1, 1]} : vector<8x384xf32> to vector<8x128xf32>
    %121 = vector.extract_strided_slice %103 {offsets = [0, 256], sizes = [8, 128], strides = [1, 1]} : vector<8x384xf32> to vector<8x128xf32>
    %122 = arith.mulf %111, %121 : vector<8x128xf32>
    %123 = arith.addf %120, %122 : vector<8x128xf32>
    %124 = math.tanh %123 : vector<8x128xf32>
    %cst_34 = arith.constant 1.000000e+00 : f32
    %125 = vector.broadcast %cst_34 : f32 to vector<8x128xf32>
    %126 = arith.subf %125, %119 : vector<8x128xf32>
    %127 = arith.mulf %126, %124 : vector<8x128xf32>
    %128 = arith.mulf %119, %49 : vector<8x128xf32>
    %129 = arith.addf %127, %128 : vector<8x128xf32>
    %c7_i32_35 = arith.constant 7 : i32
    %130 = arith.subi %c7_i32_35, %c1_i32 : i32
    %131 = arith.index_cast %130 : i32 to index
    %c0_36 = arith.constant 0 : index
    %c0_37 = arith.constant 0 : index
    %132 = vector.load %arg10[%131, %c0_36, %c0_37] : memref<8x8x384xf32, #tpu.memory_space<vmem>>, vector<1x8x384xf32>
    %133 = vector.shape_cast %132 : vector<1x8x384xf32> to vector<8x384xf32>
    %134 = vector.extract_strided_slice %97 {offsets = [8, 0], sizes = [8, 384], strides = [1, 1]} : vector<16x384xf32> to vector<8x384xf32>
    %135 = vector.broadcast %11 : vector<1x384xf32> to vector<8x384xf32>
    %136 = arith.addf %134, %135 : vector<8x384xf32>
    %137 = vector.extract_strided_slice %133 {offsets = [0, 0], sizes = [8, 128], strides = [1, 1]} : vector<8x384xf32> to vector<8x128xf32>
    %138 = vector.extract_strided_slice %136 {offsets = [0, 0], sizes = [8, 128], strides = [1, 1]} : vector<8x384xf32> to vector<8x128xf32>
    %139 = arith.addf %137, %138 : vector<8x128xf32>
    %140 = arith.negf %139 : vector<8x128xf32>
    %141 = math.exp %140 : vector<8x128xf32>
    %cst_38 = arith.constant 1.000000e+00 : f32
    %142 = vector.broadcast %cst_38 : f32 to vector<8x128xf32>
    %143 = arith.addf %142, %141 : vector<8x128xf32>
    %144 = arith.divf %142, %143 : vector<8x128xf32>
    %145 = vector.extract_strided_slice %133 {offsets = [0, 128], sizes = [8, 128], strides = [1, 1]} : vector<8x384xf32> to vector<8x128xf32>
    %146 = vector.extract_strided_slice %136 {offsets = [0, 128], sizes = [8, 128], strides = [1, 1]} : vector<8x384xf32> to vector<8x128xf32>
    %147 = arith.addf %145, %146 : vector<8x128xf32>
    %148 = arith.negf %147 : vector<8x128xf32>
    %149 = math.exp %148 : vector<8x128xf32>
    %cst_39 = arith.constant 1.000000e+00 : f32
    %150 = vector.broadcast %cst_39 : f32 to vector<8x128xf32>
    %151 = arith.addf %150, %149 : vector<8x128xf32>
    %152 = arith.divf %150, %151 : vector<8x128xf32>
    %153 = vector.extract_strided_slice %133 {offsets = [0, 256], sizes = [8, 128], strides = [1, 1]} : vector<8x384xf32> to vector<8x128xf32>
    %154 = vector.extract_strided_slice %136 {offsets = [0, 256], sizes = [8, 128], strides = [1, 1]} : vector<8x384xf32> to vector<8x128xf32>
    %155 = arith.mulf %144, %154 : vector<8x128xf32>
    %156 = arith.addf %153, %155 : vector<8x128xf32>
    %157 = math.tanh %156 : vector<8x128xf32>
    %cst_40 = arith.constant 1.000000e+00 : f32
    %158 = vector.broadcast %cst_40 : f32 to vector<8x128xf32>
    %159 = arith.subf %158, %152 : vector<8x128xf32>
    %160 = arith.mulf %159, %157 : vector<8x128xf32>
    %161 = arith.mulf %152, %82 : vector<8x128xf32>
    %162 = arith.addf %160, %161 : vector<8x128xf32>
    %163 = arith.index_cast %c1_i32 : i32 to index
    %c0_41 = arith.constant 0 : index
    %c0_42 = arith.constant 0 : index
    %164 = vector.load %arg8[%163, %c0_41, %c0_42] : memref<8x8x256xf32, #tpu.memory_space<vmem>>, vector<1x8x128xf32>
    %165 = vector.shape_cast %164 : vector<1x8x128xf32> to vector<8x128xf32>
    %166 = vector.shape_cast %129 : vector<8x128xf32> to vector<1x8x128xf32>
    tpu.vector_store %arg8[%163, %c0_41, %c0_42], %166 {strides = array<i32>} : memref<8x8x256xf32, #tpu.memory_space<vmem>>, vector<1x8x128xf32>,
    %c7_i32_43 = arith.constant 7 : i32
    %167 = arith.subi %c7_i32_43, %c1_i32 : i32
    %168 = arith.index_cast %167 : i32 to index
    %c0_44 = arith.constant 0 : index
    %c128_45 = arith.constant 128 : index
    %169 = vector.load %arg8[%168, %c0_44, %c128_45] : memref<8x8x256xf32, #tpu.memory_space<vmem>>, vector<1x8x128xf32>
    %170 = vector.shape_cast %169 : vector<1x8x128xf32> to vector<8x128xf32>
    %171 = vector.shape_cast %162 : vector<8x128xf32> to vector<1x8x128xf32>
    tpu.vector_store %arg8[%168, %c0_44, %c128_45], %171 {strides = array<i32>} : memref<8x8x256xf32, #tpu.memory_space<vmem>>, vector<1x8x128xf32>,
    %172 = arith.maximumf %92, %129 : vector<8x128xf32>
    %173 = arith.maximumf %93, %162 : vector<8x128xf32>
    %c2_i32 = arith.constant 2 : i32
    %174 = tpu.concatenate %129, %12 in 1 : vector<8x128xf32>, vector<8x128xf32> -> vector<8x256xf32>
    %175 = tpu.concatenate %12, %162 in 1 : vector<8x128xf32>, vector<8x128xf32> -> vector<8x256xf32>
    %176 = tpu.concatenate %174, %175 in 0 : vector<8x256xf32>, vector<8x256xf32> -> vector<16x256xf32>
    %cst_46 = arith.constant dense<0.000000e+00> : vector<16x384xf32>
    %177 = tpu.matmul %176, %7, %cst_46 {dimension_numbers = #tpu.dot_dimension_numbers<[1], [0], [0], [1], [0, 0, 1, 1], [], []>} : vector<16x256xf32>, vector<256x384xf32>, vector<16x384xf32> -> vector<16x384xf32>
    %178 = arith.index_cast %c2_i32 : i32 to index
    %c0_47 = arith.constant 0 : index
    %c0_48 = arith.constant 0 : index
    %179 = vector.load %arg9[%178, %c0_47, %c0_48] : memref<8x8x384xf32, #tpu.memory_space<vmem>>, vector<1x8x384xf32>
    %180 = vector.shape_cast %179 : vector<1x8x384xf32> to vector<8x384xf32>
    %181 = vector.extract_strided_slice %177 {offsets = [0, 0], sizes = [8, 384], strides = [1, 1]} : vector<16x384xf32> to vector<8x384xf32>
    %182 = vector.broadcast %9 : vector<1x384xf32> to vector<8x384xf32>
    %183 = arith.addf %181, %182 : vector<8x384xf32>
    %184 = vector.extract_strided_slice %180 {offsets = [0, 0], sizes = [8, 128], strides = [1, 1]} : vector<8x384xf32> to vector<8x128xf32>
    %185 = vector.extract_strided_slice %183 {offsets = [0, 0], sizes = [8, 128], strides = [1, 1]} : vector<8x384xf32> to vector<8x128xf32>
    %186 = arith.addf %184, %185 : vector<8x128xf32>
    %187 = arith.negf %186 : vector<8x128xf32>
    %188 = math.exp %187 : vector<8x128xf32>
    %cst_49 = arith.constant 1.000000e+00 : f32
    %189 = vector.broadcast %cst_49 : f32 to vector<8x128xf32>
    %190 = arith.addf %189, %188 : vector<8x128xf32>
    %191 = arith.divf %189, %190 : vector<8x128xf32>
    %192 = vector.extract_strided_slice %180 {offsets = [0, 128], sizes = [8, 128], strides = [1, 1]} : vector<8x384xf32> to vector<8x128xf32>
    %193 = vector.extract_strided_slice %183 {offsets = [0, 128], sizes = [8, 128], strides = [1, 1]} : vector<8x384xf32> to vector<8x128xf32>
    %194 = arith.addf %192, %193 : vector<8x128xf32>
    %195 = arith.negf %194 : vector<8x128xf32>
    %196 = math.exp %195 : vector<8x128xf32>
    %cst_50 = arith.constant 1.000000e+00 : f32
    %197 = vector.broadcast %cst_50 : f32 to vector<8x128xf32>
    %198 = arith.addf %197, %196 : vector<8x128xf32>
    %199 = arith.divf %197, %198 : vector<8x128xf32>
    %200 = vector.extract_strided_slice %180 {offsets = [0, 256], sizes = [8, 128], strides = [1, 1]} : vector<8x384xf32> to vector<8x128xf32>
    %201 = vector.extract_strided_slice %183 {offsets = [0, 256], sizes = [8, 128], strides = [1, 1]} : vector<8x384xf32> to vector<8x128xf32>
    %202 = arith.mulf %191, %201 : vector<8x128xf32>
    %203 = arith.addf %200, %202 : vector<8x128xf32>
    %204 = math.tanh %203 : vector<8x128xf32>
    %cst_51 = arith.constant 1.000000e+00 : f32
    %205 = vector.broadcast %cst_51 : f32 to vector<8x128xf32>
    %206 = arith.subf %205, %199 : vector<8x128xf32>
    %207 = arith.mulf %206, %204 : vector<8x128xf32>
    %208 = arith.mulf %199, %129 : vector<8x128xf32>
    %209 = arith.addf %207, %208 : vector<8x128xf32>
    %c7_i32_52 = arith.constant 7 : i32
    %210 = arith.subi %c7_i32_52, %c2_i32 : i32
    %211 = arith.index_cast %210 : i32 to index
    %c0_53 = arith.constant 0 : index
    %c0_54 = arith.constant 0 : index
    %212 = vector.load %arg10[%211, %c0_53, %c0_54] : memref<8x8x384xf32, #tpu.memory_space<vmem>>, vector<1x8x384xf32>
    %213 = vector.shape_cast %212 : vector<1x8x384xf32> to vector<8x384xf32>
    %214 = vector.extract_strided_slice %177 {offsets = [8, 0], sizes = [8, 384], strides = [1, 1]} : vector<16x384xf32> to vector<8x384xf32>
    %215 = vector.broadcast %11 : vector<1x384xf32> to vector<8x384xf32>
    %216 = arith.addf %214, %215 : vector<8x384xf32>
    %217 = vector.extract_strided_slice %213 {offsets = [0, 0], sizes = [8, 128], strides = [1, 1]} : vector<8x384xf32> to vector<8x128xf32>
    %218 = vector.extract_strided_slice %216 {offsets = [0, 0], sizes = [8, 128], strides = [1, 1]} : vector<8x384xf32> to vector<8x128xf32>
    %219 = arith.addf %217, %218 : vector<8x128xf32>
    %220 = arith.negf %219 : vector<8x128xf32>
    %221 = math.exp %220 : vector<8x128xf32>
    %cst_55 = arith.constant 1.000000e+00 : f32
    %222 = vector.broadcast %cst_55 : f32 to vector<8x128xf32>
    %223 = arith.addf %222, %221 : vector<8x128xf32>
    %224 = arith.divf %222, %223 : vector<8x128xf32>
    %225 = vector.extract_strided_slice %213 {offsets = [0, 128], sizes = [8, 128], strides = [1, 1]} : vector<8x384xf32> to vector<8x128xf32>
    %226 = vector.extract_strided_slice %216 {offsets = [0, 128], sizes = [8, 128], strides = [1, 1]} : vector<8x384xf32> to vector<8x128xf32>
    %227 = arith.addf %225, %226 : vector<8x128xf32>
    %228 = arith.negf %227 : vector<8x128xf32>
    %229 = math.exp %228 : vector<8x128xf32>
    %cst_56 = arith.constant 1.000000e+00 : f32
    %230 = vector.broadcast %cst_56 : f32 to vector<8x128xf32>
    %231 = arith.addf %230, %229 : vector<8x128xf32>
    %232 = arith.divf %230, %231 : vector<8x128xf32>
    %233 = vector.extract_strided_slice %213 {offsets = [0, 256], sizes = [8, 128], strides = [1, 1]} : vector<8x384xf32> to vector<8x128xf32>
    %234 = vector.extract_strided_slice %216 {offsets = [0, 256], sizes = [8, 128], strides = [1, 1]} : vector<8x384xf32> to vector<8x128xf32>
    %235 = arith.mulf %224, %234 : vector<8x128xf32>
    %236 = arith.addf %233, %235 : vector<8x128xf32>
    %237 = math.tanh %236 : vector<8x128xf32>
    %cst_57 = arith.constant 1.000000e+00 : f32
    %238 = vector.broadcast %cst_57 : f32 to vector<8x128xf32>
    %239 = arith.subf %238, %232 : vector<8x128xf32>
    %240 = arith.mulf %239, %237 : vector<8x128xf32>
    %241 = arith.mulf %232, %162 : vector<8x128xf32>
    %242 = arith.addf %240, %241 : vector<8x128xf32>
    %243 = arith.index_cast %c2_i32 : i32 to index
    %c0_58 = arith.constant 0 : index
    %c0_59 = arith.constant 0 : index
    %244 = vector.load %arg8[%243, %c0_58, %c0_59] : memref<8x8x256xf32, #tpu.memory_space<vmem>>, vector<1x8x128xf32>
    %245 = vector.shape_cast %244 : vector<1x8x128xf32> to vector<8x128xf32>
    %246 = vector.shape_cast %209 : vector<8x128xf32> to vector<1x8x128xf32>
    tpu.vector_store %arg8[%243, %c0_58, %c0_59], %246 {strides = array<i32>} : memref<8x8x256xf32, #tpu.memory_space<vmem>>, vector<1x8x128xf32>,
    %c7_i32_60 = arith.constant 7 : i32
    %247 = arith.subi %c7_i32_60, %c2_i32 : i32
    %248 = arith.index_cast %247 : i32 to index
    %c0_61 = arith.constant 0 : index
    %c128_62 = arith.constant 128 : index
    %249 = vector.load %arg8[%248, %c0_61, %c128_62] : memref<8x8x256xf32, #tpu.memory_space<vmem>>, vector<1x8x128xf32>
    %250 = vector.shape_cast %249 : vector<1x8x128xf32> to vector<8x128xf32>
    %251 = vector.shape_cast %242 : vector<8x128xf32> to vector<1x8x128xf32>
    tpu.vector_store %arg8[%248, %c0_61, %c128_62], %251 {strides = array<i32>} : memref<8x8x256xf32, #tpu.memory_space<vmem>>, vector<1x8x128xf32>,
    %252 = arith.maximumf %172, %209 : vector<8x128xf32>
    %253 = arith.maximumf %173, %242 : vector<8x128xf32>
    %c3_i32 = arith.constant 3 : i32
    %254 = tpu.concatenate %209, %12 in 1 : vector<8x128xf32>, vector<8x128xf32> -> vector<8x256xf32>
    %255 = tpu.concatenate %12, %242 in 1 : vector<8x128xf32>, vector<8x128xf32> -> vector<8x256xf32>
    %256 = tpu.concatenate %254, %255 in 0 : vector<8x256xf32>, vector<8x256xf32> -> vector<16x256xf32>
    %cst_63 = arith.constant dense<0.000000e+00> : vector<16x384xf32>
    %257 = tpu.matmul %256, %7, %cst_63 {dimension_numbers = #tpu.dot_dimension_numbers<[1], [0], [0], [1], [0, 0, 1, 1], [], []>} : vector<16x256xf32>, vector<256x384xf32>, vector<16x384xf32> -> vector<16x384xf32>
    %258 = arith.index_cast %c3_i32 : i32 to index
    %c0_64 = arith.constant 0 : index
    %c0_65 = arith.constant 0 : index
    %259 = vector.load %arg9[%258, %c0_64, %c0_65] : memref<8x8x384xf32, #tpu.memory_space<vmem>>, vector<1x8x384xf32>
    %260 = vector.shape_cast %259 : vector<1x8x384xf32> to vector<8x384xf32>
    %261 = vector.extract_strided_slice %257 {offsets = [0, 0], sizes = [8, 384], strides = [1, 1]} : vector<16x384xf32> to vector<8x384xf32>
    %262 = vector.broadcast %9 : vector<1x384xf32> to vector<8x384xf32>
    %263 = arith.addf %261, %262 : vector<8x384xf32>
    %264 = vector.extract_strided_slice %260 {offsets = [0, 0], sizes = [8, 128], strides = [1, 1]} : vector<8x384xf32> to vector<8x128xf32>
    %265 = vector.extract_strided_slice %263 {offsets = [0, 0], sizes = [8, 128], strides = [1, 1]} : vector<8x384xf32> to vector<8x128xf32>
    %266 = arith.addf %264, %265 : vector<8x128xf32>
    %267 = arith.negf %266 : vector<8x128xf32>
    %268 = math.exp %267 : vector<8x128xf32>
    %cst_66 = arith.constant 1.000000e+00 : f32
    %269 = vector.broadcast %cst_66 : f32 to vector<8x128xf32>
    %270 = arith.addf %269, %268 : vector<8x128xf32>
    %271 = arith.divf %269, %270 : vector<8x128xf32>
    %272 = vector.extract_strided_slice %260 {offsets = [0, 128], sizes = [8, 128], strides = [1, 1]} : vector<8x384xf32> to vector<8x128xf32>
    %273 = vector.extract_strided_slice %263 {offsets = [0, 128], sizes = [8, 128], strides = [1, 1]} : vector<8x384xf32> to vector<8x128xf32>
    %274 = arith.addf %272, %273 : vector<8x128xf32>
    %275 = arith.negf %274 : vector<8x128xf32>
    %276 = math.exp %275 : vector<8x128xf32>
    %cst_67 = arith.constant 1.000000e+00 : f32
    %277 = vector.broadcast %cst_67 : f32 to vector<8x128xf32>
    %278 = arith.addf %277, %276 : vector<8x128xf32>
    %279 = arith.divf %277, %278 : vector<8x128xf32>
    %280 = vector.extract_strided_slice %260 {offsets = [0, 256], sizes = [8, 128], strides = [1, 1]} : vector<8x384xf32> to vector<8x128xf32>
    %281 = vector.extract_strided_slice %263 {offsets = [0, 256], sizes = [8, 128], strides = [1, 1]} : vector<8x384xf32> to vector<8x128xf32>
    %282 = arith.mulf %271, %281 : vector<8x128xf32>
    %283 = arith.addf %280, %282 : vector<8x128xf32>
    %284 = math.tanh %283 : vector<8x128xf32>
    %cst_68 = arith.constant 1.000000e+00 : f32
    %285 = vector.broadcast %cst_68 : f32 to vector<8x128xf32>
    %286 = arith.subf %285, %279 : vector<8x128xf32>
    %287 = arith.mulf %286, %284 : vector<8x128xf32>
    %288 = arith.mulf %279, %209 : vector<8x128xf32>
    %289 = arith.addf %287, %288 : vector<8x128xf32>
    %c7_i32_69 = arith.constant 7 : i32
    %290 = arith.subi %c7_i32_69, %c3_i32 : i32
    %291 = arith.index_cast %290 : i32 to index
    %c0_70 = arith.constant 0 : index
    %c0_71 = arith.constant 0 : index
    %292 = vector.load %arg10[%291, %c0_70, %c0_71] : memref<8x8x384xf32, #tpu.memory_space<vmem>>, vector<1x8x384xf32>
    %293 = vector.shape_cast %292 : vector<1x8x384xf32> to vector<8x384xf32>
    %294 = vector.extract_strided_slice %257 {offsets = [8, 0], sizes = [8, 384], strides = [1, 1]} : vector<16x384xf32> to vector<8x384xf32>
    %295 = vector.broadcast %11 : vector<1x384xf32> to vector<8x384xf32>
    %296 = arith.addf %294, %295 : vector<8x384xf32>
    %297 = vector.extract_strided_slice %293 {offsets = [0, 0], sizes = [8, 128], strides = [1, 1]} : vector<8x384xf32> to vector<8x128xf32>
    %298 = vector.extract_strided_slice %296 {offsets = [0, 0], sizes = [8, 128], strides = [1, 1]} : vector<8x384xf32> to vector<8x128xf32>
    %299 = arith.addf %297, %298 : vector<8x128xf32>
    %300 = arith.negf %299 : vector<8x128xf32>
    %301 = math.exp %300 : vector<8x128xf32>
    %cst_72 = arith.constant 1.000000e+00 : f32
    %302 = vector.broadcast %cst_72 : f32 to vector<8x128xf32>
    %303 = arith.addf %302, %301 : vector<8x128xf32>
    %304 = arith.divf %302, %303 : vector<8x128xf32>
    %305 = vector.extract_strided_slice %293 {offsets = [0, 128], sizes = [8, 128], strides = [1, 1]} : vector<8x384xf32> to vector<8x128xf32>
    %306 = vector.extract_strided_slice %296 {offsets = [0, 128], sizes = [8, 128], strides = [1, 1]} : vector<8x384xf32> to vector<8x128xf32>
    %307 = arith.addf %305, %306 : vector<8x128xf32>
    %308 = arith.negf %307 : vector<8x128xf32>
    %309 = math.exp %308 : vector<8x128xf32>
    %cst_73 = arith.constant 1.000000e+00 : f32
    %310 = vector.broadcast %cst_73 : f32 to vector<8x128xf32>
    %311 = arith.addf %310, %309 : vector<8x128xf32>
    %312 = arith.divf %310, %311 : vector<8x128xf32>
    %313 = vector.extract_strided_slice %293 {offsets = [0, 256], sizes = [8, 128], strides = [1, 1]} : vector<8x384xf32> to vector<8x128xf32>
    %314 = vector.extract_strided_slice %296 {offsets = [0, 256], sizes = [8, 128], strides = [1, 1]} : vector<8x384xf32> to vector<8x128xf32>
    %315 = arith.mulf %304, %314 : vector<8x128xf32>
    %316 = arith.addf %313, %315 : vector<8x128xf32>
    %317 = math.tanh %316 : vector<8x128xf32>
    %cst_74 = arith.constant 1.000000e+00 : f32
    %318 = vector.broadcast %cst_74 : f32 to vector<8x128xf32>
    %319 = arith.subf %318, %312 : vector<8x128xf32>
    %320 = arith.mulf %319, %317 : vector<8x128xf32>
    %321 = arith.mulf %312, %242 : vector<8x128xf32>
    %322 = arith.addf %320, %321 : vector<8x128xf32>
    %323 = arith.index_cast %c3_i32 : i32 to index
    %c0_75 = arith.constant 0 : index
    %c0_76 = arith.constant 0 : index
    %324 = vector.load %arg8[%323, %c0_75, %c0_76] : memref<8x8x256xf32, #tpu.memory_space<vmem>>, vector<1x8x128xf32>
    %325 = vector.shape_cast %324 : vector<1x8x128xf32> to vector<8x128xf32>
    %326 = vector.shape_cast %289 : vector<8x128xf32> to vector<1x8x128xf32>
    tpu.vector_store %arg8[%323, %c0_75, %c0_76], %326 {strides = array<i32>} : memref<8x8x256xf32, #tpu.memory_space<vmem>>, vector<1x8x128xf32>,
    %c7_i32_77 = arith.constant 7 : i32
    %327 = arith.subi %c7_i32_77, %c3_i32 : i32
    %328 = arith.index_cast %327 : i32 to index
    %c0_78 = arith.constant 0 : index
    %c128_79 = arith.constant 128 : index
    %329 = vector.load %arg8[%328, %c0_78, %c128_79] : memref<8x8x256xf32, #tpu.memory_space<vmem>>, vector<1x8x128xf32>
    %330 = vector.shape_cast %329 : vector<1x8x128xf32> to vector<8x128xf32>
    %331 = vector.shape_cast %322 : vector<8x128xf32> to vector<1x8x128xf32>
    tpu.vector_store %arg8[%328, %c0_78, %c128_79], %331 {strides = array<i32>} : memref<8x8x256xf32, #tpu.memory_space<vmem>>, vector<1x8x128xf32>,
    %332 = arith.maximumf %252, %289 : vector<8x128xf32>
    %333 = arith.maximumf %253, %322 : vector<8x128xf32>
    %c4_i32 = arith.constant 4 : i32
    %334 = tpu.concatenate %289, %12 in 1 : vector<8x128xf32>, vector<8x128xf32> -> vector<8x256xf32>
    %335 = tpu.concatenate %12, %322 in 1 : vector<8x128xf32>, vector<8x128xf32> -> vector<8x256xf32>
    %336 = tpu.concatenate %334, %335 in 0 : vector<8x256xf32>, vector<8x256xf32> -> vector<16x256xf32>
    %cst_80 = arith.constant dense<0.000000e+00> : vector<16x384xf32>
    %337 = tpu.matmul %336, %7, %cst_80 {dimension_numbers = #tpu.dot_dimension_numbers<[1], [0], [0], [1], [0, 0, 1, 1], [], []>} : vector<16x256xf32>, vector<256x384xf32>, vector<16x384xf32> -> vector<16x384xf32>
    %338 = arith.index_cast %c4_i32 : i32 to index
    %c0_81 = arith.constant 0 : index
    %c0_82 = arith.constant 0 : index
    %339 = vector.load %arg9[%338, %c0_81, %c0_82] : memref<8x8x384xf32, #tpu.memory_space<vmem>>, vector<1x8x384xf32>
    %340 = vector.shape_cast %339 : vector<1x8x384xf32> to vector<8x384xf32>
    %341 = vector.extract_strided_slice %337 {offsets = [0, 0], sizes = [8, 384], strides = [1, 1]} : vector<16x384xf32> to vector<8x384xf32>
    %342 = vector.broadcast %9 : vector<1x384xf32> to vector<8x384xf32>
    %343 = arith.addf %341, %342 : vector<8x384xf32>
    %344 = vector.extract_strided_slice %340 {offsets = [0, 0], sizes = [8, 128], strides = [1, 1]} : vector<8x384xf32> to vector<8x128xf32>
    %345 = vector.extract_strided_slice %343 {offsets = [0, 0], sizes = [8, 128], strides = [1, 1]} : vector<8x384xf32> to vector<8x128xf32>
    %346 = arith.addf %344, %345 : vector<8x128xf32>
    %347 = arith.negf %346 : vector<8x128xf32>
    %348 = math.exp %347 : vector<8x128xf32>
    %cst_83 = arith.constant 1.000000e+00 : f32
    %349 = vector.broadcast %cst_83 : f32 to vector<8x128xf32>
    %350 = arith.addf %349, %348 : vector<8x128xf32>
    %351 = arith.divf %349, %350 : vector<8x128xf32>
    %352 = vector.extract_strided_slice %340 {offsets = [0, 128], sizes = [8, 128], strides = [1, 1]} : vector<8x384xf32> to vector<8x128xf32>
    %353 = vector.extract_strided_slice %343 {offsets = [0, 128], sizes = [8, 128], strides = [1, 1]} : vector<8x384xf32> to vector<8x128xf32>
    %354 = arith.addf %352, %353 : vector<8x128xf32>
    %355 = arith.negf %354 : vector<8x128xf32>
    %356 = math.exp %355 : vector<8x128xf32>
    %cst_84 = arith.constant 1.000000e+00 : f32
    %357 = vector.broadcast %cst_84 : f32 to vector<8x128xf32>
    %358 = arith.addf %357, %356 : vector<8x128xf32>
    %359 = arith.divf %357, %358 : vector<8x128xf32>
    %360 = vector.extract_strided_slice %340 {offsets = [0, 256], sizes = [8, 128], strides = [1, 1]} : vector<8x384xf32> to vector<8x128xf32>
    %361 = vector.extract_strided_slice %343 {offsets = [0, 256], sizes = [8, 128], strides = [1, 1]} : vector<8x384xf32> to vector<8x128xf32>
    %362 = arith.mulf %351, %361 : vector<8x128xf32>
    %363 = arith.addf %360, %362 : vector<8x128xf32>
    %364 = math.tanh %363 : vector<8x128xf32>
    %cst_85 = arith.constant 1.000000e+00 : f32
    %365 = vector.broadcast %cst_85 : f32 to vector<8x128xf32>
    %366 = arith.subf %365, %359 : vector<8x128xf32>
    %367 = arith.mulf %366, %364 : vector<8x128xf32>
    %368 = arith.mulf %359, %289 : vector<8x128xf32>
    %369 = arith.addf %367, %368 : vector<8x128xf32>
    %c7_i32_86 = arith.constant 7 : i32
    %370 = arith.subi %c7_i32_86, %c4_i32 : i32
    %371 = arith.index_cast %370 : i32 to index
    %c0_87 = arith.constant 0 : index
    %c0_88 = arith.constant 0 : index
    %372 = vector.load %arg10[%371, %c0_87, %c0_88] : memref<8x8x384xf32, #tpu.memory_space<vmem>>, vector<1x8x384xf32>
    %373 = vector.shape_cast %372 : vector<1x8x384xf32> to vector<8x384xf32>
    %374 = vector.extract_strided_slice %337 {offsets = [8, 0], sizes = [8, 384], strides = [1, 1]} : vector<16x384xf32> to vector<8x384xf32>
    %375 = vector.broadcast %11 : vector<1x384xf32> to vector<8x384xf32>
    %376 = arith.addf %374, %375 : vector<8x384xf32>
    %377 = vector.extract_strided_slice %373 {offsets = [0, 0], sizes = [8, 128], strides = [1, 1]} : vector<8x384xf32> to vector<8x128xf32>
    %378 = vector.extract_strided_slice %376 {offsets = [0, 0], sizes = [8, 128], strides = [1, 1]} : vector<8x384xf32> to vector<8x128xf32>
    %379 = arith.addf %377, %378 : vector<8x128xf32>
    %380 = arith.negf %379 : vector<8x128xf32>
    %381 = math.exp %380 : vector<8x128xf32>
    %cst_89 = arith.constant 1.000000e+00 : f32
    %382 = vector.broadcast %cst_89 : f32 to vector<8x128xf32>
    %383 = arith.addf %382, %381 : vector<8x128xf32>
    %384 = arith.divf %382, %383 : vector<8x128xf32>
    %385 = vector.extract_strided_slice %373 {offsets = [0, 128], sizes = [8, 128], strides = [1, 1]} : vector<8x384xf32> to vector<8x128xf32>
    %386 = vector.extract_strided_slice %376 {offsets = [0, 128], sizes = [8, 128], strides = [1, 1]} : vector<8x384xf32> to vector<8x128xf32>
    %387 = arith.addf %385, %386 : vector<8x128xf32>
    %388 = arith.negf %387 : vector<8x128xf32>
    %389 = math.exp %388 : vector<8x128xf32>
    %cst_90 = arith.constant 1.000000e+00 : f32
    %390 = vector.broadcast %cst_90 : f32 to vector<8x128xf32>
    %391 = arith.addf %390, %389 : vector<8x128xf32>
    %392 = arith.divf %390, %391 : vector<8x128xf32>
    %393 = vector.extract_strided_slice %373 {offsets = [0, 256], sizes = [8, 128], strides = [1, 1]} : vector<8x384xf32> to vector<8x128xf32>
    %394 = vector.extract_strided_slice %376 {offsets = [0, 256], sizes = [8, 128], strides = [1, 1]} : vector<8x384xf32> to vector<8x128xf32>
    %395 = arith.mulf %384, %394 : vector<8x128xf32>
    %396 = arith.addf %393, %395 : vector<8x128xf32>
    %397 = math.tanh %396 : vector<8x128xf32>
    %cst_91 = arith.constant 1.000000e+00 : f32
    %398 = vector.broadcast %cst_91 : f32 to vector<8x128xf32>
    %399 = arith.subf %398, %392 : vector<8x128xf32>
    %400 = arith.mulf %399, %397 : vector<8x128xf32>
    %401 = arith.mulf %392, %322 : vector<8x128xf32>
    %402 = arith.addf %400, %401 : vector<8x128xf32>
    %403 = arith.index_cast %c4_i32 : i32 to index
    %c0_92 = arith.constant 0 : index
    %c0_93 = arith.constant 0 : index
    %404 = vector.load %arg8[%403, %c0_92, %c0_93] : memref<8x8x256xf32, #tpu.memory_space<vmem>>, vector<1x8x128xf32>
    %405 = vector.shape_cast %404 : vector<1x8x128xf32> to vector<8x128xf32>
    %406 = vector.shape_cast %369 : vector<8x128xf32> to vector<1x8x128xf32>
    tpu.vector_store %arg8[%403, %c0_92, %c0_93], %406 {strides = array<i32>} : memref<8x8x256xf32, #tpu.memory_space<vmem>>, vector<1x8x128xf32>,
    %c7_i32_94 = arith.constant 7 : i32
    %407 = arith.subi %c7_i32_94, %c4_i32 : i32
    %408 = arith.index_cast %407 : i32 to index
    %c0_95 = arith.constant 0 : index
    %c128_96 = arith.constant 128 : index
    %409 = vector.load %arg8[%408, %c0_95, %c128_96] : memref<8x8x256xf32, #tpu.memory_space<vmem>>, vector<1x8x128xf32>
    %410 = vector.shape_cast %409 : vector<1x8x128xf32> to vector<8x128xf32>
    %411 = vector.shape_cast %402 : vector<8x128xf32> to vector<1x8x128xf32>
    tpu.vector_store %arg8[%408, %c0_95, %c128_96], %411 {strides = array<i32>} : memref<8x8x256xf32, #tpu.memory_space<vmem>>, vector<1x8x128xf32>,
    %412 = arith.maximumf %332, %369 : vector<8x128xf32>
    %413 = arith.maximumf %333, %402 : vector<8x128xf32>
    %c5_i32 = arith.constant 5 : i32
    %414 = tpu.concatenate %369, %12 in 1 : vector<8x128xf32>, vector<8x128xf32> -> vector<8x256xf32>
    %415 = tpu.concatenate %12, %402 in 1 : vector<8x128xf32>, vector<8x128xf32> -> vector<8x256xf32>
    %416 = tpu.concatenate %414, %415 in 0 : vector<8x256xf32>, vector<8x256xf32> -> vector<16x256xf32>
    %cst_97 = arith.constant dense<0.000000e+00> : vector<16x384xf32>
    %417 = tpu.matmul %416, %7, %cst_97 {dimension_numbers = #tpu.dot_dimension_numbers<[1], [0], [0], [1], [0, 0, 1, 1], [], []>} : vector<16x256xf32>, vector<256x384xf32>, vector<16x384xf32> -> vector<16x384xf32>
    %418 = arith.index_cast %c5_i32 : i32 to index
    %c0_98 = arith.constant 0 : index
    %c0_99 = arith.constant 0 : index
    %419 = vector.load %arg9[%418, %c0_98, %c0_99] : memref<8x8x384xf32, #tpu.memory_space<vmem>>, vector<1x8x384xf32>
    %420 = vector.shape_cast %419 : vector<1x8x384xf32> to vector<8x384xf32>
    %421 = vector.extract_strided_slice %417 {offsets = [0, 0], sizes = [8, 384], strides = [1, 1]} : vector<16x384xf32> to vector<8x384xf32>
    %422 = vector.broadcast %9 : vector<1x384xf32> to vector<8x384xf32>
    %423 = arith.addf %421, %422 : vector<8x384xf32>
    %424 = vector.extract_strided_slice %420 {offsets = [0, 0], sizes = [8, 128], strides = [1, 1]} : vector<8x384xf32> to vector<8x128xf32>
    %425 = vector.extract_strided_slice %423 {offsets = [0, 0], sizes = [8, 128], strides = [1, 1]} : vector<8x384xf32> to vector<8x128xf32>
    %426 = arith.addf %424, %425 : vector<8x128xf32>
    %427 = arith.negf %426 : vector<8x128xf32>
    %428 = math.exp %427 : vector<8x128xf32>
    %cst_100 = arith.constant 1.000000e+00 : f32
    %429 = vector.broadcast %cst_100 : f32 to vector<8x128xf32>
    %430 = arith.addf %429, %428 : vector<8x128xf32>
    %431 = arith.divf %429, %430 : vector<8x128xf32>
    %432 = vector.extract_strided_slice %420 {offsets = [0, 128], sizes = [8, 128], strides = [1, 1]} : vector<8x384xf32> to vector<8x128xf32>
    %433 = vector.extract_strided_slice %423 {offsets = [0, 128], sizes = [8, 128], strides = [1, 1]} : vector<8x384xf32> to vector<8x128xf32>
    %434 = arith.addf %432, %433 : vector<8x128xf32>
    %435 = arith.negf %434 : vector<8x128xf32>
    %436 = math.exp %435 : vector<8x128xf32>
    %cst_101 = arith.constant 1.000000e+00 : f32
    %437 = vector.broadcast %cst_101 : f32 to vector<8x128xf32>
    %438 = arith.addf %437, %436 : vector<8x128xf32>
    %439 = arith.divf %437, %438 : vector<8x128xf32>
    %440 = vector.extract_strided_slice %420 {offsets = [0, 256], sizes = [8, 128], strides = [1, 1]} : vector<8x384xf32> to vector<8x128xf32>
    %441 = vector.extract_strided_slice %423 {offsets = [0, 256], sizes = [8, 128], strides = [1, 1]} : vector<8x384xf32> to vector<8x128xf32>
    %442 = arith.mulf %431, %441 : vector<8x128xf32>
    %443 = arith.addf %440, %442 : vector<8x128xf32>
    %444 = math.tanh %443 : vector<8x128xf32>
    %cst_102 = arith.constant 1.000000e+00 : f32
    %445 = vector.broadcast %cst_102 : f32 to vector<8x128xf32>
    %446 = arith.subf %445, %439 : vector<8x128xf32>
    %447 = arith.mulf %446, %444 : vector<8x128xf32>
    %448 = arith.mulf %439, %369 : vector<8x128xf32>
    %449 = arith.addf %447, %448 : vector<8x128xf32>
    %c7_i32_103 = arith.constant 7 : i32
    %450 = arith.subi %c7_i32_103, %c5_i32 : i32
    %451 = arith.index_cast %450 : i32 to index
    %c0_104 = arith.constant 0 : index
    %c0_105 = arith.constant 0 : index
    %452 = vector.load %arg10[%451, %c0_104, %c0_105] : memref<8x8x384xf32, #tpu.memory_space<vmem>>, vector<1x8x384xf32>
    %453 = vector.shape_cast %452 : vector<1x8x384xf32> to vector<8x384xf32>
    %454 = vector.extract_strided_slice %417 {offsets = [8, 0], sizes = [8, 384], strides = [1, 1]} : vector<16x384xf32> to vector<8x384xf32>
    %455 = vector.broadcast %11 : vector<1x384xf32> to vector<8x384xf32>
    %456 = arith.addf %454, %455 : vector<8x384xf32>
    %457 = vector.extract_strided_slice %453 {offsets = [0, 0], sizes = [8, 128], strides = [1, 1]} : vector<8x384xf32> to vector<8x128xf32>
    %458 = vector.extract_strided_slice %456 {offsets = [0, 0], sizes = [8, 128], strides = [1, 1]} : vector<8x384xf32> to vector<8x128xf32>
    %459 = arith.addf %457, %458 : vector<8x128xf32>
    %460 = arith.negf %459 : vector<8x128xf32>
    %461 = math.exp %460 : vector<8x128xf32>
    %cst_106 = arith.constant 1.000000e+00 : f32
    %462 = vector.broadcast %cst_106 : f32 to vector<8x128xf32>
    %463 = arith.addf %462, %461 : vector<8x128xf32>
    %464 = arith.divf %462, %463 : vector<8x128xf32>
    %465 = vector.extract_strided_slice %453 {offsets = [0, 128], sizes = [8, 128], strides = [1, 1]} : vector<8x384xf32> to vector<8x128xf32>
    %466 = vector.extract_strided_slice %456 {offsets = [0, 128], sizes = [8, 128], strides = [1, 1]} : vector<8x384xf32> to vector<8x128xf32>
    %467 = arith.addf %465, %466 : vector<8x128xf32>
    %468 = arith.negf %467 : vector<8x128xf32>
    %469 = math.exp %468 : vector<8x128xf32>
    %cst_107 = arith.constant 1.000000e+00 : f32
    %470 = vector.broadcast %cst_107 : f32 to vector<8x128xf32>
    %471 = arith.addf %470, %469 : vector<8x128xf32>
    %472 = arith.divf %470, %471 : vector<8x128xf32>
    %473 = vector.extract_strided_slice %453 {offsets = [0, 256], sizes = [8, 128], strides = [1, 1]} : vector<8x384xf32> to vector<8x128xf32>
    %474 = vector.extract_strided_slice %456 {offsets = [0, 256], sizes = [8, 128], strides = [1, 1]} : vector<8x384xf32> to vector<8x128xf32>
    %475 = arith.mulf %464, %474 : vector<8x128xf32>
    %476 = arith.addf %473, %475 : vector<8x128xf32>
    %477 = math.tanh %476 : vector<8x128xf32>
    %cst_108 = arith.constant 1.000000e+00 : f32
    %478 = vector.broadcast %cst_108 : f32 to vector<8x128xf32>
    %479 = arith.subf %478, %472 : vector<8x128xf32>
    %480 = arith.mulf %479, %477 : vector<8x128xf32>
    %481 = arith.mulf %472, %402 : vector<8x128xf32>
    %482 = arith.addf %480, %481 : vector<8x128xf32>
    %483 = arith.index_cast %c5_i32 : i32 to index
    %c0_109 = arith.constant 0 : index
    %c0_110 = arith.constant 0 : index
    %484 = vector.load %arg8[%483, %c0_109, %c0_110] : memref<8x8x256xf32, #tpu.memory_space<vmem>>, vector<1x8x128xf32>
    %485 = vector.shape_cast %484 : vector<1x8x128xf32> to vector<8x128xf32>
    %486 = vector.shape_cast %449 : vector<8x128xf32> to vector<1x8x128xf32>
    tpu.vector_store %arg8[%483, %c0_109, %c0_110], %486 {strides = array<i32>} : memref<8x8x256xf32, #tpu.memory_space<vmem>>, vector<1x8x128xf32>,
    %c7_i32_111 = arith.constant 7 : i32
    %487 = arith.subi %c7_i32_111, %c5_i32 : i32
    %488 = arith.index_cast %487 : i32 to index
    %c0_112 = arith.constant 0 : index
    %c128_113 = arith.constant 128 : index
    %489 = vector.load %arg8[%488, %c0_112, %c128_113] : memref<8x8x256xf32, #tpu.memory_space<vmem>>, vector<1x8x128xf32>
    %490 = vector.shape_cast %489 : vector<1x8x128xf32> to vector<8x128xf32>
    %491 = vector.shape_cast %482 : vector<8x128xf32> to vector<1x8x128xf32>
    tpu.vector_store %arg8[%488, %c0_112, %c128_113], %491 {strides = array<i32>} : memref<8x8x256xf32, #tpu.memory_space<vmem>>, vector<1x8x128xf32>,
    %492 = arith.maximumf %412, %449 : vector<8x128xf32>
    %493 = arith.maximumf %413, %482 : vector<8x128xf32>
    %c6_i32 = arith.constant 6 : i32
    %494 = tpu.concatenate %449, %12 in 1 : vector<8x128xf32>, vector<8x128xf32> -> vector<8x256xf32>
    %495 = tpu.concatenate %12, %482 in 1 : vector<8x128xf32>, vector<8x128xf32> -> vector<8x256xf32>
    %496 = tpu.concatenate %494, %495 in 0 : vector<8x256xf32>, vector<8x256xf32> -> vector<16x256xf32>
    %cst_114 = arith.constant dense<0.000000e+00> : vector<16x384xf32>
    %497 = tpu.matmul %496, %7, %cst_114 {dimension_numbers = #tpu.dot_dimension_numbers<[1], [0], [0], [1], [0, 0, 1, 1], [], []>} : vector<16x256xf32>, vector<256x384xf32>, vector<16x384xf32> -> vector<16x384xf32>
    %498 = arith.index_cast %c6_i32 : i32 to index
    %c0_115 = arith.constant 0 : index
    %c0_116 = arith.constant 0 : index
    %499 = vector.load %arg9[%498, %c0_115, %c0_116] : memref<8x8x384xf32, #tpu.memory_space<vmem>>, vector<1x8x384xf32>
    %500 = vector.shape_cast %499 : vector<1x8x384xf32> to vector<8x384xf32>
    %501 = vector.extract_strided_slice %497 {offsets = [0, 0], sizes = [8, 384], strides = [1, 1]} : vector<16x384xf32> to vector<8x384xf32>
    %502 = vector.broadcast %9 : vector<1x384xf32> to vector<8x384xf32>
    %503 = arith.addf %501, %502 : vector<8x384xf32>
    %504 = vector.extract_strided_slice %500 {offsets = [0, 0], sizes = [8, 128], strides = [1, 1]} : vector<8x384xf32> to vector<8x128xf32>
    %505 = vector.extract_strided_slice %503 {offsets = [0, 0], sizes = [8, 128], strides = [1, 1]} : vector<8x384xf32> to vector<8x128xf32>
    %506 = arith.addf %504, %505 : vector<8x128xf32>
    %507 = arith.negf %506 : vector<8x128xf32>
    %508 = math.exp %507 : vector<8x128xf32>
    %cst_117 = arith.constant 1.000000e+00 : f32
    %509 = vector.broadcast %cst_117 : f32 to vector<8x128xf32>
    %510 = arith.addf %509, %508 : vector<8x128xf32>
    %511 = arith.divf %509, %510 : vector<8x128xf32>
    %512 = vector.extract_strided_slice %500 {offsets = [0, 128], sizes = [8, 128], strides = [1, 1]} : vector<8x384xf32> to vector<8x128xf32>
    %513 = vector.extract_strided_slice %503 {offsets = [0, 128], sizes = [8, 128], strides = [1, 1]} : vector<8x384xf32> to vector<8x128xf32>
    %514 = arith.addf %512, %513 : vector<8x128xf32>
    %515 = arith.negf %514 : vector<8x128xf32>
    %516 = math.exp %515 : vector<8x128xf32>
    %cst_118 = arith.constant 1.000000e+00 : f32
    %517 = vector.broadcast %cst_118 : f32 to vector<8x128xf32>
    %518 = arith.addf %517, %516 : vector<8x128xf32>
    %519 = arith.divf %517, %518 : vector<8x128xf32>
    %520 = vector.extract_strided_slice %500 {offsets = [0, 256], sizes = [8, 128], strides = [1, 1]} : vector<8x384xf32> to vector<8x128xf32>
    %521 = vector.extract_strided_slice %503 {offsets = [0, 256], sizes = [8, 128], strides = [1, 1]} : vector<8x384xf32> to vector<8x128xf32>
    %522 = arith.mulf %511, %521 : vector<8x128xf32>
    %523 = arith.addf %520, %522 : vector<8x128xf32>
    %524 = math.tanh %523 : vector<8x128xf32>
    %cst_119 = arith.constant 1.000000e+00 : f32
    %525 = vector.broadcast %cst_119 : f32 to vector<8x128xf32>
    %526 = arith.subf %525, %519 : vector<8x128xf32>
    %527 = arith.mulf %526, %524 : vector<8x128xf32>
    %528 = arith.mulf %519, %449 : vector<8x128xf32>
    %529 = arith.addf %527, %528 : vector<8x128xf32>
    %c7_i32_120 = arith.constant 7 : i32
    %530 = arith.subi %c7_i32_120, %c6_i32 : i32
    %531 = arith.index_cast %530 : i32 to index
    %c0_121 = arith.constant 0 : index
    %c0_122 = arith.constant 0 : index
    %532 = vector.load %arg10[%531, %c0_121, %c0_122] : memref<8x8x384xf32, #tpu.memory_space<vmem>>, vector<1x8x384xf32>
    %533 = vector.shape_cast %532 : vector<1x8x384xf32> to vector<8x384xf32>
    %534 = vector.extract_strided_slice %497 {offsets = [8, 0], sizes = [8, 384], strides = [1, 1]} : vector<16x384xf32> to vector<8x384xf32>
    %535 = vector.broadcast %11 : vector<1x384xf32> to vector<8x384xf32>
    %536 = arith.addf %534, %535 : vector<8x384xf32>
    %537 = vector.extract_strided_slice %533 {offsets = [0, 0], sizes = [8, 128], strides = [1, 1]} : vector<8x384xf32> to vector<8x128xf32>
    %538 = vector.extract_strided_slice %536 {offsets = [0, 0], sizes = [8, 128], strides = [1, 1]} : vector<8x384xf32> to vector<8x128xf32>
    %539 = arith.addf %537, %538 : vector<8x128xf32>
    %540 = arith.negf %539 : vector<8x128xf32>
    %541 = math.exp %540 : vector<8x128xf32>
    %cst_123 = arith.constant 1.000000e+00 : f32
    %542 = vector.broadcast %cst_123 : f32 to vector<8x128xf32>
    %543 = arith.addf %542, %541 : vector<8x128xf32>
    %544 = arith.divf %542, %543 : vector<8x128xf32>
    %545 = vector.extract_strided_slice %533 {offsets = [0, 128], sizes = [8, 128], strides = [1, 1]} : vector<8x384xf32> to vector<8x128xf32>
    %546 = vector.extract_strided_slice %536 {offsets = [0, 128], sizes = [8, 128], strides = [1, 1]} : vector<8x384xf32> to vector<8x128xf32>
    %547 = arith.addf %545, %546 : vector<8x128xf32>
    %548 = arith.negf %547 : vector<8x128xf32>
    %549 = math.exp %548 : vector<8x128xf32>
    %cst_124 = arith.constant 1.000000e+00 : f32
    %550 = vector.broadcast %cst_124 : f32 to vector<8x128xf32>
    %551 = arith.addf %550, %549 : vector<8x128xf32>
    %552 = arith.divf %550, %551 : vector<8x128xf32>
    %553 = vector.extract_strided_slice %533 {offsets = [0, 256], sizes = [8, 128], strides = [1, 1]} : vector<8x384xf32> to vector<8x128xf32>
    %554 = vector.extract_strided_slice %536 {offsets = [0, 256], sizes = [8, 128], strides = [1, 1]} : vector<8x384xf32> to vector<8x128xf32>
    %555 = arith.mulf %544, %554 : vector<8x128xf32>
    %556 = arith.addf %553, %555 : vector<8x128xf32>
    %557 = math.tanh %556 : vector<8x128xf32>
    %cst_125 = arith.constant 1.000000e+00 : f32
    %558 = vector.broadcast %cst_125 : f32 to vector<8x128xf32>
    %559 = arith.subf %558, %552 : vector<8x128xf32>
    %560 = arith.mulf %559, %557 : vector<8x128xf32>
    %561 = arith.mulf %552, %482 : vector<8x128xf32>
    %562 = arith.addf %560, %561 : vector<8x128xf32>
    %563 = arith.index_cast %c6_i32 : i32 to index
    %c0_126 = arith.constant 0 : index
    %c0_127 = arith.constant 0 : index
    %564 = vector.load %arg8[%563, %c0_126, %c0_127] : memref<8x8x256xf32, #tpu.memory_space<vmem>>, vector<1x8x128xf32>
    %565 = vector.shape_cast %564 : vector<1x8x128xf32> to vector<8x128xf32>
    %566 = vector.shape_cast %529 : vector<8x128xf32> to vector<1x8x128xf32>
    tpu.vector_store %arg8[%563, %c0_126, %c0_127], %566 {strides = array<i32>} : memref<8x8x256xf32, #tpu.memory_space<vmem>>, vector<1x8x128xf32>,
    %c7_i32_128 = arith.constant 7 : i32
    %567 = arith.subi %c7_i32_128, %c6_i32 : i32
    %568 = arith.index_cast %567 : i32 to index
    %c0_129 = arith.constant 0 : index
    %c128_130 = arith.constant 128 : index
    %569 = vector.load %arg8[%568, %c0_129, %c128_130] : memref<8x8x256xf32, #tpu.memory_space<vmem>>, vector<1x8x128xf32>
    %570 = vector.shape_cast %569 : vector<1x8x128xf32> to vector<8x128xf32>
    %571 = vector.shape_cast %562 : vector<8x128xf32> to vector<1x8x128xf32>
    tpu.vector_store %arg8[%568, %c0_129, %c128_130], %571 {strides = array<i32>} : memref<8x8x256xf32, #tpu.memory_space<vmem>>, vector<1x8x128xf32>,
    %572 = arith.maximumf %492, %529 : vector<8x128xf32>
    %573 = arith.maximumf %493, %562 : vector<8x128xf32>
    %c7_i32_131 = arith.constant 7 : i32
    %574 = tpu.concatenate %529, %12 in 1 : vector<8x128xf32>, vector<8x128xf32> -> vector<8x256xf32>
    %575 = tpu.concatenate %12, %562 in 1 : vector<8x128xf32>, vector<8x128xf32> -> vector<8x256xf32>
    %576 = tpu.concatenate %574, %575 in 0 : vector<8x256xf32>, vector<8x256xf32> -> vector<16x256xf32>
    %cst_132 = arith.constant dense<0.000000e+00> : vector<16x384xf32>
    %577 = tpu.matmul %576, %7, %cst_132 {dimension_numbers = #tpu.dot_dimension_numbers<[1], [0], [0], [1], [0, 0, 1, 1], [], []>} : vector<16x256xf32>, vector<256x384xf32>, vector<16x384xf32> -> vector<16x384xf32>
    %578 = arith.index_cast %c7_i32_131 : i32 to index
    %c0_133 = arith.constant 0 : index
    %c0_134 = arith.constant 0 : index
    %579 = vector.load %arg9[%578, %c0_133, %c0_134] : memref<8x8x384xf32, #tpu.memory_space<vmem>>, vector<1x8x384xf32>
    %580 = vector.shape_cast %579 : vector<1x8x384xf32> to vector<8x384xf32>
    %581 = vector.extract_strided_slice %577 {offsets = [0, 0], sizes = [8, 384], strides = [1, 1]} : vector<16x384xf32> to vector<8x384xf32>
    %582 = vector.broadcast %9 : vector<1x384xf32> to vector<8x384xf32>
    %583 = arith.addf %581, %582 : vector<8x384xf32>
    %584 = vector.extract_strided_slice %580 {offsets = [0, 0], sizes = [8, 128], strides = [1, 1]} : vector<8x384xf32> to vector<8x128xf32>
    %585 = vector.extract_strided_slice %583 {offsets = [0, 0], sizes = [8, 128], strides = [1, 1]} : vector<8x384xf32> to vector<8x128xf32>
    %586 = arith.addf %584, %585 : vector<8x128xf32>
    %587 = arith.negf %586 : vector<8x128xf32>
    %588 = math.exp %587 : vector<8x128xf32>
    %cst_135 = arith.constant 1.000000e+00 : f32
    %589 = vector.broadcast %cst_135 : f32 to vector<8x128xf32>
    %590 = arith.addf %589, %588 : vector<8x128xf32>
    %591 = arith.divf %589, %590 : vector<8x128xf32>
    %592 = vector.extract_strided_slice %580 {offsets = [0, 128], sizes = [8, 128], strides = [1, 1]} : vector<8x384xf32> to vector<8x128xf32>
    %593 = vector.extract_strided_slice %583 {offsets = [0, 128], sizes = [8, 128], strides = [1, 1]} : vector<8x384xf32> to vector<8x128xf32>
    %594 = arith.addf %592, %593 : vector<8x128xf32>
    %595 = arith.negf %594 : vector<8x128xf32>
    %596 = math.exp %595 : vector<8x128xf32>
    %cst_136 = arith.constant 1.000000e+00 : f32
    %597 = vector.broadcast %cst_136 : f32 to vector<8x128xf32>
    %598 = arith.addf %597, %596 : vector<8x128xf32>
    %599 = arith.divf %597, %598 : vector<8x128xf32>
    %600 = vector.extract_strided_slice %580 {offsets = [0, 256], sizes = [8, 128], strides = [1, 1]} : vector<8x384xf32> to vector<8x128xf32>
    %601 = vector.extract_strided_slice %583 {offsets = [0, 256], sizes = [8, 128], strides = [1, 1]} : vector<8x384xf32> to vector<8x128xf32>
    %602 = arith.mulf %591, %601 : vector<8x128xf32>
    %603 = arith.addf %600, %602 : vector<8x128xf32>
    %604 = math.tanh %603 : vector<8x128xf32>
    %cst_137 = arith.constant 1.000000e+00 : f32
    %605 = vector.broadcast %cst_137 : f32 to vector<8x128xf32>
    %606 = arith.subf %605, %599 : vector<8x128xf32>
    %607 = arith.mulf %606, %604 : vector<8x128xf32>
    %608 = arith.mulf %599, %529 : vector<8x128xf32>
    %609 = arith.addf %607, %608 : vector<8x128xf32>
    %c7_i32_138 = arith.constant 7 : i32
    %610 = arith.subi %c7_i32_138, %c7_i32_131 : i32
    %611 = arith.index_cast %610 : i32 to index
    %c0_139 = arith.constant 0 : index
    %c0_140 = arith.constant 0 : index
    %612 = vector.load %arg10[%611, %c0_139, %c0_140] : memref<8x8x384xf32, #tpu.memory_space<vmem>>, vector<1x8x384xf32>
    %613 = vector.shape_cast %612 : vector<1x8x384xf32> to vector<8x384xf32>
    %614 = vector.extract_strided_slice %577 {offsets = [8, 0], sizes = [8, 384], strides = [1, 1]} : vector<16x384xf32> to vector<8x384xf32>
    %615 = vector.broadcast %11 : vector<1x384xf32> to vector<8x384xf32>
    %616 = arith.addf %614, %615 : vector<8x384xf32>
    %617 = vector.extract_strided_slice %613 {offsets = [0, 0], sizes = [8, 128], strides = [1, 1]} : vector<8x384xf32> to vector<8x128xf32>
    %618 = vector.extract_strided_slice %616 {offsets = [0, 0], sizes = [8, 128], strides = [1, 1]} : vector<8x384xf32> to vector<8x128xf32>
    %619 = arith.addf %617, %618 : vector<8x128xf32>
    %620 = arith.negf %619 : vector<8x128xf32>
    %621 = math.exp %620 : vector<8x128xf32>
    %cst_141 = arith.constant 1.000000e+00 : f32
    %622 = vector.broadcast %cst_141 : f32 to vector<8x128xf32>
    %623 = arith.addf %622, %621 : vector<8x128xf32>
    %624 = arith.divf %622, %623 : vector<8x128xf32>
    %625 = vector.extract_strided_slice %613 {offsets = [0, 128], sizes = [8, 128], strides = [1, 1]} : vector<8x384xf32> to vector<8x128xf32>
    %626 = vector.extract_strided_slice %616 {offsets = [0, 128], sizes = [8, 128], strides = [1, 1]} : vector<8x384xf32> to vector<8x128xf32>
    %627 = arith.addf %625, %626 : vector<8x128xf32>
    %628 = arith.negf %627 : vector<8x128xf32>
    %629 = math.exp %628 : vector<8x128xf32>
    %cst_142 = arith.constant 1.000000e+00 : f32
    %630 = vector.broadcast %cst_142 : f32 to vector<8x128xf32>
    %631 = arith.addf %630, %629 : vector<8x128xf32>
    %632 = arith.divf %630, %631 : vector<8x128xf32>
    %633 = vector.extract_strided_slice %613 {offsets = [0, 256], sizes = [8, 128], strides = [1, 1]} : vector<8x384xf32> to vector<8x128xf32>
    %634 = vector.extract_strided_slice %616 {offsets = [0, 256], sizes = [8, 128], strides = [1, 1]} : vector<8x384xf32> to vector<8x128xf32>
    %635 = arith.mulf %624, %634 : vector<8x128xf32>
    %636 = arith.addf %633, %635 : vector<8x128xf32>
    %637 = math.tanh %636 : vector<8x128xf32>
    %cst_143 = arith.constant 1.000000e+00 : f32
    %638 = vector.broadcast %cst_143 : f32 to vector<8x128xf32>
    %639 = arith.subf %638, %632 : vector<8x128xf32>
    %640 = arith.mulf %639, %637 : vector<8x128xf32>
    %641 = arith.mulf %632, %562 : vector<8x128xf32>
    %642 = arith.addf %640, %641 : vector<8x128xf32>
    %643 = arith.index_cast %c7_i32_131 : i32 to index
    %c0_144 = arith.constant 0 : index
    %c0_145 = arith.constant 0 : index
    %644 = vector.load %arg8[%643, %c0_144, %c0_145] : memref<8x8x256xf32, #tpu.memory_space<vmem>>, vector<1x8x128xf32>
    %645 = vector.shape_cast %644 : vector<1x8x128xf32> to vector<8x128xf32>
    %646 = vector.shape_cast %609 : vector<8x128xf32> to vector<1x8x128xf32>
    tpu.vector_store %arg8[%643, %c0_144, %c0_145], %646 {strides = array<i32>} : memref<8x8x256xf32, #tpu.memory_space<vmem>>, vector<1x8x128xf32>,
    %c7_i32_146 = arith.constant 7 : i32
    %647 = arith.subi %c7_i32_146, %c7_i32_131 : i32
    %648 = arith.index_cast %647 : i32 to index
    %c0_147 = arith.constant 0 : index
    %c128_148 = arith.constant 128 : index
    %649 = vector.load %arg8[%648, %c0_147, %c128_148] : memref<8x8x256xf32, #tpu.memory_space<vmem>>, vector<1x8x128xf32>
    %650 = vector.shape_cast %649 : vector<1x8x128xf32> to vector<8x128xf32>
    %651 = vector.shape_cast %642 : vector<8x128xf32> to vector<1x8x128xf32>
    tpu.vector_store %arg8[%648, %c0_147, %c128_148], %651 {strides = array<i32>} : memref<8x8x256xf32, #tpu.memory_space<vmem>>, vector<1x8x128xf32>,
    %652 = arith.maximumf %572, %609 : vector<8x128xf32>
    %653 = arith.maximumf %573, %642 : vector<8x128xf32>
    %c8_i32 = arith.constant 8 : i32
    %c0_149 = arith.constant 0 : index
    %c0_150 = arith.constant 0 : index
    %c0_151 = arith.constant 0 : index
    %654 = vector.load %arg7[%c0_149, %c0_150, %c0_151] : memref<2x8x128xf32, #tpu.memory_space<vmem>>, vector<1x8x128xf32>
    %655 = vector.shape_cast %654 : vector<1x8x128xf32> to vector<8x128xf32>
    %656 = vector.shape_cast %609 : vector<8x128xf32> to vector<1x8x128xf32>
    tpu.vector_store %arg7[%c0_149, %c0_150, %c0_151], %656 {strides = array<i32>} : memref<2x8x128xf32, #tpu.memory_space<vmem>>, vector<1x8x128xf32>,
    %c1_152 = arith.constant 1 : index
    %c0_153 = arith.constant 0 : index
    %c0_154 = arith.constant 0 : index
    %657 = vector.load %arg7[%c1_152, %c0_153, %c0_154] : memref<2x8x128xf32, #tpu.memory_space<vmem>>, vector<1x8x128xf32>
    %658 = vector.shape_cast %657 : vector<1x8x128xf32> to vector<8x128xf32>
    %659 = vector.shape_cast %642 : vector<8x128xf32> to vector<1x8x128xf32>
    tpu.vector_store %arg7[%c1_152, %c0_153, %c0_154], %659 {strides = array<i32>} : memref<2x8x128xf32, #tpu.memory_space<vmem>>, vector<1x8x128xf32>,
    %c1_i32_155 = arith.constant 1 : i32
    %660 = arith.cmpi eq, %arg0, %c1_i32_155 : i32
    %661 = arith.extui %660 : i1 to i32
    %c0_i32_156 = arith.constant 0 : i32
    %662 = arith.cmpi ne, %661, %c0_i32_156 : i32
    scf.if %662 {
      %663 = math.tanh %652 : vector<8x128xf32>
      %664 = math.tanh %663 : vector<8x128xf32>
      %c0_157 = arith.constant 0 : index
      %c0_158 = arith.constant 0 : index
      %665 = vector.load %arg6[%c0_157, %c0_158] : memref<8x256xf32, #tpu.memory_space<vmem>>, vector<8x128xf32>
      tpu.vector_store %arg6[%c0_157, %c0_158], %664 {strides = array<i32>} : memref<8x256xf32, #tpu.memory_space<vmem>>, vector<8x128xf32>,
      %666 = math.tanh %653 : vector<8x128xf32>
      %667 = math.tanh %666 : vector<8x128xf32>
      %c0_159 = arith.constant 0 : index
      %c128_160 = arith.constant 128 : index
      %668 = vector.load %arg6[%c0_159, %c128_160] : memref<8x256xf32, #tpu.memory_space<vmem>>, vector<8x128xf32>
      tpu.vector_store %arg6[%c0_159, %c128_160], %667 {strides = array<i32>} : memref<8x256xf32, #tpu.memory_space<vmem>>, vector<8x128xf32>,
    } else {
    }
    return
  }
  func.func @transform_0(%arg0: i32) -> (i32, i32, i32) {
    %c0_i32 = arith.constant 0 : i32
    %c0_i32_0 = arith.constant 0 : i32
    %c0_i32_1 = arith.constant 0 : i32
    %c0_i32_2 = arith.constant 0 : i32
    return %c0_i32, %c0_i32_0, %c0_i32_1 : i32, i32, i32
  }
  func.func @transform_1(%arg0: i32) -> (i32, i32, i32, i32) {
    %c0_i32 = arith.constant 0 : i32
    %c0_i32_0 = arith.constant 0 : i32
    %c0_i32_1 = arith.constant 0 : i32
    %c0_i32_2 = arith.constant 0 : i32
    return %arg0, %c0_i32, %c0_i32_0, %c0_i32_1 : i32, i32, i32, i32
  }
  func.func @transform_2(%arg0: i32) -> (i32, i32, i32) {
    %c0_i32 = arith.constant 0 : i32
    %c0_i32_0 = arith.constant 0 : i32
    %c0_i32_1 = arith.constant 0 : i32
    return %arg0, %c0_i32, %c0_i32_0 : i32, i32, i32
  }
  func.func @transform_3(%arg0: i32) -> (i32, i32, i32, i32) {
    %c0_i32 = arith.constant 0 : i32
    %c0_i32_0 = arith.constant 0 : i32
    %c0_i32_1 = arith.constant 0 : i32
    %c0_i32_2 = arith.constant 0 : i32
    return %arg0, %c0_i32, %c0_i32_0, %c0_i32_1 : i32, i32, i32, i32
  }
  func.func @transform_4(%arg0: i32) -> (i32, i32, i32, i32) {
    %c0_i32 = arith.constant 0 : i32
    %c0_i32_0 = arith.constant 0 : i32
    %c0_i32_1 = arith.constant 0 : i32
    %c0_i32_2 = arith.constant 0 : i32
    return %arg0, %c0_i32, %c0_i32_0, %c0_i32_1 : i32, i32, i32, i32
  }
  func.func @transform_5(%arg0: i32) -> (i32, i32) {
    %c0_i32 = arith.constant 0 : i32
    %c0_i32_0 = arith.constant 0 : i32
    %c0_i32_1 = arith.constant 0 : i32
    return %c0_i32, %c0_i32_0 : i32, i32
  }
  func.func @transform_6(%arg0: i32) -> (i32, i32, i32) {
    %c0_i32 = arith.constant 0 : i32
    %c0_i32_0 = arith.constant 0 : i32
    %c0_i32_1 = arith.constant 0 : i32
    return %arg0, %c0_i32, %c0_i32_0 : i32, i32, i32
  }
}

</mosaic_0001>

<llo_original>
// kernel: dialogue_net_forward.1
$region0: #{dialogue_net_forward.1}
  #allocation0 [shape = 'u32[]', space=smem, size = 0x4, offset = 0x4, fixed_abs, tag = 'smem constant byte address 0x4 - core index']
  #allocation1 [shape = 'u32[144,128]{1,0:T(1,128)}', space=vmem, size = 0x12000, scoped, tag = 'internal scratch']
  #allocation2 [shape = 'f32[8,8,256]{2,1,0:T(8,128)}', space=vmem, size = 0x10000, scoped, tag = 'scratch operand']
  #allocation3 [shape = 'f32[8,8,384]{2,1,0:T(8,128)}', space=vmem, size = 0x18000, scoped, tag = 'scratch operand']
  #allocation4 [shape = 'f32[8,8,384]{2,1,0:T(8,128)}', space=vmem, size = 0x18000, scoped, tag = 'scratch operand']
  %s0 = inlined_call_operand.vmem [shape: f32[8,8,256], index: 0, kind: input, shape index: {}]
  %s1 = inlined_call_operand.hbm [shape: f32[2,2,256,384], index: 1, kind: input, shape index: {}]
  %s2 = inlined_call_operand.hbm [shape: f32[2,256,384], index: 2, kind: input, shape index: {}]
  %s3 = inlined_call_operand.hbm [shape: f32[2,2,1,384], index: 3, kind: input, shape index: {}]
  %s4 = inlined_call_operand.hbm [shape: f32[2,2,1,384], index: 4, kind: input, shape index: {}]
  %s5 = inlined_call_operand.vmem [shape: f32[8,256], index: 5, kind: output, shape index: {0}]
  %s6 = inlined_call_operand.vmem [shape: f32[4,8,128], index: 6, kind: output, shape index: {1}]
  %7 = xla_tuple %s5, %s6
  %s8 = sld [smem:[#allocation0]]
  $region89: #{dialogue_net_forward.1} parent=0
    _
  %s10 = ssub.s32 1, %s8
  %s11 = scalar_select 0, %s10, %s8
  $region1: #{dialogue_net_forward.1} parent=0
    #allocation5 [shape = 'u8[1572864]{0}', space=vmem, size = 0x180000, scoped, tag = 'input window, operand 1']
    #allocation6 [shape = 's32[2]{0}', space=sflag, size = 0x8, scoped, tag = 'scoped memory for dialogue_net_forward.1']
    #allocation7 [shape = 'u8[786432]{0}', space=vmem, size = 0xc0000, scoped, tag = 'input window, operand 2']
    #allocation8 [shape = 's32[2]{0}', space=sflag, size = 0x8, scoped, tag = 'scoped memory for dialogue_net_forward.1']
    #allocation9 [shape = 'u8[6144]{0}', space=vmem, size = 0x1800, scoped, tag = 'input window, operand 3']
    #allocation10 [shape = 'u8[6144]{0}', space=vmem, size = 0x1800, scoped, tag = 'input window, operand 4']
    #allocation11 [shape = 's32[2]{0}', space=sflag, size = 0x8, scoped, tag = 'scoped memory for dialogue_net_forward.1']
    %12 = vsyncpa [#allocation6], 0
    %s13 = scalar_lea.sflag [#allocation6], 1
    %14 = vsyncpa %s13, 0
    %15 = vsyncpa [#allocation8], 0
    %s16 = scalar_lea.sflag [#allocation8], 1
    %17 = vsyncpa %s16, 0
    %18 = vsyncpa [#allocation11], 0
    %s19 = scalar_lea.sflag [#allocation11], 1
    %20 = vsyncpa %s19, 0
    loop: start=0, step=1, limit=4
    $region2: #{dialogue_net_forward.1} parent=1 // loop_pre_header
      _
    $region3: #{dialogue_net_forward.1} parent=1 // loop_header
      %s22 = sphi 0, %s26
      %p23 = scmp.ge.s32.totalorder %s22, 4
      %s30 = sphi 0, %s30
      %s32 = sphi 0, %s30
      %s33 = sphi 0, %s32
      %s47 = sphi 0, %s33
      %s53 = sphi 0, %s55
      %s56 = sphi 0, %s53
      %s57 = sphi 0, %s56
      %s73 = sphi 0, %s57
      %s79 = sphi 0, %s81
      %s82 = sphi 0, %s79
      %s83 = sphi 0, %s82
      %s99 = sphi 0, %s83
      %s105 = sphi 0, %s107
      %s108 = sphi 0, %s105
      %s109 = sphi 0, %s108
      %s125 = sphi 0, %s109
      %s131 = sphi 0, %s133
      %s134 = sphi 0, %s131
      %s135 = sphi 0, %s134
      %s151 = sphi 0, %s135
      %s155 = sphi 0, %s155
      %s157 = sphi 0, %s155
      %s158 = sphi 0, %s157
      %s172 = sphi 0, %s158
      %s178 = sphi 0, %s180
      %s181 = sphi 0, %s178
      %s182 = sphi 0, %s181
      %s198 = sphi 0, %s182
    $region4: #{dialogue_net_forward.1} parent=1 // loop_header_branch
      %25 = sbr.rel (%p23) target = $region8
    $region5: #{dialogue_net_forward.1} parent=1 // loop_body
      %s27 = ssub.s32 %s22, 1
      %s28 = ssub.s32 %s22, 2
      %s29 = sadd.s32 %s22, 1
      %s31 = sadd.s32 %s30, 1
      %p34 = scmp.eq.s32.totalorder %s22, 1
      %p35 = scmp.ne.s32.totalorder %s30, %s32
      %p36 = scmp.eq.s32.totalorder %s22, 0
      %p37 = por %p35, %p36
      %p38 = scmp.ne.s32.totalorder %s30, %s32
      %p39 = scmp.eq.s32.totalorder %s27, 1
      %p40 = por %p38, %p39
      %p41 = scmp.ne.s32.totalorder %s32, %s33
      %p42 = scmp.eq.s32.totalorder %s27, 0
      %p43 = por %p41, %p42
      %p44 = scmp.ne.s32.totalorder %s32, %s33
      %p45 = scmp.eq.s32.totalorder %s28, 1
      %p46 = por %p44, %p45
      %p48 = scmp.ne.s32.totalorder %s33, %s47
      %p49 = scmp.eq.s32.totalorder %s28, 0
      %p50 = por %p48, %p49
      %s51 = ssub.s32 %s22, %s29
      %p52 = scmp.eq.s32.totalorder %s51, 0
      %s54 = sadd.s32 %s53, 1
      %s55 = scalar_select %p52, %s53, %s54
      %p58 = pneg %p52
      %p59 = scmp.eq.s32.totalorder %s22, 1
      %p60 = por %p58, %p59
      %p61 = scmp.ne.s32.totalorder %s53, %s56
      %p62 = scmp.eq.s32.totalorder %s22, 0
      %p63 = por %p61, %p62
      %p64 = scmp.ne.s32.totalorder %s53, %s56
      %p65 = scmp.eq.s32.totalorder %s27, 1
      %p66 = por %p64, %p65
      %p67 = scmp.ne.s32.totalorder %s56, %s57
      %p68 = scmp.eq.s32.totalorder %s27, 0
      %p69 = por %p67, %p68
      %p70 = scmp.ne.s32.totalorder %s56, %s57
      %p71 = scmp.eq.s32.totalorder %s28, 1
      %p72 = por %p70, %p71
      %p74 = scmp.ne.s32.totalorder %s57, %s73
      %p75 = scmp.eq.s32.totalorder %s28, 0
      %p76 = por %p74, %p75
      %s77 = ssub.s32 %s22, %s29
      %p78 = scmp.eq.s32.totalorder %s77, 0
      %s80 = sadd.s32 %s79, 1
      %s81 = scalar_select %p78, %s79, %s80
      %p84 = pneg %p78
      %p85 = scmp.eq.s32.totalorder %s22, 1
      %p86 = por %p84, %p85
      %p87 = scmp.ne.s32.totalorder %s79, %s82
      %p88 = scmp.eq.s32.totalorder %s22, 0
      %p89 = por %p87, %p88
      %p90 = scmp.ne.s32.totalorder %s79, %s82
      %p91 = scmp.eq.s32.totalorder %s27, 1
      %p92 = por %p90, %p91
      %p93 = scmp.ne.s32.totalorder %s82, %s83
      %p94 = scmp.eq.s32.totalorder %s27, 0
      %p95 = por %p93, %p94
      %p96 = scmp.ne.s32.totalorder %s82, %s83
      %p97 = scmp.eq.s32.totalorder %s28, 1
      %p98 = por %p96, %p97
      %p100 = scmp.ne.s32.totalorder %s83, %s99
      %p101 = scmp.eq.s32.totalorder %s28, 0
      %p102 = por %p100, %p101
      %s103 = ssub.s32 %s22, %s29
      %p104 = scmp.eq.s32.totalorder %s103, 0
      %s106 = sadd.s32 %s105, 1
      %s107 = scalar_select %p104, %s105, %s106
      %p110 = pneg %p104
      %p111 = scmp.eq.s32.totalorder %s22, 1
      %p112 = por %p110, %p111
      %p113 = scmp.ne.s32.totalorder %s105, %s108
      %p114 = scmp.eq.s32.totalorder %s22, 0
      %p115 = por %p113, %p114
      %p116 = scmp.ne.s32.totalorder %s105, %s108
      %p117 = scmp.eq.s32.totalorder %s27, 1
      %p118 = por %p116, %p117
      %p119 = scmp.ne.s32.totalorder %s108, %s109
      %p120 = scmp.eq.s32.totalorder %s27, 0
      %p121 = por %p119, %p120
      %p122 = scmp.ne.s32.totalorder %s108, %s109
      %p123 = scmp.eq.s32.totalorder %s28, 1
      %p124 = por %p122, %p123
      %p126 = scmp.ne.s32.totalorder %s109, %s125
      %p127 = scmp.eq.s32.totalorder %s28, 0
      %p128 = por %p126, %p127
      %s129 = ssub.s32 %s22, %s29
      %p130 = scmp.eq.s32.totalorder %s129, 0
      %s132 = sadd.s32 %s131, 1
      %s133 = scalar_select %p130, %s131, %s132
      %p136 = pneg %p130
      %p137 = scmp.eq.s32.totalorder %s22, 1
      %p138 = por %p136, %p137
      %p139 = scmp.ne.s32.totalorder %s131, %s134
      %p140 = scmp.eq.s32.totalorder %s22, 0
      %p141 = por %p139, %p140
      %p142 = scmp.ne.s32.totalorder %s131, %s134
      %p143 = scmp.eq.s32.totalorder %s27, 1
      %p144 = por %p142, %p143
      %p145 = scmp.ne.s32.totalorder %s134, %s135
      %p146 = scmp.eq.s32.totalorder %s27, 0
      %p147 = por %p145, %p146
      %p148 = scmp.ne.s32.totalorder %s134, %s135
      %p149 = scmp.eq.s32.totalorder %s28, 1
      %p150 = por %p148, %p149
      %p152 = scmp.ne.s32.totalorder %s135, %s151
      %p153 = scmp.eq.s32.totalorder %s28, 0
      %p154 = por %p152, %p153
      %s156 = sadd.s32 %s155, 1
      %p159 = scmp.eq.s32.totalorder %s22, 1
      %p160 = scmp.ne.s32.totalorder %s155, %s157
      %p161 = scmp.eq.s32.totalorder %s22, 0
      %p162 = por %p160, %p161
      %p163 = scmp.ne.s32.totalorder %s155, %s157
      %p164 = scmp.eq.s32.totalorder %s27, 1
      %p165 = por %p163, %p164
      %p166 = scmp.ne.s32.totalorder %s157, %s158
      %p167 = scmp.eq.s32.totalorder %s27, 0
      %p168 = por %p166, %p167
      %p169 = scmp.ne.s32.totalorder %s157, %s158
      %p170 = scmp.eq.s32.totalorder %s28, 1
      %p171 = por %p169, %p170
      %p173 = scmp.ne.s32.totalorder %s158, %s172
      %p174 = scmp.eq.s32.totalorder %s28, 0
      %p175 = por %p173, %p174
      %s176 = ssub.s32 %s22, %s29
      %p177 = scmp.eq.s32.totalorder %s176, 0
      %s179 = sadd.s32 %s178, 1
      %s180 = scalar_select %p177, %s178, %s179
      %p183 = pneg %p177
      %p184 = scmp.eq.s32.totalorder %s22, 1
      %p185 = por %p183, %p184
      %p186 = scmp.ne.s32.totalorder %s178, %s181
      %p187 = scmp.eq.s32.totalorder %s22, 0
      %p188 = por %p186, %p187
      %p189 = scmp.ne.s32.totalorder %s178, %s181
      %p190 = scmp.eq.s32.totalorder %s27, 1
      %p191 = por %p189, %p190
      %p192 = scmp.ne.s32.totalorder %s181, %s182
      %p193 = scmp.eq.s32.totalorder %s27, 0
      %p194 = por %p192, %p193
      %p195 = scmp.ne.s32.totalorder %s181, %s182
      %p196 = scmp.eq.s32.totalorder %s28, 1
      %p197 = por %p195, %p196
      %p199 = scmp.ne.s32.totalorder %s182, %s198
      %p200 = scmp.eq.s32.totalorder %s28, 0
      %p201 = por %p199, %p200
      %p202 = scmp.le.s32.totalorder 1, %s22
      %p203 = scmp.lt.s32.totalorder %s22, 3
      %p204 = pnand %p202, %p203
      %p205 = pneg %p204
      // Predicated region
      $region9: #{dialogue_net_forward.1} parent=5 // pred_check
        _
      $region10: #{dialogue_net_forward.1} parent=5 // pred_check_branch
        %207 = sbr.rel (%p204) target = $region12
      $region11: #{dialogue_net_forward.1} parent=5 // pred_region
        %s208 = ssub.s32 %s22, 1
        // Predicated region
        $region13: #{dialogue_net_forward.1} parent=11 // pred_check
          %p209 = pneg %p43
        $region14: #{dialogue_net_forward.1} parent=11 // pred_check_branch
          %211 = sbr.rel (%p209) target = $region16
        $region15: #{dialogue_net_forward.1} parent=11 // pred_region
          _
        $region16: #{dialogue_net_forward.1} parent=11 // pred_fallthru
          _
      $region12: #{dialogue_net_forward.1} parent=5 // pred_fallthru
        _
      %p212 = scmp.lt.s32.totalorder %s22, 2
      // Predicated region
      $region17: #{dialogue_net_forward.1} parent=5 // pred_check
        %p213 = pneg %p212
      $region18: #{dialogue_net_forward.1} parent=5 // pred_check_branch
        %215 = sbr.rel (%p213) target = $region20
      $region19: #{dialogue_net_forward.1} parent=5 // pred_region
        // Predicated region
        $region21: #{dialogue_net_forward.1} parent=19 // pred_check
          %p216 = pneg %p63
        $region22: #{dialogue_net_forward.1} parent=19 // pred_check_branch
          %218 = sbr.rel (%p216) target = $region24
        $region23: #{dialogue_net_forward.1} parent=19 // pred_region
          %s219 = sand.u32 %s53, 1
          %s220 = scalar_lea.sflag [#allocation6], %s219
          %s221 = sand.u32 %s53, 1
          %s222 = smul.addr %s221, 1536
          %s223 = scalar_lea.vmem [#allocation5], %s222
          %s225 = ssub.s32 24576, 24576
          %226 = vsyncadd %s220, %s225
          %s227 = smul.addr %s22, 192
          %s228 = smul.addr %s227, 128
          %s229 = scalar_lea.hbm %s1, %s228
          %s230 = sshll.u32 %s223, 4
          %s231 = int_to_ptr.vmem [resolvable:$true] %s230
          %236 = dma.hbm_to_vmem [thread:$0]  %s229, 24576, %s231, %s220, 384, 384, 24
        $region24: #{dialogue_net_forward.1} parent=19 // pred_fallthru
          _
        // Predicated region
        $region25: #{dialogue_net_forward.1} parent=19 // pred_check
          %p237 = pneg %p89
        $region26: #{dialogue_net_forward.1} parent=19 // pred_check_branch
          %239 = sbr.rel (%p237) target = $region28
        $region27: #{dialogue_net_forward.1} parent=19 // pred_region
          %s240 = sand.u32 %s22, 1
          %s241 = scalar_lea.sflag [#allocation8], %s240
          %s242 = sand.u32 %s79, 1
          %s243 = smul.addr %s242, 768
          %s244 = scalar_lea.vmem [#allocation7], %s243
          %s246 = ssub.s32 12288, 12288
          %247 = vsyncadd %s241, %s246
          %s248 = smul.addr %s22, 96
          %s249 = smul.addr %s248, 128
          %s250 = scalar_lea.hbm %s2, %s249
          %s251 = sshll.u32 %s244, 4
          %s252 = int_to_ptr.vmem [resolvable:$true] %s251
          %257 = dma.hbm_to_vmem [thread:$0]  %s250, 12288, %s252, %s241, 384, 384, 24
        $region28: #{dialogue_net_forward.1} parent=19 // pred_fallthru
          _
        // Predicated region
        $region29: #{dialogue_net_forward.1} parent=19 // pred_check
          %p258 = pneg %p115
        $region30: #{dialogue_net_forward.1} parent=19 // pred_check_branch
          %260 = sbr.rel (%p258) target = $region32
        $region31: #{dialogue_net_forward.1} parent=19 // pred_region
          %s261 = sand.u32 %s22, 1
          %s262 = scalar_lea.sflag [#allocation8], %s261
          %s263 = sand.u32 %s105, 1
          %s264 = smul.addr %s263, 6
          %s265 = scalar_lea.vmem [#allocation9], %s264
          %s267 = ssub.s32 96, 96
          %268 = vsyncadd %s262, %s267
          %s269 = smul.addr %s22, 6
          %s270 = smul.addr %s269, 16
          %s271 = scalar_lea.hbm %s3, %s270
          %s272 = sshll.u32 %s265, 4
          %s273 = int_to_ptr.vmem [resolvable:$true] %s272
          %278 = dma.hbm_to_vmem [thread:$0]  %s271, 96, %s273, %s262, 48, 48, 3
        $region32: #{dialogue_net_forward.1} parent=19 // pred_fallthru
          _
        // Predicated region
        $region33: #{dialogue_net_forward.1} parent=19 // pred_check
          %p279 = pneg %p141
        $region34: #{dialogue_net_forward.1} parent=19 // pred_check_branch
          %281 = sbr.rel (%p279) target = $region36
        $region35: #{dialogue_net_forward.1} parent=19 // pred_region
          %s282 = sand.u32 %s131, 1
          %s283 = scalar_lea.sflag [#allocation11], %s282
          %s284 = sand.u32 %s131, 1
          %s285 = smul.addr %s284, 6
          %s286 = scalar_lea.vmem [#allocation10], %s285
          %s288 = ssub.s32 96, 96
          %289 = vsyncadd %s283, %s288
          %s290 = smul.addr %s22, 6
          %s291 = smul.addr %s290, 16
          %s292 = scalar_lea.hbm %s4, %s291
          %s293 = sshll.u32 %s286, 4
          %s294 = int_to_ptr.vmem [resolvable:$true] %s293
          %299 = dma.hbm_to_vmem [thread:$0]  %s292, 96, %s294, %s283, 48, 48, 3
        $region36: #{dialogue_net_forward.1} parent=19 // pred_fallthru
          _
      $region20: #{dialogue_net_forward.1} parent=5 // pred_fallthru
        _
      %p300 = scmp.le.s32.totalorder 1, %s22
      %p301 = scmp.lt.s32.totalorder %s22, 3
      %p302 = pnand %p300, %p301
      %p303 = pneg %p302
      // Predicated region
      $region37: #{dialogue_net_forward.1} parent=5 // pred_check
        _
      $region38: #{dialogue_net_forward.1} parent=5 // pred_check_branch
        %305 = sbr.rel (%p302) target = $region40
      $region39: #{dialogue_net_forward.1} parent=5 // pred_region
        %s306 = ssub.s32 %s22, 1
        %s307 = sand.u32 %s56, 1
        %s308 = scalar_lea.sflag [#allocation6], %s307
        %s309 = sand.u32 %s56, 1
        %s310 = smul.addr %s309, 1536
        %s311 = scalar_lea.vmem [#allocation5], %s310
        // Predicated region
        $region41: #{dialogue_net_forward.1} parent=39 // pred_check
          %p312 = pneg %p69
        $region42: #{dialogue_net_forward.1} parent=39 // pred_check_branch
          %314 = sbr.rel (%p312) target = $region44
        $region43: #{dialogue_net_forward.1} parent=39 // pred_region
          %315 = dma.done %s308, 24576
        $region44: #{dialogue_net_forward.1} parent=39 // pred_fallthru
          _
        %s316 = sand.u32 %s27, 1
        %s317 = scalar_lea.sflag [#allocation8], %s316
        %s318 = sand.u32 %s82, 1
        %s319 = smul.addr %s318, 768
        %s320 = scalar_lea.vmem [#allocation7], %s319
        // Predicated region
        $region45: #{dialogue_net_forward.1} parent=39 // pred_check
          %p321 = pneg %p95
        $region46: #{dialogue_net_forward.1} parent=39 // pred_check_branch
          %323 = sbr.rel (%p321) target = $region48
        $region47: #{dialogue_net_forward.1} parent=39 // pred_region
          %324 = dma.done %s317, 12288
        $region48: #{dialogue_net_forward.1} parent=39 // pred_fallthru
          _
        %s325 = sand.u32 %s27, 1
        %s326 = scalar_lea.sflag [#allocation8], %s325
        %s327 = sand.u32 %s108, 1
        %s328 = smul.addr %s327, 6
        %s329 = scalar_lea.vmem [#allocation9], %s328
        // Predicated region
        $region49: #{dialogue_net_forward.1} parent=39 // pred_check
          %p330 = pneg %p121
        $region50: #{dialogue_net_forward.1} parent=39 // pred_check_branch
          %332 = sbr.rel (%p330) target = $region52
        $region51: #{dialogue_net_forward.1} parent=39 // pred_region
          %333 = dma.done %s326, 96
        $region52: #{dialogue_net_forward.1} parent=39 // pred_fallthru
          _
        %s334 = sand.u32 %s134, 1
        %s335 = scalar_lea.sflag [#allocation11], %s334
        %s336 = sand.u32 %s134, 1
        %s337 = smul.addr %s336, 6
        %s338 = scalar_lea.vmem [#allocation10], %s337
        // Predicated region
        $region53: #{dialogue_net_forward.1} parent=39 // pred_check
          %p339 = pneg %p147
        $region54: #{dialogue_net_forward.1} parent=39 // pred_check_branch
          %341 = sbr.rel (%p339) target = $region56
        $region55: #{dialogue_net_forward.1} parent=39 // pred_region
          %342 = dma.done %s335, 96
        $region56: #{dialogue_net_forward.1} parent=39 // pred_fallthru
          _
        %p343 = pneg %p43
        %p344 = pneg %p40
        %s345 = sand.u32 %s56, 1
        %s346 = scalar_lea.sflag [#allocation6], %s345
        %s347 = sand.u32 %s56, 1
        %s348 = smul.addr %s347, 1536
        %s349 = scalar_lea.vmem [#allocation5], %s348
        %p350 = pneg %p69
        %p351 = pneg %p66
        %s352 = sand.u32 %s27, 1
        %s353 = scalar_lea.sflag [#allocation8], %s352
        %s354 = sand.u32 %s82, 1
        %s355 = smul.addr %s354, 768
        %s356 = scalar_lea.vmem [#allocation7], %s355
        %p357 = pneg %p95
        %p358 = pneg %p92
        %s359 = sand.u32 %s27, 1
        %s360 = scalar_lea.sflag [#allocation8], %s359
        %s361 = sand.u32 %s108, 1
        %s362 = smul.addr %s361, 6
        %s363 = scalar_lea.vmem [#allocation9], %s362
        %p364 = pneg %p121
        %p365 = pneg %p118
        %s366 = sand.u32 %s134, 1
        %s367 = scalar_lea.sflag [#allocation11], %s366
        %s368 = sand.u32 %s134, 1
        %s369 = smul.addr %s368, 6
        %s370 = scalar_lea.vmem [#allocation10], %s369
        %p371 = pneg %p147
        %p372 = pneg %p144
        %p373 = pneg %p168
        %p374 = pneg %p165
        %p375 = pneg %p194
        %p376 = pneg %p191
        %s377 = smul.u32 2, %s27
        %p378 = scmp.lt.s32.totalorder %s377, 3
        %s379 = scalar_select %p378, %s377, 3
        %s380 = smul.addr %s379, 8
        %s381 = scalar_lea.vmem %s6, %s380
        %s382 = smul.u32 2, %s27
        %p383 = scmp.lt.s32.totalorder %s382, 3
        %s384 = scalar_select %p383, %s382, 3
        %s385 = smul.addr %s384, 8
        %s386 = scalar_lea.vmem %s6, %s385
        %s387 = smul.u32 2, %s27
        %p388 = scmp.eq.s32.totalorder %s27, 0
        // Predicated region
        $region57: #{dialogue_net_forward.1} parent=39 // pred_check
          %p389 = pneg %p388
        $region58: #{dialogue_net_forward.1} parent=39 // pred_check_branch
          %391 = sbr.rel (%p389) target = $region60
        $region59: #{dialogue_net_forward.1} parent=39 // pred_region
          %v392 = vld [vmem:[%s0] sm:$0xff]
          %v393 = vld [vmem:[%s0 + $0x8] sm:$0xff]
          %v394 = vld [vmem:[%s0 + $0x10] sm:$0xff]
          %v395 = vld [vmem:[%s0 + $0x18] sm:$0xff]
          %v396 = vld [vmem:[%s0 + $0x20] sm:$0xff]
          %v397 = vld [vmem:[%s0 + $0x28] sm:$0xff]
          %v398 = vld [vmem:[%s0 + $0x30] sm:$0xff]
          %v399 = vld [vmem:[%s0 + $0x38] sm:$0xff]
          %v400 = vld [vmem:[%s0 + $0x40] sm:$0xff]
          %v401 = vld [vmem:[%s0 + $0x48] sm:$0xff]
          %v402 = vld [vmem:[%s0 + $0x50] sm:$0xff]
          %v403 = vld [vmem:[%s0 + $0x58] sm:$0xff]
          %v404 = vld [vmem:[%s0 + $0x60] sm:$0xff]
          %v405 = vld [vmem:[%s0 + $0x68] sm:$0xff]
          %v406 = vld [vmem:[%s0 + $0x70] sm:$0xff]
          %v407 = vld [vmem:[%s0 + $0x78] sm:$0xff]
          %v408 = vld [vmem:[%s311] sm:$0xff]
          %v409 = vld [vmem:[%s311 + $0x8] sm:$0xff]
          %v410 = vld [vmem:[%s311 + $0x10] sm:$0xff]
          %v411 = vld [vmem:[%s311 + $0x18] sm:$0xff]
          %v412 = vld [vmem:[%s311 + $0x20] sm:$0xff]
          %v413 = vld [vmem:[%s311 + $0x28] sm:$0xff]
          %v414 = vld [vmem:[%s311 + $0x30] sm:$0xff]
          %v415 = vld [vmem:[%s311 + $0x38] sm:$0xff]
          %v416 = vld [vmem:[%s311 + $0x40] sm:$0xff]
          %v417 = vld [vmem:[%s311 + $0x48] sm:$0xff]
          %v418 = vld [vmem:[%s311 + $0x50] sm:$0xff]
          %v419 = vld [vmem:[%s311 + $0x58] sm:$0xff]
          %v420 = vld [vmem:[%s311 + $0x60] sm:$0xff]
          %v421 = vld [vmem:[%s311 + $0x68] sm:$0xff]
          %v422 = vld [vmem:[%s311 + $0x70] sm:$0xff]
          %v423 = vld [vmem:[%s311 + $0x78] sm:$0xff]
          %v424 = vld [vmem:[%s311 + $0x80] sm:$0xff]
          %v425 = vld [vmem:[%s311 + $0x88] sm:$0xff]
          %v426 = vld [vmem:[%s311 + $0x90] sm:$0xff]
          %v427 = vld [vmem:[%s311 + $0x98] sm:$0xff]
          %v428 = vld [vmem:[%s311 + $0xa0] sm:$0xff]
          %v429 = vld [vmem:[%s311 + $0xa8] sm:$0xff]
          %v430 = vld [vmem:[%s311 + $0xb0] sm:$0xff]
          %v431 = vld [vmem:[%s311 + $0xb8] sm:$0xff]
          %v432 = vld [vmem:[%s311 + $0xc0] sm:$0xff]
          %v433 = vld [vmem:[%s311 + $0xc8] sm:$0xff]
          %v434 = vld [vmem:[%s311 + $0xd0] sm:$0xff]
          %v435 = vld [vmem:[%s311 + $0xd8] sm:$0xff]
          %v436 = vld [vmem:[%s311 + $0xe0] sm:$0xff]
          %v437 = vld [vmem:[%s311 + $0xe8] sm:$0xff]
          %v438 = vld [vmem:[%s311 + $0xf0] sm:$0xff]
          %v439 = vld [vmem:[%s311 + $0xf8] sm:$0xff]
          %v440 = vld [vmem:[%s311 + $0x100] sm:$0xff]
          %v441 = vld [vmem:[%s311 + $0x108] sm:$0xff]
          %v442 = vld [vmem:[%s311 + $0x110] sm:$0xff]
          %v443 = vld [vmem:[%s311 + $0x118] sm:$0xff]
          %v444 = vld [vmem:[%s311 + $0x120] sm:$0xff]
          %v445 = vld [vmem:[%s311 + $0x128] sm:$0xff]
          %v446 = vld [vmem:[%s311 + $0x130] sm:$0xff]
          %v447 = vld [vmem:[%s311 + $0x138] sm:$0xff]
          %v448 = vld [vmem:[%s311 + $0x140] sm:$0xff]
          %v449 = vld [vmem:[%s311 + $0x148] sm:$0xff]
          %v450 = vld [vmem:[%s311 + $0x150] sm:$0xff]
          %v451 = vld [vmem:[%s311 + $0x158] sm:$0xff]
          %v452 = vld [vmem:[%s311 + $0x160] sm:$0xff]
          %v453 = vld [vmem:[%s311 + $0x168] sm:$0xff]
          %v454 = vld [vmem:[%s311 + $0x170] sm:$0xff]
          %v455 = vld [vmem:[%s311 + $0x178] sm:$0xff]
          %v456 = vld [vmem:[%s311 + $0x180] sm:$0xff]
          %v457 = vld [vmem:[%s311 + $0x188] sm:$0xff]
          %v458 = vld [vmem:[%s311 + $0x190] sm:$0xff]
          %v459 = vld [vmem:[%s311 + $0x198] sm:$0xff]
          %v460 = vld [vmem:[%s311 + $0x1a0] sm:$0xff]
          %v461 = vld [vmem:[%s311 + $0x1a8] sm:$0xff]
          %v462 = vld [vmem:[%s311 + $0x1b0] sm:$0xff]
          %v463 = vld [vmem:[%s311 + $0x1b8] sm:$0xff]
          %v464 = vld [vmem:[%s311 + $0x1c0] sm:$0xff]
          %v465 = vld [vmem:[%s311 + $0x1c8] sm:$0xff]
          %v466 = vld [vmem:[%s311 + $0x1d0] sm:$0xff]
          %v467 = vld [vmem:[%s311 + $0x1d8] sm:$0xff]
          %v468 = vld [vmem:[%s311 + $0x1e0] sm:$0xff]
          %v469 = vld [vmem:[%s311 + $0x1e8] sm:$0xff]
          %v470 = vld [vmem:[%s311 + $0x1f0] sm:$0xff]
          %v471 = vld [vmem:[%s311 + $0x1f8] sm:$0xff]
          %v472 = vld [vmem:[%s311 + $0x200] sm:$0xff]
          %v473 = vld [vmem:[%s311 + $0x208] sm:$0xff]
          %v474 = vld [vmem:[%s311 + $0x210] sm:$0xff]
          %v475 = vld [vmem:[%s311 + $0x218] sm:$0xff]
          %v476 = vld [vmem:[%s311 + $0x220] sm:$0xff]
          %v477 = vld [vmem:[%s311 + $0x228] sm:$0xff]
          %v478 = vld [vmem:[%s311 + $0x230] sm:$0xff]
          %v479 = vld [vmem:[%s311 + $0x238] sm:$0xff]
          %v480 = vld [vmem:[%s311 + $0x240] sm:$0xff]
          %v481 = vld [vmem:[%s311 + $0x248] sm:$0xff]
          %v482 = vld [vmem:[%s311 + $0x250] sm:$0xff]
          %v483 = vld [vmem:[%s311 + $0x258] sm:$0xff]
          %v484 = vld [vmem:[%s311 + $0x260] sm:$0xff]
          %v485 = vld [vmem:[%s311 + $0x268] sm:$0xff]
          %v486 = vld [vmem:[%s311 + $0x270] sm:$0xff]
          %v487 = vld [vmem:[%s311 + $0x278] sm:$0xff]
          %v488 = vld [vmem:[%s311 + $0x280] sm:$0xff]
          %v489 = vld [vmem:[%s311 + $0x288] sm:$0xff]
          %v490 = vld [vmem:[%s311 + $0x290] sm:$0xff]
          %v491 = vld [vmem:[%s311 + $0x298] sm:$0xff]
          %v492 = vld [vmem:[%s311 + $0x2a0] sm:$0xff]
          %v493 = vld [vmem:[%s311 + $0x2a8] sm:$0xff]
          %v494 = vld [vmem:[%s311 + $0x2b0] sm:$0xff]
          %v495 = vld [vmem:[%s311 + $0x2b8] sm:$0xff]
          %v496 = vld [vmem:[%s311 + $0x2c0] sm:$0xff]
          %v497 = vld [vmem:[%s311 + $0x2c8] sm:$0xff]
          %v498 = vld [vmem:[%s311 + $0x2d0] sm:$0xff]
          %v499 = vld [vmem:[%s311 + $0x2d8] sm:$0xff]
          %v500 = vld [vmem:[%s311 + $0x2e0] sm:$0xff]
          %v501 = vld [vmem:[%s311 + $0x2e8] sm:$0xff]
          %v502 = vld [vmem:[%s311 + $0x2f0] sm:$0xff]
          %v503 = vld [vmem:[%s311 + $0x2f8] sm:$0xff]
          %s504 = scalar_lea.vmem %s311, 768 [#allocation5]
          %v505 = vld [vmem:[%s504] sm:$0xff]
          %v506 = vld [vmem:[%s504 + $0x8] sm:$0xff]
          %v507 = vld [vmem:[%s504 + $0x10] sm:$0xff]
          %v508 = vld [vmem:[%s504 + $0x18] sm:$0xff]
          %v509 = vld [vmem:[%s504 + $0x20] sm:$0xff]
          %v510 = vld [vmem:[%s504 + $0x28] sm:$0xff]
          %v511 = vld [vmem:[%s504 + $0x30] sm:$0xff]
          %v512 = vld [vmem:[%s504 + $0x38] sm:$0xff]
          %v513 = vld [vmem:[%s504 + $0x40] sm:$0xff]
          %v514 = vld [vmem:[%s504 + $0x48] sm:$0xff]
          %v515 = vld [vmem:[%s504 + $0x50] sm:$0xff]
          %v516 = vld [vmem:[%s504 + $0x58] sm:$0xff]
          %v517 = vld [vmem:[%s504 + $0x60] sm:$0xff]
          %v518 = vld [vmem:[%s504 + $0x68] sm:$0xff]
          %v519 = vld [vmem:[%s504 + $0x70] sm:$0xff]
          %v520 = vld [vmem:[%s504 + $0x78] sm:$0xff]
          %v521 = vld [vmem:[%s504 + $0x80] sm:$0xff]
          %v522 = vld [vmem:[%s504 + $0x88] sm:$0xff]
          %v523 = vld [vmem:[%s504 + $0x90] sm:$0xff]
          %v524 = vld [vmem:[%s504 + $0x98] sm:$0xff]
          %v525 = vld [vmem:[%s504 + $0xa0] sm:$0xff]
          %v526 = vld [vmem:[%s504 + $0xa8] sm:$0xff]
          %v527 = vld [vmem:[%s504 + $0xb0] sm:$0xff]
          %v528 = vld [vmem:[%s504 + $0xb8] sm:$0xff]
          %v529 = vld [vmem:[%s504 + $0xc0] sm:$0xff]
          %v530 = vld [vmem:[%s504 + $0xc8] sm:$0xff]
          %v531 = vld [vmem:[%s504 + $0xd0] sm:$0xff]
          %v532 = vld [vmem:[%s504 + $0xd8] sm:$0xff]
          %v533 = vld [vmem:[%s504 + $0xe0] sm:$0xff]
          %v534 = vld [vmem:[%s504 + $0xe8] sm:$0xff]
          %v535 = vld [vmem:[%s504 + $0xf0] sm:$0xff]
          %v536 = vld [vmem:[%s504 + $0xf8] sm:$0xff]
          %v537 = vld [vmem:[%s504 + $0x100] sm:$0xff]
          %v538 = vld [vmem:[%s504 + $0x108] sm:$0xff]
          %v539 = vld [vmem:[%s504 + $0x110] sm:$0xff]
          %v540 = vld [vmem:[%s504 + $0x118] sm:$0xff]
          %v541 = vld [vmem:[%s504 + $0x120] sm:$0xff]
          %v542 = vld [vmem:[%s504 + $0x128] sm:$0xff]
          %v543 = vld [vmem:[%s504 + $0x130] sm:$0xff]
          %v544 = vld [vmem:[%s504 + $0x138] sm:$0xff]
          %v545 = vld [vmem:[%s504 + $0x140] sm:$0xff]
          %v546 = vld [vmem:[%s504 + $0x148] sm:$0xff]
          %v547 = vld [vmem:[%s504 + $0x150] sm:$0xff]
          %v548 = vld [vmem:[%s504 + $0x158] sm:$0xff]
          %v549 = vld [vmem:[%s504 + $0x160] sm:$0xff]
          %v550 = vld [vmem:[%s504 + $0x168] sm:$0xff]
          %v551 = vld [vmem:[%s504 + $0x170] sm:$0xff]
          %v552 = vld [vmem:[%s504 + $0x178] sm:$0xff]
          %v553 = vld [vmem:[%s504 + $0x180] sm:$0xff]
          %v554 = vld [vmem:[%s504 + $0x188] sm:$0xff]
          %v555 = vld [vmem:[%s504 + $0x190] sm:$0xff]
          %v556 = vld [vmem:[%s504 + $0x198] sm:$0xff]
          %v557 = vld [vmem:[%s504 + $0x1a0] sm:$0xff]
          %v558 = vld [vmem:[%s504 + $0x1a8] sm:$0xff]
          %v559 = vld [vmem:[%s504 + $0x1b0] sm:$0xff]
          %v560 = vld [vmem:[%s504 + $0x1b8] sm:$0xff]
          %v561 = vld [vmem:[%s504 + $0x1c0] sm:$0xff]
          %v562 = vld [vmem:[%s504 + $0x1c8] sm:$0xff]
          %v563 = vld [vmem:[%s504 + $0x1d0] sm:$0xff]
          %v564 = vld [vmem:[%s504 + $0x1d8] sm:$0xff]
          %v565 = vld [vmem:[%s504 + $0x1e0] sm:$0xff]
          %v566 = vld [vmem:[%s504 + $0x1e8] sm:$0xff]
          %v567 = vld [vmem:[%s504 + $0x1f0] sm:$0xff]
          %v568 = vld [vmem:[%s504 + $0x1f8] sm:$0xff]
          %v569 = vld [vmem:[%s504 + $0x200] sm:$0xff]
          %v570 = vld [vmem:[%s504 + $0x208] sm:$0xff]
          %v571 = vld [vmem:[%s504 + $0x210] sm:$0xff]
          %v572 = vld [vmem:[%s504 + $0x218] sm:$0xff]
          %v573 = vld [vmem:[%s504 + $0x220] sm:$0xff]
          %v574 = vld [vmem:[%s504 + $0x228] sm:$0xff]
          %v575 = vld [vmem:[%s504 + $0x230] sm:$0xff]
          %v576 = vld [vmem:[%s504 + $0x238] sm:$0xff]
          %v577 = vld [vmem:[%s504 + $0x240] sm:$0xff]
          %v578 = vld [vmem:[%s504 + $0x248] sm:$0xff]
          %v579 = vld [vmem:[%s504 + $0x250] sm:$0xff]
          %v580 = vld [vmem:[%s504 + $0x258] sm:$0xff]
          %v581 = vld [vmem:[%s504 + $0x260] sm:$0xff]
          %v582 = vld [vmem:[%s504 + $0x268] sm:$0xff]
          %v583 = vld [vmem:[%s504 + $0x270] sm:$0xff]
          %v584 = vld [vmem:[%s504 + $0x278] sm:$0xff]
          %v585 = vld [vmem:[%s504 + $0x280] sm:$0xff]
          %v586 = vld [vmem:[%s504 + $0x288] sm:$0xff]
          %v587 = vld [vmem:[%s504 + $0x290] sm:$0xff]
          %v588 = vld [vmem:[%s504 + $0x298] sm:$0xff]
          %v589 = vld [vmem:[%s504 + $0x2a0] sm:$0xff]
          %v590 = vld [vmem:[%s504 + $0x2a8] sm:$0xff]
          %v591 = vld [vmem:[%s504 + $0x2b0] sm:$0xff]
          %v592 = vld [vmem:[%s504 + $0x2b8] sm:$0xff]
          %v593 = vld [vmem:[%s504 + $0x2c0] sm:$0xff]
          %v594 = vld [vmem:[%s504 + $0x2c8] sm:$0xff]
          %v595 = vld [vmem:[%s504 + $0x2d0] sm:$0xff]
          %v596 = vld [vmem:[%s504 + $0x2d8] sm:$0xff]
          %v597 = vld [vmem:[%s504 + $0x2e0] sm:$0xff]
          %v598 = vld [vmem:[%s504 + $0x2e8] sm:$0xff]
          %v599 = vld [vmem:[%s504 + $0x2f0] sm:$0xff]
          %v600 = vld [vmem:[%s504 + $0x2f8] sm:$0xff]
          %v601 = vld [vmem:[%s329] sm:$0x7]
          %v603 = vlaneseq
          %v604 = vshrl.u32 %v603, 7
          %v605 = vsub.s32 0, %v604
          %v606 = vrot.slane %v601, %v605
          %v607 = vlaneseq
          %v608 = vshrl.u32 %v607, 7
          %v609 = vsub.s32 1, %v608
          %v610 = vrot.slane %v601, %v609
          %v611 = vlaneseq
          %v612 = vshrl.u32 %v611, 7
          %v613 = vsub.s32 2, %v612
          %v614 = vrot.slane %v601, %v613
          %618 = vmatprep.subr.mxu0 %v409
          %619 = vmatpush1.msra.mxu0 %v408
          %620 = vmatprep.subr.mxu0 %v412
          %621 = vmatpush1.msra.mxu0 %v411
          %622 = vmatprep.subr.mxu0 %v415
          %623 = vmatpush1.msra.mxu0 %v414
          %624 = vmatprep.subr.mxu0 %v418
          %625 = vmatpush1.msra.mxu0 %v417
          %626 = vmatprep.subr.mxu0 %v421
          %627 = vmatpush1.msra.mxu0 %v420
          %628 = vmatprep.subr.mxu0 %v424
          %629 = vmatpush1.msra.mxu0 %v423
          %630 = vmatprep.subr.mxu0 %v427
          %631 = vmatpush1.msra.mxu0 %v426
          %632 = vmatprep.subr.mxu0 %v430
          %633 = vmatpush1.msra.mxu0 %v429
          %634 = vmatprep.subr.mxu0 %v433
          %635 = vmatpush1.msra.mxu0 %v432
          %636 = vmatprep.subr.mxu0 %v436
          %637 = vmatpush1.msra.mxu0 %v435
          %638 = vmatprep.subr.mxu0 %v439
          %639 = vmatpush1.msra.mxu0 %v438
          %640 = vmatprep.subr.mxu0 %v442
          %641 = vmatpush1.msra.mxu0 %v441
          %642 = vmatprep.subr.mxu0 %v445
          %643 = vmatpush1.msra.mxu0 %v444
          %644 = vmatprep.subr.mxu0 %v448
          %645 = vmatpush1.msra.mxu0 %v447
          %646 = vmatprep.subr.mxu0 %v451
          %647 = vmatpush1.msra.mxu0 %v450
          %648 = vmatprep.subr.mxu0 %v454
          %649 = vmatpush1.msra.mxu0 %v453
          %650 = vmatprep.subr.mxu0 %v457
          %651 = vmatpush1.msra.mxu0 %v456
          %652 = vmatprep.subr.mxu0 %v460
          %653 = vmatpush1.msra.mxu0 %v459
          %654 = vmatprep.subr.mxu0 %v463
          %655 = vmatpush1.msra.mxu0 %v462
          %656 = vmatprep.subr.mxu0 %v466
          %657 = vmatpush1.msra.mxu0 %v465
          %658 = vmatprep.subr.mxu0 %v469
          %659 = vmatpush1.msra.mxu0 %v468
          %660 = vmatprep.subr.mxu0 %v472
          %661 = vmatpush1.msra.mxu0 %v471
          %662 = vmatprep.subr.mxu0 %v475
          %663 = vmatpush1.msra.mxu0 %v474
          %664 = vmatprep.subr.mxu0 %v478
          %665 = vmatpush1.msra.mxu0 %v477
          %666 = vmatprep.subr.mxu0 %v481
          %667 = vmatpush1.msra.mxu0 %v480
          %668 = vmatprep.subr.mxu0 %v484
          %669 = vmatpush1.msra.mxu0 %v483
          %670 = vmatprep.subr.mxu0 %v487
          %671 = vmatpush1.msra.mxu0 %v486
          %672 = vmatprep.subr.mxu0 %v490
          %673 = vmatpush1.msra.mxu0 %v489
          %674 = vmatprep.subr.mxu0 %v493
          %675 = vmatpush1.msra.mxu0 %v492
          %676 = vmatprep.subr.mxu0 %v496
          %677 = vmatpush1.msra.mxu0 %v495
          %678 = vmatprep.subr.mxu0 %v499
          %679 = vmatpush1.msra.mxu0 %v498
          %680 = vmatprep.subr.mxu0 %v502
          %681 = vmatpush1.msra.mxu0 %v501
          %682 = vmatprep.mubr.f32.mxu0 %v393
          %683 = vmatmul.mubr.f32.gmra.mrb[0].mxu0 %v392
          %v684 = vpop.f32.mrb[0].mxu0
          %v685 = vadd.f32 %v606, %v684
          %v686 = vpop.f32.mrb[0].mxu0
          %v687 = vadd.f32 %v610, %v686
          %688 = vmatprep.mubr.f32.mxu0 %v395
          %689 = vmatmul.mubr.f32.gmra.mrb[0].mxu0 %v394
          %v690 = vpop.f32.mrb[0].mxu0
          %v691 = vadd.f32 %v606, %v690
          %v692 = vpop.f32.mrb[0].mxu0
          %v693 = vadd.f32 %v610, %v692
          %694 = vmatprep.mubr.f32.mxu0 %v397
          %695 = vmatmul.mubr.f32.gmra.mrb[0].mxu0 %v396
          %v696 = vpop.f32.mrb[0].mxu0
          %v697 = vadd.f32 %v606, %v696
          %v698 = vpop.f32.mrb[0].mxu0
          %v699 = vadd.f32 %v610, %v698
          %700 = vmatprep.mubr.f32.mxu0 %v399
          %701 = vmatmul.mubr.f32.gmra.mrb[0].mxu0 %v398
          %v702 = vpop.f32.mrb[0].mxu0
          %v703 = vadd.f32 %v606, %v702
          %v704 = vpop.f32.mrb[0].mxu0
          %v705 = vadd.f32 %v610, %v704
          %706 = vmatprep.mubr.f32.mxu0 %v401
          %707 = vmatmul.mubr.f32.gmra.mrb[0].mxu0 %v400
          %v708 = vpop.f32.mrb[0].mxu0
          %v709 = vadd.f32 %v606, %v708
          %v710 = vpop.f32.mrb[0].mxu0
          %v711 = vadd.f32 %v610, %v710
          %712 = vmatprep.mubr.f32.mxu0 %v403
          %713 = vmatmul.mubr.f32.gmra.mrb[0].mxu0 %v402
          %v714 = vpop.f32.mrb[0].mxu0
          %v715 = vadd.f32 %v606, %v714
          %v716 = vpop.f32.mrb[0].mxu0
          %v717 = vadd.f32 %v610, %v716
          %718 = vmatprep.mubr.f32.mxu0 %v405
          %719 = vmatmul.mubr.f32.gmra.mrb[0].mxu0 %v404
          %v720 = vpop.f32.mrb[0].mxu0
          %v721 = vadd.f32 %v606, %v720
          %v722 = vpop.f32.mrb[0].mxu0
          %v723 = vadd.f32 %v610, %v722
          %724 = vmatprep.mubr.f32.mxu0 %v407
          %725 = vmatmul.mubr.f32.gmra.mrb[0].mxu0 %v406
          %v726 = vpop.f32.mrb[0].mxu0
          %v727 = vadd.f32 %v606, %v726
          %v728 = vpop.f32.mrb[0].mxu0
          %v729 = vadd.f32 %v610, %v728
          %730 = vdwg.mxu0
          %731 = vmatprep.subr.mxu0 0.0
          %732 = vmatpush1.msra.mxu0 %v410
          %733 = vmatprep.subr.mxu0 0.0
          %734 = vmatpush1.msra.mxu0 %v413
          %735 = vmatprep.subr.mxu0 0.0
          %736 = vmatpush1.msra.mxu0 %v416
          %737 = vmatprep.subr.mxu0 0.0
          %738 = vmatpush1.msra.mxu0 %v419
          %739 = vmatprep.subr.mxu0 0.0
          %740 = vmatpush1.msra.mxu0 %v422
          %741 = vmatprep.subr.mxu0 0.0
          %742 = vmatpush1.msra.mxu0 %v425
          %743 = vmatprep.subr.mxu0 0.0
          %744 = vmatpush1.msra.mxu0 %v428
          %745 = vmatprep.subr.mxu0 0.0
          %746 = vmatpush1.msra.mxu0 %v431
          %747 = vmatprep.subr.mxu0 0.0
          %748 = vmatpush1.msra.mxu0 %v434
          %749 = vmatprep.subr.mxu0 0.0
          %750 = vmatpush1.msra.mxu0 %v437
          %751 = vmatprep.subr.mxu0 0.0
          %752 = vmatpush1.msra.mxu0 %v440
          %753 = vmatprep.subr.mxu0 0.0
          %754 = vmatpush1.msra.mxu0 %v443
          %755 = vmatprep.subr.mxu0 0.0
          %756 = vmatpush1.msra.mxu0 %v446
          %757 = vmatprep.subr.mxu0 0.0
          %758 = vmatpush1.msra.mxu0 %v449
          %759 = vmatprep.subr.mxu0 0.0
          %760 = vmatpush1.msra.mxu0 %v452
          %761 = vmatprep.subr.mxu0 0.0
          %762 = vmatpush1.msra.mxu0 %v455
          %763 = vmatprep.subr.mxu0 0.0
          %764 = vmatpush1.msra.mxu0 %v458
          %765 = vmatprep.subr.mxu0 0.0
          %766 = vmatpush1.msra.mxu0 %v461
          %767 = vmatprep.subr.mxu0 0.0
          %768 = vmatpush1.msra.mxu0 %v464
          %769 = vmatprep.subr.mxu0 0.0
          %770 = vmatpush1.msra.mxu0 %v467
          %771 = vmatprep.subr.mxu0 0.0
          %772 = vmatpush1.msra.mxu0 %v470
          %773 = vmatprep.subr.mxu0 0.0
          %774 = vmatpush1.msra.mxu0 %v473
          %775 = vmatprep.subr.mxu0 0.0
          %776 = vmatpush1.msra.mxu0 %v476
          %777 = vmatprep.subr.mxu0 0.0
          %778 = vmatpush1.msra.mxu0 %v479
          %779 = vmatprep.subr.mxu0 0.0
          %780 = vmatpush1.msra.mxu0 %v482
          %781 = vmatprep.subr.mxu0 0.0
          %782 = vmatpush1.msra.mxu0 %v485
          %783 = vmatprep.subr.mxu0 0.0
          %784 = vmatpush1.msra.mxu0 %v488
          %785 = vmatprep.subr.mxu0 0.0
          %786 = vmatpush1.msra.mxu0 %v491
          %787 = vmatprep.subr.mxu0 0.0
          %788 = vmatpush1.msra.mxu0 %v494
          %789 = vmatprep.subr.mxu0 0.0
          %790 = vmatpush1.msra.mxu0 %v497
          %791 = vmatprep.subr.mxu0 0.0
          %792 = vmatpush1.msra.mxu0 %v500
          %793 = vmatprep.subr.mxu0 0.0
          %794 = vmatpush1.msra.mxu0 %v503
          %795 = vmatprep.mubr.f32.mxu0 %v393
          %796 = vmatmul.mubr.f32.gmra.mrb[0].mxu0 %v392
          %v797 = vpop.f32.mrb[0].mxu0
          %v798 = vadd.f32 %v614, %v797
          %v799 = vpop.f32.mrb[0].mxu0
          %800 = vmatprep.mubr.f32.mxu0 %v395
          %801 = vmatmul.mubr.f32.gmra.mrb[0].mxu0 %v394
          %v802 = vpop.f32.mrb[0].mxu0
          %v803 = vadd.f32 %v614, %v802
          %v804 = vpop.f32.mrb[0].mxu0
          %805 = vmatprep.mubr.f32.mxu0 %v397
          %806 = vmatmul.mubr.f32.gmra.mrb[0].mxu0 %v396
          %v807 = vpop.f32.mrb[0].mxu0
          %v808 = vadd.f32 %v614, %v807
          %v809 = vpop.f32.mrb[0].mxu0
          %810 = vmatprep.mubr.f32.mxu0 %v399
          %811 = vmatmul.mubr.f32.gmra.mrb[0].mxu0 %v398
          %v812 = vpop.f32.mrb[0].mxu0
          %v813 = vadd.f32 %v614, %v812
          %v814 = vpop.f32.mrb[0].mxu0
          %815 = vmatprep.mubr.f32.mxu0 %v401
          %816 = vmatmul.mubr.f32.gmra.mrb[0].mxu0 %v400
          %v817 = vpop.f32.mrb[0].mxu0
          %v818 = vadd.f32 %v614, %v817
          %v819 = vpop.f32.mrb[0].mxu0
          %820 = vmatprep.mubr.f32.mxu0 %v403
          %821 = vmatmul.mubr.f32.gmra.mrb[0].mxu0 %v402
          %v822 = vpop.f32.mrb[0].mxu0
          %v823 = vadd.f32 %v614, %v822
          %v824 = vpop.f32.mrb[0].mxu0
          %825 = vmatprep.mubr.f32.mxu0 %v405
          %826 = vmatmul.mubr.f32.gmra.mrb[0].mxu0 %v404
          %v827 = vpop.f32.mrb[0].mxu0
          %v828 = vadd.f32 %v614, %v827
          %v829 = vpop.f32.mrb[0].mxu0
          %830 = vmatprep.mubr.f32.mxu0 %v407
          %831 = vmatmul.mubr.f32.gmra.mrb[0].mxu0 %v406
          %v832 = vpop.f32.mrb[0].mxu0
          %v833 = vadd.f32 %v614, %v832
          %v834 = vpop.f32.mrb[0].mxu0
          %835 = vdwg.mxu0
          %836 = vst [vmem:[#allocation3] sm:$0xff] %v685
          %837 = vst [vmem:[#allocation3 + $0x8] sm:$0xff] %v687
          %838 = vst [vmem:[#allocation3 + $0x10] sm:$0xff] %v798
          %839 = vst [vmem:[#allocation3 + $0x18] sm:$0xff] %v691
          %840 = vst [vmem:[#allocation3 + $0x20] sm:$0xff] %v693
          %841 = vst [vmem:[#allocation3 + $0x28] sm:$0xff] %v803
          %842 = vst [vmem:[#allocation3 + $0x30] sm:$0xff] %v697
          %843 = vst [vmem:[#allocation3 + $0x38] sm:$0xff] %v699
          %844 = vst [vmem:[#allocation3 + $0x40] sm:$0xff] %v808
          %845 = vst [vmem:[#allocation3 + $0x48] sm:$0xff] %v703
          %846 = vst [vmem:[#allocation3 + $0x50] sm:$0xff] %v705
          %847 = vst [vmem:[#allocation3 + $0x58] sm:$0xff] %v813
          %848 = vst [vmem:[#allocation3 + $0x60] sm:$0xff] %v709
          %849 = vst [vmem:[#allocation3 + $0x68] sm:$0xff] %v711
          %850 = vst [vmem:[#allocation3 + $0x70] sm:$0xff] %v818
          %851 = vst [vmem:[#allocation3 + $0x78] sm:$0xff] %v715
          %852 = vst [vmem:[#allocation3 + $0x80] sm:$0xff] %v717
          %853 = vst [vmem:[#allocation3 + $0x88] sm:$0xff] %v823
          %854 = vst [vmem:[#allocation3 + $0x90] sm:$0xff] %v721
          %855 = vst [vmem:[#allocation3 + $0x98] sm:$0xff] %v723
          %856 = vst [vmem:[#allocation3 + $0xa0] sm:$0xff] %v828
          %857 = vst [vmem:[#allocation3 + $0xa8] sm:$0xff] %v727
          %858 = vst [vmem:[#allocation3 + $0xb0] sm:$0xff] %v729
          %859 = vst [vmem:[#allocation3 + $0xb8] sm:$0xff] %v833
          %s860 = scalar_lea.vmem %s329, 3 [#allocation9]
          %v861 = vld [vmem:[%s860] sm:$0x7]
          %v863 = vlaneseq
          %v864 = vshrl.u32 %v863, 7
          %v865 = vsub.s32 0, %v864
          %v866 = vrot.slane %v861, %v865
          %v867 = vlaneseq
          %v868 = vshrl.u32 %v867, 7
          %v869 = vsub.s32 1, %v868
          %v870 = vrot.slane %v861, %v869
          %v871 = vlaneseq
          %v872 = vshrl.u32 %v871, 7
          %v873 = vsub.s32 2, %v872
          %v874 = vrot.slane %v861, %v873
          %878 = vmatprep.subr.mxu0 %v506
          %879 = vmatpush1.msra.mxu0 %v505
          %880 = vmatprep.subr.mxu0 %v509
          %881 = vmatpush1.msra.mxu0 %v508
          %882 = vmatprep.subr.mxu0 %v512
          %883 = vmatpush1.msra.mxu0 %v511
          %884 = vmatprep.subr.mxu0 %v515
          %885 = vmatpush1.msra.mxu0 %v514
          %886 = vmatprep.subr.mxu0 %v518
          %887 = vmatpush1.msra.mxu0 %v517
          %888 = vmatprep.subr.mxu0 %v521
          %889 = vmatpush1.msra.mxu0 %v520
          %890 = vmatprep.subr.mxu0 %v524
          %891 = vmatpush1.msra.mxu0 %v523
          %892 = vmatprep.subr.mxu0 %v527
          %893 = vmatpush1.msra.mxu0 %v526
          %894 = vmatprep.subr.mxu0 %v530
          %895 = vmatpush1.msra.mxu0 %v529
          %896 = vmatprep.subr.mxu0 %v533
          %897 = vmatpush1.msra.mxu0 %v532
          %898 = vmatprep.subr.mxu0 %v536
          %899 = vmatpush1.msra.mxu0 %v535
          %900 = vmatprep.subr.mxu0 %v539
          %901 = vmatpush1.msra.mxu0 %v538
          %902 = vmatprep.subr.mxu0 %v542
          %903 = vmatpush1.msra.mxu0 %v541
          %904 = vmatprep.subr.mxu0 %v545
          %905 = vmatpush1.msra.mxu0 %v544
          %906 = vmatprep.subr.mxu0 %v548
          %907 = vmatpush1.msra.mxu0 %v547
          %908 = vmatprep.subr.mxu0 %v551
          %909 = vmatpush1.msra.mxu0 %v550
          %910 = vmatprep.subr.mxu0 %v554
          %911 = vmatpush1.msra.mxu0 %v553
          %912 = vmatprep.subr.mxu0 %v557
          %913 = vmatpush1.msra.mxu0 %v556
          %914 = vmatprep.subr.mxu0 %v560
          %915 = vmatpush1.msra.mxu0 %v559
          %916 = vmatprep.subr.mxu0 %v563
          %917 = vmatpush1.msra.mxu0 %v562
          %918 = vmatprep.subr.mxu0 %v566
          %919 = vmatpush1.msra.mxu0 %v565
          %920 = vmatprep.subr.mxu0 %v569
          %921 = vmatpush1.msra.mxu0 %v568
          %922 = vmatprep.subr.mxu0 %v572
          %923 = vmatpush1.msra.mxu0 %v571
          %924 = vmatprep.subr.mxu0 %v575
          %925 = vmatpush1.msra.mxu0 %v574
          %926 = vmatprep.subr.mxu0 %v578
          %927 = vmatpush1.msra.mxu0 %v577
          %928 = vmatprep.subr.mxu0 %v581
          %929 = vmatpush1.msra.mxu0 %v580
          %930 = vmatprep.subr.mxu0 %v584
          %931 = vmatpush1.msra.mxu0 %v583
          %932 = vmatprep.subr.mxu0 %v587
          %933 = vmatpush1.msra.mxu0 %v586
          %934 = vmatprep.subr.mxu0 %v590
          %935 = vmatpush1.msra.mxu0 %v589
          %936 = vmatprep.subr.mxu0 %v593
          %937 = vmatpush1.msra.mxu0 %v592
          %938 = vmatprep.subr.mxu0 %v596
          %939 = vmatpush1.msra.mxu0 %v595
          %940 = vmatprep.subr.mxu0 %v599
          %941 = vmatpush1.msra.mxu0 %v598
          %942 = vmatprep.mubr.f32.mxu0 %v393
          %943 = vmatmul.mubr.f32.gmra.mrb[0].mxu0 %v392
          %v944 = vpop.f32.mrb[0].mxu0
          %v945 = vadd.f32 %v866, %v944
          %v946 = vpop.f32.mrb[0].mxu0
          %v947 = vadd.f32 %v870, %v946
          %948 = vmatprep.mubr.f32.mxu0 %v395
          %949 = vmatmul.mubr.f32.gmra.mrb[0].mxu0 %v394
          %v950 = vpop.f32.mrb[0].mxu0
          %v951 = vadd.f32 %v866, %v950
          %v952 = vpop.f32.mrb[0].mxu0
          %v953 = vadd.f32 %v870, %v952
          %954 = vmatprep.mubr.f32.mxu0 %v397
          %955 = vmatmul.mubr.f32.gmra.mrb[0].mxu0 %v396
          %v956 = vpop.f32.mrb[0].mxu0
          %v957 = vadd.f32 %v866, %v956
          %v958 = vpop.f32.mrb[0].mxu0
          %v959 = vadd.f32 %v870, %v958
          %960 = vmatprep.mubr.f32.mxu0 %v399
          %961 = vmatmul.mubr.f32.gmra.mrb[0].mxu0 %v398
          %v962 = vpop.f32.mrb[0].mxu0
          %v963 = vadd.f32 %v866, %v962
          %v964 = vpop.f32.mrb[0].mxu0
          %v965 = vadd.f32 %v870, %v964
          %966 = vmatprep.mubr.f32.mxu0 %v401
          %967 = vmatmul.mubr.f32.gmra.mrb[0].mxu0 %v400
          %v968 = vpop.f32.mrb[0].mxu0
          %v969 = vadd.f32 %v866, %v968
          %v970 = vpop.f32.mrb[0].mxu0
          %v971 = vadd.f32 %v870, %v970
          %972 = vmatprep.mubr.f32.mxu0 %v403
          %973 = vmatmul.mubr.f32.gmra.mrb[0].mxu0 %v402
          %v974 = vpop.f32.mrb[0].mxu0
          %v975 = vadd.f32 %v866, %v974
          %v976 = vpop.f32.mrb[0].mxu0
          %v977 = vadd.f32 %v870, %v976
          %978 = vmatprep.mubr.f32.mxu0 %v405
          %979 = vmatmul.mubr.f32.gmra.mrb[0].mxu0 %v404
          %v980 = vpop.f32.mrb[0].mxu0
          %v981 = vadd.f32 %v866, %v980
          %v982 = vpop.f32.mrb[0].mxu0
          %v983 = vadd.f32 %v870, %v982
          %984 = vmatprep.mubr.f32.mxu0 %v407
          %985 = vmatmul.mubr.f32.gmra.mrb[0].mxu0 %v406
          %v986 = vpop.f32.mrb[0].mxu0
          %v987 = vadd.f32 %v866, %v986
          %v988 = vpop.f32.mrb[0].mxu0
          %v989 = vadd.f32 %v870, %v988
          %990 = vdwg.mxu0
          %991 = vmatprep.subr.mxu0 0.0
          %992 = vmatpush1.msra.mxu0 %v507
          %993 = vmatprep.subr.mxu0 0.0
          %994 = vmatpush1.msra.mxu0 %v510
          %995 = vmatprep.subr.mxu0 0.0
          %996 = vmatpush1.msra.mxu0 %v513
          %997 = vmatprep.subr.mxu0 0.0
          %998 = vmatpush1.msra.mxu0 %v516
          %999 = vmatprep.subr.mxu0 0.0
          %1000 = vmatpush1.msra.mxu0 %v519
          %1001 = vmatprep.subr.mxu0 0.0
          %1002 = vmatpush1.msra.mxu0 %v522
          %1003 = vmatprep.subr.mxu0 0.0
          %1004 = vmatpush1.msra.mxu0 %v525
          %1005 = vmatprep.subr.mxu0 0.0
          %1006 = vmatpush1.msra.mxu0 %v528
          %1007 = vmatprep.subr.mxu0 0.0
          %1008 = vmatpush1.msra.mxu0 %v531
          %1009 = vmatprep.subr.mxu0 0.0
          %1010 = vmatpush1.msra.mxu0 %v534
          %1011 = vmatprep.subr.mxu0 0.0
          %1012 = vmatpush1.msra.mxu0 %v537
          %1013 = vmatprep.subr.mxu0 0.0
          %1014 = vmatpush1.msra.mxu0 %v540
          %1015 = vmatprep.subr.mxu0 0.0
          %1016 = vmatpush1.msra.mxu0 %v543
          %1017 = vmatprep.subr.mxu0 0.0
          %1018 = vmatpush1.msra.mxu0 %v546
          %1019 = vmatprep.subr.mxu0 0.0
          %1020 = vmatpush1.msra.mxu0 %v549
          %1021 = vmatprep.subr.mxu0 0.0
          %1022 = vmatpush1.msra.mxu0 %v552
          %1023 = vmatprep.subr.mxu0 0.0
          %1024 = vmatpush1.msra.mxu0 %v555
          %1025 = vmatprep.subr.mxu0 0.0
          %1026 = vmatpush1.msra.mxu0 %v558
          %1027 = vmatprep.subr.mxu0 0.0
          %1028 = vmatpush1.msra.mxu0 %v561
          %1029 = vmatprep.subr.mxu0 0.0
          %1030 = vmatpush1.msra.mxu0 %v564
          %1031 = vmatprep.subr.mxu0 0.0
          %1032 = vmatpush1.msra.mxu0 %v567
          %1033 = vmatprep.subr.mxu0 0.0
          %1034 = vmatpush1.msra.mxu0 %v570
          %1035 = vmatprep.subr.mxu0 0.0
          %1036 = vmatpush1.msra.mxu0 %v573
          %1037 = vmatprep.subr.mxu0 0.0
          %1038 = vmatpush1.msra.mxu0 %v576
          %1039 = vmatprep.subr.mxu0 0.0
          %1040 = vmatpush1.msra.mxu0 %v579
          %1041 = vmatprep.subr.mxu0 0.0
          %1042 = vmatpush1.msra.mxu0 %v582
          %1043 = vmatprep.subr.mxu0 0.0
          %1044 = vmatpush1.msra.mxu0 %v585
          %1045 = vmatprep.subr.mxu0 0.0
          %1046 = vmatpush1.msra.mxu0 %v588
          %1047 = vmatprep.subr.mxu0 0.0
          %1048 = vmatpush1.msra.mxu0 %v591
          %1049 = vmatprep.subr.mxu0 0.0
          %1050 = vmatpush1.msra.mxu0 %v594
          %1051 = vmatprep.subr.mxu0 0.0
          %1052 = vmatpush1.msra.mxu0 %v597
          %1053 = vmatprep.subr.mxu0 0.0
          %1054 = vmatpush1.msra.mxu0 %v600
          %1055 = vmatprep.mubr.f32.mxu0 %v393
          %1056 = vmatmul.mubr.f32.gmra.mrb[0].mxu0 %v392
          %v1057 = vpop.f32.mrb[0].mxu0
          %v1058 = vadd.f32 %v874, %v1057
          %v1059 = vpop.f32.mrb[0].mxu0
          %1060 = vmatprep.mubr.f32.mxu0 %v395
          %1061 = vmatmul.mubr.f32.gmra.mrb[0].mxu0 %v394
          %v1062 = vpop.f32.mrb[0].mxu0
          %v1063 = vadd.f32 %v874, %v1062
          %v1064 = vpop.f32.mrb[0].mxu0
          %1065 = vmatprep.mubr.f32.mxu0 %v397
          %1066 = vmatmul.mubr.f32.gmra.mrb[0].mxu0 %v396
          %v1067 = vpop.f32.mrb[0].mxu0
          %v1068 = vadd.f32 %v874, %v1067
          %v1069 = vpop.f32.mrb[0].mxu0
          %1070 = vmatprep.mubr.f32.mxu0 %v399
          %1071 = vmatmul.mubr.f32.gmra.mrb[0].mxu0 %v398
          %v1072 = vpop.f32.mrb[0].mxu0
          %v1073 = vadd.f32 %v874, %v1072
          %v1074 = vpop.f32.mrb[0].mxu0
          %1075 = vmatprep.mubr.f32.mxu0 %v401
          %1076 = vmatmul.mubr.f32.gmra.mrb[0].mxu0 %v400
          %v1077 = vpop.f32.mrb[0].mxu0
          %v1078 = vadd.f32 %v874, %v1077
          %v1079 = vpop.f32.mrb[0].mxu0
          %1080 = vmatprep.mubr.f32.mxu0 %v403
          %1081 = vmatmul.mubr.f32.gmra.mrb[0].mxu0 %v402
          %v1082 = vpop.f32.mrb[0].mxu0
          %v1083 = vadd.f32 %v874, %v1082
          %v1084 = vpop.f32.mrb[0].mxu0
          %1085 = vmatprep.mubr.f32.mxu0 %v405
          %1086 = vmatmul.mubr.f32.gmra.mrb[0].mxu0 %v404
          %v1087 = vpop.f32.mrb[0].mxu0
          %v1088 = vadd.f32 %v874, %v1087
          %v1089 = vpop.f32.mrb[0].mxu0
          %1090 = vmatprep.mubr.f32.mxu0 %v407
          %1091 = vmatmul.mubr.f32.gmra.mrb[0].mxu0 %v406
          %v1092 = vpop.f32.mrb[0].mxu0
          %v1093 = vadd.f32 %v874, %v1092
          %v1094 = vpop.f32.mrb[0].mxu0
          %1095 = vdwg.mxu0
          %1096 = vst [vmem:[#allocation4] sm:$0xff] %v945
          %1097 = vst [vmem:[#allocation4 + $0x8] sm:$0xff] %v947
          %1098 = vst [vmem:[#allocation4 + $0x10] sm:$0xff] %v1058
          %1099 = vst [vmem:[#allocation4 + $0x18] sm:$0xff] %v951
          %1100 = vst [vmem:[#allocation4 + $0x20] sm:$0xff] %v953
          %1101 = vst [vmem:[#allocation4 + $0x28] sm:$0xff] %v1063
          %1102 = vst [vmem:[#allocation4 + $0x30] sm:$0xff] %v957
          %1103 = vst [vmem:[#allocation4 + $0x38] sm:$0xff] %v959
          %1104 = vst [vmem:[#allocation4 + $0x40] sm:$0xff] %v1068
          %1105 = vst [vmem:[#allocation4 + $0x48] sm:$0xff] %v963
          %1106 = vst [vmem:[#allocation4 + $0x50] sm:$0xff] %v965
          %1107 = vst [vmem:[#allocation4 + $0x58] sm:$0xff] %v1073
          %1108 = vst [vmem:[#allocation4 + $0x60] sm:$0xff] %v969
          %1109 = vst [vmem:[#allocation4 + $0x68] sm:$0xff] %v971
          %1110 = vst [vmem:[#allocation4 + $0x70] sm:$0xff] %v1078
          %1111 = vst [vmem:[#allocation4 + $0x78] sm:$0xff] %v975
          %1112 = vst [vmem:[#allocation4 + $0x80] sm:$0xff] %v977
          %1113 = vst [vmem:[#allocation4 + $0x88] sm:$0xff] %v1083
          %1114 = vst [vmem:[#allocation4 + $0x90] sm:$0xff] %v981
          %1115 = vst [vmem:[#allocation4 + $0x98] sm:$0xff] %v983
          %1116 = vst [vmem:[#allocation4 + $0xa0] sm:$0xff] %v1088
          %1117 = vst [vmem:[#allocation4 + $0xa8] sm:$0xff] %v987
          %1118 = vst [vmem:[#allocation4 + $0xb0] sm:$0xff] %v989
          %1119 = vst [vmem:[#allocation4 + $0xb8] sm:$0xff] %v1093
        $region60: #{dialogue_net_forward.1} parent=39 // pred_fallthru
          _
        %p1120 = scmp.gt.s32.totalorder %s27, 0
        // Predicated region
        $region61: #{dialogue_net_forward.1} parent=39 // pred_check
          %p1121 = pneg %p1120
        $region62: #{dialogue_net_forward.1} parent=39 // pred_check_branch
          %1123 = sbr.rel (%p1121) target = $region64
        $region63: #{dialogue_net_forward.1} parent=39 // pred_region
          %v1124 = vld [vmem:[#allocation2] sm:$0xff]
          %v1125 = vld [vmem:[#allocation2 + $0x8] sm:$0xff]
          %v1126 = vld [vmem:[#allocation2 + $0x10] sm:$0xff]
          %v1127 = vld [vmem:[#allocation2 + $0x18] sm:$0xff]
          %v1128 = vld [vmem:[#allocation2 + $0x20] sm:$0xff]
          %v1129 = vld [vmem:[#allocation2 + $0x28] sm:$0xff]
          %v1130 = vld [vmem:[#allocation2 + $0x30] sm:$0xff]
          %v1131 = vld [vmem:[#allocation2 + $0x38] sm:$0xff]
          %v1132 = vld [vmem:[#allocation2 + $0x40] sm:$0xff]
          %v1133 = vld [vmem:[#allocation2 + $0x48] sm:$0xff]
          %v1134 = vld [vmem:[#allocation2 + $0x50] sm:$0xff]
          %v1135 = vld [vmem:[#allocation2 + $0x58] sm:$0xff]
          %v1136 = vld [vmem:[#allocation2 + $0x60] sm:$0xff]
          %v1137 = vld [vmem:[#allocation2 + $0x68] sm:$0xff]
          %v1138 = vld [vmem:[#allocation2 + $0x70] sm:$0xff]
          %v1139 = vld [vmem:[#allocation2 + $0x78] sm:$0xff]
          %v1140 = vld [vmem:[%s311] sm:$0xff]
          %v1141 = vld [vmem:[%s311 + $0x8] sm:$0xff]
          %v1142 = vld [vmem:[%s311 + $0x10] sm:$0xff]
          %v1143 = vld [vmem:[%s311 + $0x18] sm:$0xff]
          %v1144 = vld [vmem:[%s311 + $0x20] sm:$0xff]
          %v1145 = vld [vmem:[%s311 + $0x28] sm:$0xff]
          %v1146 = vld [vmem:[%s311 + $0x30] sm:$0xff]
          %v1147 = vld [vmem:[%s311 + $0x38] sm:$0xff]
          %v1148 = vld [vmem:[%s311 + $0x40] sm:$0xff]
          %v1149 = vld [vmem:[%s311 + $0x48] sm:$0xff]
          %v1150 = vld [vmem:[%s311 + $0x50] sm:$0xff]
          %v1151 = vld [vmem:[%s311 + $0x58] sm:$0xff]
          %v1152 = vld [vmem:[%s311 + $0x60] sm:$0xff]
          %v1153 = vld [vmem:[%s311 + $0x68] sm:$0xff]
          %v1154 = vld [vmem:[%s311 + $0x70] sm:$0xff]
          %v1155 = vld [vmem:[%s311 + $0x78] sm:$0xff]
          %v1156 = vld [vmem:[%s311 + $0x80] sm:$0xff]
          %v1157 = vld [vmem:[%s311 + $0x88] sm:$0xff]
          %v1158 = vld [vmem:[%s311 + $0x90] sm:$0xff]
          %v1159 = vld [vmem:[%s311 + $0x98] sm:$0xff]
          %v1160 = vld [vmem:[%s311 + $0xa0] sm:$0xff]
          %v1161 = vld [vmem:[%s311 + $0xa8] sm:$0xff]
          %v1162 = vld [vmem:[%s311 + $0xb0] sm:$0xff]
          %v1163 = vld [vmem:[%s311 + $0xb8] sm:$0xff]
          %v1164 = vld [vmem:[%s311 + $0xc0] sm:$0xff]
          %v1165 = vld [vmem:[%s311 + $0xc8] sm:$0xff]
          %v1166 = vld [vmem:[%s311 + $0xd0] sm:$0xff]
          %v1167 = vld [vmem:[%s311 + $0xd8] sm:$0xff]
          %v1168 = vld [vmem:[%s311 + $0xe0] sm:$0xff]
          %v1169 = vld [vmem:[%s311 + $0xe8] sm:$0xff]
          %v1170 = vld [vmem:[%s311 + $0xf0] sm:$0xff]
          %v1171 = vld [vmem:[%s311 + $0xf8] sm:$0xff]
          %v1172 = vld [vmem:[%s311 + $0x100] sm:$0xff]
          %v1173 = vld [vmem:[%s311 + $0x108] sm:$0xff]
          %v1174 = vld [vmem:[%s311 + $0x110] sm:$0xff]
          %v1175 = vld [vmem:[%s311 + $0x118] sm:$0xff]
          %v1176 = vld [vmem:[%s311 + $0x120] sm:$0xff]
          %v1177 = vld [vmem:[%s311 + $0x128] sm:$0xff]
          %v1178 = vld [vmem:[%s311 + $0x130] sm:$0xff]
          %v1179 = vld [vmem:[%s311 + $0x138] sm:$0xff]
          %v1180 = vld [vmem:[%s311 + $0x140] sm:$0xff]
          %v1181 = vld [vmem:[%s311 + $0x148] sm:$0xff]
          %v1182 = vld [vmem:[%s311 + $0x150] sm:$0xff]
          %v1183 = vld [vmem:[%s311 + $0x158] sm:$0xff]
          %v1184 = vld [vmem:[%s311 + $0x160] sm:$0xff]
          %v1185 = vld [vmem:[%s311 + $0x168] sm:$0xff]
          %v1186 = vld [vmem:[%s311 + $0x170] sm:$0xff]
          %v1187 = vld [vmem:[%s311 + $0x178] sm:$0xff]
          %v1188 = vld [vmem:[%s311 + $0x180] sm:$0xff]
          %v1189 = vld [vmem:[%s311 + $0x188] sm:$0xff]
          %v1190 = vld [vmem:[%s311 + $0x190] sm:$0xff]
          %v1191 = vld [vmem:[%s311 + $0x198] sm:$0xff]
          %v1192 = vld [vmem:[%s311 + $0x1a0] sm:$0xff]
          %v1193 = vld [vmem:[%s311 + $0x1a8] sm:$0xff]
          %v1194 = vld [vmem:[%s311 + $0x1b0] sm:$0xff]
          %v1195 = vld [vmem:[%s311 + $0x1b8] sm:$0xff]
          %v1196 = vld [vmem:[%s311 + $0x1c0] sm:$0xff]
          %v1197 = vld [vmem:[%s311 + $0x1c8] sm:$0xff]
          %v1198 = vld [vmem:[%s311 + $0x1d0] sm:$0xff]
          %v1199 = vld [vmem:[%s311 + $0x1d8] sm:$0xff]
          %v1200 = vld [vmem:[%s311 + $0x1e0] sm:$0xff]
          %v1201 = vld [vmem:[%s311 + $0x1e8] sm:$0xff]
          %v1202 = vld [vmem:[%s311 + $0x1f0] sm:$0xff]
          %v1203 = vld [vmem:[%s311 + $0x1f8] sm:$0xff]
          %v1204 = vld [vmem:[%s311 + $0x200] sm:$0xff]
          %v1205 = vld [vmem:[%s311 + $0x208] sm:$0xff]
          %v1206 = vld [vmem:[%s311 + $0x210] sm:$0xff]
          %v1207 = vld [vmem:[%s311 + $0x218] sm:$0xff]
          %v1208 = vld [vmem:[%s311 + $0x220] sm:$0xff]
          %v1209 = vld [vmem:[%s311 + $0x228] sm:$0xff]
          %v1210 = vld [vmem:[%s311 + $0x230] sm:$0xff]
          %v1211 = vld [vmem:[%s311 + $0x238] sm:$0xff]
          %v1212 = vld [vmem:[%s311 + $0x240] sm:$0xff]
          %v1213 = vld [vmem:[%s311 + $0x248] sm:$0xff]
          %v1214 = vld [vmem:[%s311 + $0x250] sm:$0xff]
          %v1215 = vld [vmem:[%s311 + $0x258] sm:$0xff]
          %v1216 = vld [vmem:[%s311 + $0x260] sm:$0xff]
          %v1217 = vld [vmem:[%s311 + $0x268] sm:$0xff]
          %v1218 = vld [vmem:[%s311 + $0x270] sm:$0xff]
          %v1219 = vld [vmem:[%s311 + $0x278] sm:$0xff]
          %v1220 = vld [vmem:[%s311 + $0x280] sm:$0xff]
          %v1221 = vld [vmem:[%s311 + $0x288] sm:$0xff]
          %v1222 = vld [vmem:[%s311 + $0x290] sm:$0xff]
          %v1223 = vld [vmem:[%s311 + $0x298] sm:$0xff]
          %v1224 = vld [vmem:[%s311 + $0x2a0] sm:$0xff]
          %v1225 = vld [vmem:[%s311 + $0x2a8] sm:$0xff]
          %v1226 = vld [vmem:[%s311 + $0x2b0] sm:$0xff]
          %v1227 = vld [vmem:[%s311 + $0x2b8] sm:$0xff]
          %v1228 = vld [vmem:[%s311 + $0x2c0] sm:$0xff]
          %v1229 = vld [vmem:[%s311 + $0x2c8] sm:$0xff]
          %v1230 = vld [vmem:[%s311 + $0x2d0] sm:$0xff]
          %v1231 = vld [vmem:[%s311 + $0x2d8] sm:$0xff]
          %v1232 = vld [vmem:[%s311 + $0x2e0] sm:$0xff]
          %v1233 = vld [vmem:[%s311 + $0x2e8] sm:$0xff]
          %v1234 = vld [vmem:[%s311 + $0x2f0] sm:$0xff]
          %v1235 = vld [vmem:[%s311 + $0x2f8] sm:$0xff]
          %s1236 = scalar_lea.vmem %s311, 768 [#allocation5]
          %v1237 = vld [vmem:[%s1236] sm:$0xff]
          %v1238 = vld [vmem:[%s1236 + $0x8] sm:$0xff]
          %v1239 = vld [vmem:[%s1236 + $0x10] sm:$0xff]
          %v1240 = vld [vmem:[%s1236 + $0x18] sm:$0xff]
          %v1241 = vld [vmem:[%s1236 + $0x20] sm:$0xff]
          %v1242 = vld [vmem:[%s1236 + $0x28] sm:$0xff]
          %v1243 = vld [vmem:[%s1236 + $0x30] sm:$0xff]
          %v1244 = vld [vmem:[%s1236 + $0x38] sm:$0xff]
          %v1245 = vld [vmem:[%s1236 + $0x40] sm:$0xff]
          %v1246 = vld [vmem:[%s1236 + $0x48] sm:$0xff]
          %v1247 = vld [vmem:[%s1236 + $0x50] sm:$0xff]
          %v1248 = vld [vmem:[%s1236 + $0x58] sm:$0xff]
          %v1249 = vld [vmem:[%s1236 + $0x60] sm:$0xff]
          %v1250 = vld [vmem:[%s1236 + $0x68] sm:$0xff]
          %v1251 = vld [vmem:[%s1236 + $0x70] sm:$0xff]
          %v1252 = vld [vmem:[%s1236 + $0x78] sm:$0xff]
          %v1253 = vld [vmem:[%s1236 + $0x80] sm:$0xff]
          %v1254 = vld [vmem:[%s1236 + $0x88] sm:$0xff]
          %v1255 = vld [vmem:[%s1236 + $0x90] sm:$0xff]
          %v1256 = vld [vmem:[%s1236 + $0x98] sm:$0xff]
          %v1257 = vld [vmem:[%s1236 + $0xa0] sm:$0xff]
          %v1258 = vld [vmem:[%s1236 + $0xa8] sm:$0xff]
          %v1259 = vld [vmem:[%s1236 + $0xb0] sm:$0xff]
          %v1260 = vld [vmem:[%s1236 + $0xb8] sm:$0xff]
          %v1261 = vld [vmem:[%s1236 + $0xc0] sm:$0xff]
          %v1262 = vld [vmem:[%s1236 + $0xc8] sm:$0xff]
          %v1263 = vld [vmem:[%s1236 + $0xd0] sm:$0xff]
          %v1264 = vld [vmem:[%s1236 + $0xd8] sm:$0xff]
          %v1265 = vld [vmem:[%s1236 + $0xe0] sm:$0xff]
          %v1266 = vld [vmem:[%s1236 + $0xe8] sm:$0xff]
          %v1267 = vld [vmem:[%s1236 + $0xf0] sm:$0xff]
          %v1268 = vld [vmem:[%s1236 + $0xf8] sm:$0xff]
          %v1269 = vld [vmem:[%s1236 + $0x100] sm:$0xff]
          %v1270 = vld [vmem:[%s1236 + $0x108] sm:$0xff]
          %v1271 = vld [vmem:[%s1236 + $0x110] sm:$0xff]
          %v1272 = vld [vmem:[%s1236 + $0x118] sm:$0xff]
          %v1273 = vld [vmem:[%s1236 + $0x120] sm:$0xff]
          %v1274 = vld [vmem:[%s1236 + $0x128] sm:$0xff]
          %v1275 = vld [vmem:[%s1236 + $0x130] sm:$0xff]
          %v1276 = vld [vmem:[%s1236 + $0x138] sm:$0xff]
          %v1277 = vld [vmem:[%s1236 + $0x140] sm:$0xff]
          %v1278 = vld [vmem:[%s1236 + $0x148] sm:$0xff]
          %v1279 = vld [vmem:[%s1236 + $0x150] sm:$0xff]
          %v1280 = vld [vmem:[%s1236 + $0x158] sm:$0xff]
          %v1281 = vld [vmem:[%s1236 + $0x160] sm:$0xff]
          %v1282 = vld [vmem:[%s1236 + $0x168] sm:$0xff]
          %v1283 = vld [vmem:[%s1236 + $0x170] sm:$0xff]
          %v1284 = vld [vmem:[%s1236 + $0x178] sm:$0xff]
          %v1285 = vld [vmem:[%s1236 + $0x180] sm:$0xff]
          %v1286 = vld [vmem:[%s1236 + $0x188] sm:$0xff]
          %v1287 = vld [vmem:[%s1236 + $0x190] sm:$0xff]
          %v1288 = vld [vmem:[%s1236 + $0x198] sm:$0xff]
          %v1289 = vld [vmem:[%s1236 + $0x1a0] sm:$0xff]
          %v1290 = vld [vmem:[%s1236 + $0x1a8] sm:$0xff]
          %v1291 = vld [vmem:[%s1236 + $0x1b0] sm:$0xff]
          %v1292 = vld [vmem:[%s1236 + $0x1b8] sm:$0xff]
          %v1293 = vld [vmem:[%s1236 + $0x1c0] sm:$0xff]
          %v1294 = vld [vmem:[%s1236 + $0x1c8] sm:$0xff]
          %v1295 = vld [vmem:[%s1236 + $0x1d0] sm:$0xff]
          %v1296 = vld [vmem:[%s1236 + $0x1d8] sm:$0xff]
          %v1297 = vld [vmem:[%s1236 + $0x1e0] sm:$0xff]
          %v1298 = vld [vmem:[%s1236 + $0x1e8] sm:$0xff]
          %v1299 = vld [vmem:[%s1236 + $0x1f0] sm:$0xff]
          %v1300 = vld [vmem:[%s1236 + $0x1f8] sm:$0xff]
          %v1301 = vld [vmem:[%s1236 + $0x200] sm:$0xff]
          %v1302 = vld [vmem:[%s1236 + $0x208] sm:$0xff]
          %v1303 = vld [vmem:[%s1236 + $0x210] sm:$0xff]
          %v1304 = vld [vmem:[%s1236 + $0x218] sm:$0xff]
          %v1305 = vld [vmem:[%s1236 + $0x220] sm:$0xff]
          %v1306 = vld [vmem:[%s1236 + $0x228] sm:$0xff]
          %v1307 = vld [vmem:[%s1236 + $0x230] sm:$0xff]
          %v1308 = vld [vmem:[%s1236 + $0x238] sm:$0xff]
          %v1309 = vld [vmem:[%s1236 + $0x240] sm:$0xff]
          %v1310 = vld [vmem:[%s1236 + $0x248] sm:$0xff]
          %v1311 = vld [vmem:[%s1236 + $0x250] sm:$0xff]
          %v1312 = vld [vmem:[%s1236 + $0x258] sm:$0xff]
          %v1313 = vld [vmem:[%s1236 + $0x260] sm:$0xff]
          %v1314 = vld [vmem:[%s1236 + $0x268] sm:$0xff]
          %v1315 = vld [vmem:[%s1236 + $0x270] sm:$0xff]
          %v1316 = vld [vmem:[%s1236 + $0x278] sm:$0xff]
          %v1317 = vld [vmem:[%s1236 + $0x280] sm:$0xff]
          %v1318 = vld [vmem:[%s1236 + $0x288] sm:$0xff]
          %v1319 = vld [vmem:[%s1236 + $0x290] sm:$0xff]
          %v1320 = vld [vmem:[%s1236 + $0x298] sm:$0xff]
          %v1321 = vld [vmem:[%s1236 + $0x2a0] sm:$0xff]
          %v1322 = vld [vmem:[%s1236 + $0x2a8] sm:$0xff]
          %v1323 = vld [vmem:[%s1236 + $0x2b0] sm:$0xff]
          %v1324 = vld [vmem:[%s1236 + $0x2b8] sm:$0xff]
          %v1325 = vld [vmem:[%s1236 + $0x2c0] sm:$0xff]
          %v1326 = vld [vmem:[%s1236 + $0x2c8] sm:$0xff]
          %v1327 = vld [vmem:[%s1236 + $0x2d0] sm:$0xff]
          %v1328 = vld [vmem:[%s1236 + $0x2d8] sm:$0xff]
          %v1329 = vld [vmem:[%s1236 + $0x2e0] sm:$0xff]
          %v1330 = vld [vmem:[%s1236 + $0x2e8] sm:$0xff]
          %v1331 = vld [vmem:[%s1236 + $0x2f0] sm:$0xff]
          %v1332 = vld [vmem:[%s1236 + $0x2f8] sm:$0xff]
          %v1333 = vld [vmem:[%s329] sm:$0x7]
          %v1335 = vlaneseq
          %v1336 = vshrl.u32 %v1335, 7
          %v1337 = vsub.s32 0, %v1336
          %v1338 = vrot.slane %v1333, %v1337
          %v1339 = vlaneseq
          %v1340 = vshrl.u32 %v1339, 7
          %v1341 = vsub.s32 1, %v1340
          %v1342 = vrot.slane %v1333, %v1341
          %v1343 = vlaneseq
          %v1344 = vshrl.u32 %v1343, 7
          %v1345 = vsub.s32 2, %v1344
          %v1346 = vrot.slane %v1333, %v1345
          %1350 = vmatprep.subr.mxu0 %v1141
          %1351 = vmatpush1.msra.mxu0 %v1140
          %1352 = vmatprep.subr.mxu0 %v1144
          %1353 = vmatpush1.msra.mxu0 %v1143
          %1354 = vmatprep.subr.mxu0 %v1147
          %1355 = vmatpush1.msra.mxu0 %v1146
          %1356 = vmatprep.subr.mxu0 %v1150
          %1357 = vmatpush1.msra.mxu0 %v1149
          %1358 = vmatprep.subr.mxu0 %v1153
          %1359 = vmatpush1.msra.mxu0 %v1152
          %1360 = vmatprep.subr.mxu0 %v1156
          %1361 = vmatpush1.msra.mxu0 %v1155
          %1362 = vmatprep.subr.mxu0 %v1159
          %1363 = vmatpush1.msra.mxu0 %v1158
          %1364 = vmatprep.subr.mxu0 %v1162
          %1365 = vmatpush1.msra.mxu0 %v1161
          %1366 = vmatprep.subr.mxu0 %v1165
          %1367 = vmatpush1.msra.mxu0 %v1164
          %1368 = vmatprep.subr.mxu0 %v1168
          %1369 = vmatpush1.msra.mxu0 %v1167
          %1370 = vmatprep.subr.mxu0 %v1171
          %1371 = vmatpush1.msra.mxu0 %v1170
          %1372 = vmatprep.subr.mxu0 %v1174
          %1373 = vmatpush1.msra.mxu0 %v1173
          %1374 = vmatprep.subr.mxu0 %v1177
          %1375 = vmatpush1.msra.mxu0 %v1176
          %1376 = vmatprep.subr.mxu0 %v1180
          %1377 = vmatpush1.msra.mxu0 %v1179
          %1378 = vmatprep.subr.mxu0 %v1183
          %1379 = vmatpush1.msra.mxu0 %v1182
          %1380 = vmatprep.subr.mxu0 %v1186
          %1381 = vmatpush1.msra.mxu0 %v1185
          %1382 = vmatprep.subr.mxu0 %v1189
          %1383 = vmatpush1.msra.mxu0 %v1188
          %1384 = vmatprep.subr.mxu0 %v1192
          %1385 = vmatpush1.msra.mxu0 %v1191
          %1386 = vmatprep.subr.mxu0 %v1195
          %1387 = vmatpush1.msra.mxu0 %v1194
          %1388 = vmatprep.subr.mxu0 %v1198
          %1389 = vmatpush1.msra.mxu0 %v1197
          %1390 = vmatprep.subr.mxu0 %v1201
          %1391 = vmatpush1.msra.mxu0 %v1200
          %1392 = vmatprep.subr.mxu0 %v1204
          %1393 = vmatpush1.msra.mxu0 %v1203
          %1394 = vmatprep.subr.mxu0 %v1207
          %1395 = vmatpush1.msra.mxu0 %v1206
          %1396 = vmatprep.subr.mxu0 %v1210
          %1397 = vmatpush1.msra.mxu0 %v1209
          %1398 = vmatprep.subr.mxu0 %v1213
          %1399 = vmatpush1.msra.mxu0 %v1212
          %1400 = vmatprep.subr.mxu0 %v1216
          %1401 = vmatpush1.msra.mxu0 %v1215
          %1402 = vmatprep.subr.mxu0 %v1219
          %1403 = vmatpush1.msra.mxu0 %v1218
          %1404 = vmatprep.subr.mxu0 %v1222
          %1405 = vmatpush1.msra.mxu0 %v1221
          %1406 = vmatprep.subr.mxu0 %v1225
          %1407 = vmatpush1.msra.mxu0 %v1224
          %1408 = vmatprep.subr.mxu0 %v1228
          %1409 = vmatpush1.msra.mxu0 %v1227
          %1410 = vmatprep.subr.mxu0 %v1231
          %1411 = vmatpush1.msra.mxu0 %v1230
          %1412 = vmatprep.subr.mxu0 %v1234
          %1413 = vmatpush1.msra.mxu0 %v1233
          %1414 = vmatprep.mubr.f32.mxu0 %v1125
          %1415 = vmatmul.mubr.f32.gmra.mrb[0].mxu0 %v1124
          %v1416 = vpop.f32.mrb[0].mxu0
          %v1417 = vadd.f32 %v1338, %v1416
          %v1418 = vpop.f32.mrb[0].mxu0
          %v1419 = vadd.f32 %v1342, %v1418
          %1420 = vmatprep.mubr.f32.mxu0 %v1127
          %1421 = vmatmul.mubr.f32.gmra.mrb[0].mxu0 %v1126
          %v1422 = vpop.f32.mrb[0].mxu0
          %v1423 = vadd.f32 %v1338, %v1422
          %v1424 = vpop.f32.mrb[0].mxu0
          %v1425 = vadd.f32 %v1342, %v1424
          %1426 = vmatprep.mubr.f32.mxu0 %v1129
          %1427 = vmatmul.mubr.f32.gmra.mrb[0].mxu0 %v1128
          %v1428 = vpop.f32.mrb[0].mxu0
          %v1429 = vadd.f32 %v1338, %v1428
          %v1430 = vpop.f32.mrb[0].mxu0
          %v1431 = vadd.f32 %v1342, %v1430
          %1432 = vmatprep.mubr.f32.mxu0 %v1131
          %1433 = vmatmul.mubr.f32.gmra.mrb[0].mxu0 %v1130
          %v1434 = vpop.f32.mrb[0].mxu0
          %v1435 = vadd.f32 %v1338, %v1434
          %v1436 = vpop.f32.mrb[0].mxu0
          %v1437 = vadd.f32 %v1342, %v1436
          %1438 = vmatprep.mubr.f32.mxu0 %v1133
          %1439 = vmatmul.mubr.f32.gmra.mrb[0].mxu0 %v1132
          %v1440 = vpop.f32.mrb[0].mxu0
          %v1441 = vadd.f32 %v1338, %v1440
          %v1442 = vpop.f32.mrb[0].mxu0
          %v1443 = vadd.f32 %v1342, %v1442
          %1444 = vmatprep.mubr.f32.mxu0 %v1135
          %1445 = vmatmul.mubr.f32.gmra.mrb[0].mxu0 %v1134
          %v1446 = vpop.f32.mrb[0].mxu0
          %v1447 = vadd.f32 %v1338, %v1446
          %v1448 = vpop.f32.mrb[0].mxu0
          %v1449 = vadd.f32 %v1342, %v1448
          %1450 = vmatprep.mubr.f32.mxu0 %v1137
          %1451 = vmatmul.mubr.f32.gmra.mrb[0].mxu0 %v1136
          %v1452 = vpop.f32.mrb[0].mxu0
          %v1453 = vadd.f32 %v1338, %v1452
          %v1454 = vpop.f32.mrb[0].mxu0
          %v1455 = vadd.f32 %v1342, %v1454
          %1456 = vmatprep.mubr.f32.mxu0 %v1139
          %1457 = vmatmul.mubr.f32.gmra.mrb[0].mxu0 %v1138
          %v1458 = vpop.f32.mrb[0].mxu0
          %v1459 = vadd.f32 %v1338, %v1458
          %v1460 = vpop.f32.mrb[0].mxu0
          %v1461 = vadd.f32 %v1342, %v1460
          %1462 = vdwg.mxu0
          %1463 = vmatprep.subr.mxu0 0.0
          %1464 = vmatpush1.msra.mxu0 %v1142
          %1465 = vmatprep.subr.mxu0 0.0
          %1466 = vmatpush1.msra.mxu0 %v1145
          %1467 = vmatprep.subr.mxu0 0.0
          %1468 = vmatpush1.msra.mxu0 %v1148
          %1469 = vmatprep.subr.mxu0 0.0
          %1470 = vmatpush1.msra.mxu0 %v1151
          %1471 = vmatprep.subr.mxu0 0.0
          %1472 = vmatpush1.msra.mxu0 %v1154
          %1473 = vmatprep.subr.mxu0 0.0
          %1474 = vmatpush1.msra.mxu0 %v1157
          %1475 = vmatprep.subr.mxu0 0.0
          %1476 = vmatpush1.msra.mxu0 %v1160
          %1477 = vmatprep.subr.mxu0 0.0
          %1478 = vmatpush1.msra.mxu0 %v1163
          %1479 = vmatprep.subr.mxu0 0.0
          %1480 = vmatpush1.msra.mxu0 %v1166
          %1481 = vmatprep.subr.mxu0 0.0
          %1482 = vmatpush1.msra.mxu0 %v1169
          %1483 = vmatprep.subr.mxu0 0.0
          %1484 = vmatpush1.msra.mxu0 %v1172
          %1485 = vmatprep.subr.mxu0 0.0
          %1486 = vmatpush1.msra.mxu0 %v1175
          %1487 = vmatprep.subr.mxu0 0.0
          %1488 = vmatpush1.msra.mxu0 %v1178
          %1489 = vmatprep.subr.mxu0 0.0
          %1490 = vmatpush1.msra.mxu0 %v1181
          %1491 = vmatprep.subr.mxu0 0.0
          %1492 = vmatpush1.msra.mxu0 %v1184
          %1493 = vmatprep.subr.mxu0 0.0
          %1494 = vmatpush1.msra.mxu0 %v1187
          %1495 = vmatprep.subr.mxu0 0.0
          %1496 = vmatpush1.msra.mxu0 %v1190
          %1497 = vmatprep.subr.mxu0 0.0
          %1498 = vmatpush1.msra.mxu0 %v1193
          %1499 = vmatprep.subr.mxu0 0.0
          %1500 = vmatpush1.msra.mxu0 %v1196
          %1501 = vmatprep.subr.mxu0 0.0
          %1502 = vmatpush1.msra.mxu0 %v1199
          %1503 = vmatprep.subr.mxu0 0.0
          %1504 = vmatpush1.msra.mxu0 %v1202
          %1505 = vmatprep.subr.mxu0 0.0
          %1506 = vmatpush1.msra.mxu0 %v1205
          %1507 = vmatprep.subr.mxu0 0.0
          %1508 = vmatpush1.msra.mxu0 %v1208
          %1509 = vmatprep.subr.mxu0 0.0
          %1510 = vmatpush1.msra.mxu0 %v1211
          %1511 = vmatprep.subr.mxu0 0.0
          %1512 = vmatpush1.msra.mxu0 %v1214
          %1513 = vmatprep.subr.mxu0 0.0
          %1514 = vmatpush1.msra.mxu0 %v1217
          %1515 = vmatprep.subr.mxu0 0.0
          %1516 = vmatpush1.msra.mxu0 %v1220
          %1517 = vmatprep.subr.mxu0 0.0
          %1518 = vmatpush1.msra.mxu0 %v1223
          %1519 = vmatprep.subr.mxu0 0.0
          %1520 = vmatpush1.msra.mxu0 %v1226
          %1521 = vmatprep.subr.mxu0 0.0
          %1522 = vmatpush1.msra.mxu0 %v1229
          %1523 = vmatprep.subr.mxu0 0.0
          %1524 = vmatpush1.msra.mxu0 %v1232
          %1525 = vmatprep.subr.mxu0 0.0
          %1526 = vmatpush1.msra.mxu0 %v1235
          %1527 = vmatprep.mubr.f32.mxu0 %v1125
          %1528 = vmatmul.mubr.f32.gmra.mrb[0].mxu0 %v1124
          %v1529 = vpop.f32.mrb[0].mxu0
          %v1530 = vadd.f32 %v1346, %v1529
          %v1531 = vpop.f32.mrb[0].mxu0
          %1532 = vmatprep.mubr.f32.mxu0 %v1127
          %1533 = vmatmul.mubr.f32.gmra.mrb[0].mxu0 %v1126
          %v1534 = vpop.f32.mrb[0].mxu0
          %v1535 = vadd.f32 %v1346, %v1534
          %v1536 = vpop.f32.mrb[0].mxu0
          %1537 = vmatprep.mubr.f32.mxu0 %v1129
          %1538 = vmatmul.mubr.f32.gmra.mrb[0].mxu0 %v1128
          %v1539 = vpop.f32.mrb[0].mxu0
          %v1540 = vadd.f32 %v1346, %v1539
          %v1541 = vpop.f32.mrb[0].mxu0
          %1542 = vmatprep.mubr.f32.mxu0 %v1131
          %1543 = vmatmul.mubr.f32.gmra.mrb[0].mxu0 %v1130
          %v1544 = vpop.f32.mrb[0].mxu0
          %v1545 = vadd.f32 %v1346, %v1544
          %v1546 = vpop.f32.mrb[0].mxu0
          %1547 = vmatprep.mubr.f32.mxu0 %v1133
          %1548 = vmatmul.mubr.f32.gmra.mrb[0].mxu0 %v1132
          %v1549 = vpop.f32.mrb[0].mxu0
          %v1550 = vadd.f32 %v1346, %v1549
          %v1551 = vpop.f32.mrb[0].mxu0
          %1552 = vmatprep.mubr.f32.mxu0 %v1135
          %1553 = vmatmul.mubr.f32.gmra.mrb[0].mxu0 %v1134
          %v1554 = vpop.f32.mrb[0].mxu0
          %v1555 = vadd.f32 %v1346, %v1554
          %v1556 = vpop.f32.mrb[0].mxu0
          %1557 = vmatprep.mubr.f32.mxu0 %v1137
          %1558 = vmatmul.mubr.f32.gmra.mrb[0].mxu0 %v1136
          %v1559 = vpop.f32.mrb[0].mxu0
          %v1560 = vadd.f32 %v1346, %v1559
          %v1561 = vpop.f32.mrb[0].mxu0
          %1562 = vmatprep.mubr.f32.mxu0 %v1139
          %1563 = vmatmul.mubr.f32.gmra.mrb[0].mxu0 %v1138
          %v1564 = vpop.f32.mrb[0].mxu0
          %v1565 = vadd.f32 %v1346, %v1564
          %v1566 = vpop.f32.mrb[0].mxu0
          %1567 = vdwg.mxu0
          %1568 = vst [vmem:[#allocation3] sm:$0xff] %v1417
          %1569 = vst [vmem:[#allocation3 + $0x8] sm:$0xff] %v1419
          %1570 = vst [vmem:[#allocation3 + $0x10] sm:$0xff] %v1530
          %1571 = vst [vmem:[#allocation3 + $0x18] sm:$0xff] %v1423
          %1572 = vst [vmem:[#allocation3 + $0x20] sm:$0xff] %v1425
          %1573 = vst [vmem:[#allocation3 + $0x28] sm:$0xff] %v1535
          %1574 = vst [vmem:[#allocation3 + $0x30] sm:$0xff] %v1429
          %1575 = vst [vmem:[#allocation3 + $0x38] sm:$0xff] %v1431
          %1576 = vst [vmem:[#allocation3 + $0x40] sm:$0xff] %v1540
          %1577 = vst [vmem:[#allocation3 + $0x48] sm:$0xff] %v1435
          %1578 = vst [vmem:[#allocation3 + $0x50] sm:$0xff] %v1437
          %1579 = vst [vmem:[#allocation3 + $0x58] sm:$0xff] %v1545
          %1580 = vst [vmem:[#allocation3 + $0x60] sm:$0xff] %v1441
          %1581 = vst [vmem:[#allocation3 + $0x68] sm:$0xff] %v1443
          %1582 = vst [vmem:[#allocation3 + $0x70] sm:$0xff] %v1550
          %1583 = vst [vmem:[#allocation3 + $0x78] sm:$0xff] %v1447
          %1584 = vst [vmem:[#allocation3 + $0x80] sm:$0xff] %v1449
          %1585 = vst [vmem:[#allocation3 + $0x88] sm:$0xff] %v1555
          %1586 = vst [vmem:[#allocation3 + $0x90] sm:$0xff] %v1453
          %1587 = vst [vmem:[#allocation3 + $0x98] sm:$0xff] %v1455
          %1588 = vst [vmem:[#allocation3 + $0xa0] sm:$0xff] %v1560
          %1589 = vst [vmem:[#allocation3 + $0xa8] sm:$0xff] %v1459
          %1590 = vst [vmem:[#allocation3 + $0xb0] sm:$0xff] %v1461
          %1591 = vst [vmem:[#allocation3 + $0xb8] sm:$0xff] %v1565
          %s1592 = scalar_lea.vmem %s329, 3 [#allocation9]
          %v1593 = vld [vmem:[%s1592] sm:$0x7]
          %v1595 = vlaneseq
          %v1596 = vshrl.u32 %v1595, 7
          %v1597 = vsub.s32 0, %v1596
          %v1598 = vrot.slane %v1593, %v1597
          %v1599 = vlaneseq
          %v1600 = vshrl.u32 %v1599, 7
          %v1601 = vsub.s32 1, %v1600
          %v1602 = vrot.slane %v1593, %v1601
          %v1603 = vlaneseq
          %v1604 = vshrl.u32 %v1603, 7
          %v1605 = vsub.s32 2, %v1604
          %v1606 = vrot.slane %v1593, %v1605
          %1610 = vmatprep.subr.mxu0 %v1238
          %1611 = vmatpush1.msra.mxu0 %v1237
          %1612 = vmatprep.subr.mxu0 %v1241
          %1613 = vmatpush1.msra.mxu0 %v1240
          %1614 = vmatprep.subr.mxu0 %v1244
          %1615 = vmatpush1.msra.mxu0 %v1243
          %1616 = vmatprep.subr.mxu0 %v1247
          %1617 = vmatpush1.msra.mxu0 %v1246
          %1618 = vmatprep.subr.mxu0 %v1250
          %1619 = vmatpush1.msra.mxu0 %v1249
          %1620 = vmatprep.subr.mxu0 %v1253
          %1621 = vmatpush1.msra.mxu0 %v1252
          %1622 = vmatprep.subr.mxu0 %v1256
          %1623 = vmatpush1.msra.mxu0 %v1255
          %1624 = vmatprep.subr.mxu0 %v1259
          %1625 = vmatpush1.msra.mxu0 %v1258
          %1626 = vmatprep.subr.mxu0 %v1262
          %1627 = vmatpush1.msra.mxu0 %v1261
          %1628 = vmatprep.subr.mxu0 %v1265
          %1629 = vmatpush1.msra.mxu0 %v1264
          %1630 = vmatprep.subr.mxu0 %v1268
          %1631 = vmatpush1.msra.mxu0 %v1267
          %1632 = vmatprep.subr.mxu0 %v1271
          %1633 = vmatpush1.msra.mxu0 %v1270
          %1634 = vmatprep.subr.mxu0 %v1274
          %1635 = vmatpush1.msra.mxu0 %v1273
          %1636 = vmatprep.subr.mxu0 %v1277
          %1637 = vmatpush1.msra.mxu0 %v1276
          %1638 = vmatprep.subr.mxu0 %v1280
          %1639 = vmatpush1.msra.mxu0 %v1279
          %1640 = vmatprep.subr.mxu0 %v1283
          %1641 = vmatpush1.msra.mxu0 %v1282
          %1642 = vmatprep.subr.mxu0 %v1286
          %1643 = vmatpush1.msra.mxu0 %v1285
          %1644 = vmatprep.subr.mxu0 %v1289
          %1645 = vmatpush1.msra.mxu0 %v1288
          %1646 = vmatprep.subr.mxu0 %v1292
          %1647 = vmatpush1.msra.mxu0 %v1291
          %1648 = vmatprep.subr.mxu0 %v1295
          %1649 = vmatpush1.msra.mxu0 %v1294
          %1650 = vmatprep.subr.mxu0 %v1298
          %1651 = vmatpush1.msra.mxu0 %v1297
          %1652 = vmatprep.subr.mxu0 %v1301
          %1653 = vmatpush1.msra.mxu0 %v1300
          %1654 = vmatprep.subr.mxu0 %v1304
          %1655 = vmatpush1.msra.mxu0 %v1303
          %1656 = vmatprep.subr.mxu0 %v1307
          %1657 = vmatpush1.msra.mxu0 %v1306
          %1658 = vmatprep.subr.mxu0 %v1310
          %1659 = vmatpush1.msra.mxu0 %v1309
          %1660 = vmatprep.subr.mxu0 %v1313
          %1661 = vmatpush1.msra.mxu0 %v1312
          %1662 = vmatprep.subr.mxu0 %v1316
          %1663 = vmatpush1.msra.mxu0 %v1315
          %1664 = vmatprep.subr.mxu0 %v1319
          %1665 = vmatpush1.msra.mxu0 %v1318
          %1666 = vmatprep.subr.mxu0 %v1322
          %1667 = vmatpush1.msra.mxu0 %v1321
          %1668 = vmatprep.subr.mxu0 %v1325
          %1669 = vmatpush1.msra.mxu0 %v1324
          %1670 = vmatprep.subr.mxu0 %v1328
          %1671 = vmatpush1.msra.mxu0 %v1327
          %1672 = vmatprep.subr.mxu0 %v1331
          %1673 = vmatpush1.msra.mxu0 %v1330
          %1674 = vmatprep.mubr.f32.mxu0 %v1125
          %1675 = vmatmul.mubr.f32.gmra.mrb[0].mxu0 %v1124
          %v1676 = vpop.f32.mrb[0].mxu0
          %v1677 = vadd.f32 %v1598, %v1676
          %v1678 = vpop.f32.mrb[0].mxu0
          %v1679 = vadd.f32 %v1602, %v1678
          %1680 = vmatprep.mubr.f32.mxu0 %v1127
          %1681 = vmatmul.mubr.f32.gmra.mrb[0].mxu0 %v1126
          %v1682 = vpop.f32.mrb[0].mxu0
          %v1683 = vadd.f32 %v1598, %v1682
          %v1684 = vpop.f32.mrb[0].mxu0
          %v1685 = vadd.f32 %v1602, %v1684
          %1686 = vmatprep.mubr.f32.mxu0 %v1129
          %1687 = vmatmul.mubr.f32.gmra.mrb[0].mxu0 %v1128
          %v1688 = vpop.f32.mrb[0].mxu0
          %v1689 = vadd.f32 %v1598, %v1688
          %v1690 = vpop.f32.mrb[0].mxu0
          %v1691 = vadd.f32 %v1602, %v1690
          %1692 = vmatprep.mubr.f32.mxu0 %v1131
          %1693 = vmatmul.mubr.f32.gmra.mrb[0].mxu0 %v1130
          %v1694 = vpop.f32.mrb[0].mxu0
          %v1695 = vadd.f32 %v1598, %v1694
          %v1696 = vpop.f32.mrb[0].mxu0
          %v1697 = vadd.f32 %v1602, %v1696
          %1698 = vmatprep.mubr.f32.mxu0 %v1133
          %1699 = vmatmul.mubr.f32.gmra.mrb[0].mxu0 %v1132
          %v1700 = vpop.f32.mrb[0].mxu0
          %v1701 = vadd.f32 %v1598, %v1700
          %v1702 = vpop.f32.mrb[0].mxu0
          %v1703 = vadd.f32 %v1602, %v1702
          %1704 = vmatprep.mubr.f32.mxu0 %v1135
          %1705 = vmatmul.mubr.f32.gmra.mrb[0].mxu0 %v1134
          %v1706 = vpop.f32.mrb[0].mxu0
          %v1707 = vadd.f32 %v1598, %v1706
          %v1708 = vpop.f32.mrb[0].mxu0
          %v1709 = vadd.f32 %v1602, %v1708
          %1710 = vmatprep.mubr.f32.mxu0 %v1137
          %1711 = vmatmul.mubr.f32.gmra.mrb[0].mxu0 %v1136
          %v1712 = vpop.f32.mrb[0].mxu0
          %v1713 = vadd.f32 %v1598, %v1712
          %v1714 = vpop.f32.mrb[0].mxu0
          %v1715 = vadd.f32 %v1602, %v1714
          %1716 = vmatprep.mubr.f32.mxu0 %v1139
          %1717 = vmatmul.mubr.f32.gmra.mrb[0].mxu0 %v1138
          %v1718 = vpop.f32.mrb[0].mxu0
          %v1719 = vadd.f32 %v1598, %v1718
          %v1720 = vpop.f32.mrb[0].mxu0
          %v1721 = vadd.f32 %v1602, %v1720
          %1722 = vdwg.mxu0
          %1723 = vmatprep.subr.mxu0 0.0
          %1724 = vmatpush1.msra.mxu0 %v1239
          %1725 = vmatprep.subr.mxu0 0.0
          %1726 = vmatpush1.msra.mxu0 %v1242
          %1727 = vmatprep.subr.mxu0 0.0
          %1728 = vmatpush1.msra.mxu0 %v1245
          %1729 = vmatprep.subr.mxu0 0.0
          %1730 = vmatpush1.msra.mxu0 %v1248
          %1731 = vmatprep.subr.mxu0 0.0
          %1732 = vmatpush1.msra.mxu0 %v1251
          %1733 = vmatprep.subr.mxu0 0.0
          %1734 = vmatpush1.msra.mxu0 %v1254
          %1735 = vmatprep.subr.mxu0 0.0
          %1736 = vmatpush1.msra.mxu0 %v1257
          %1737 = vmatprep.subr.mxu0 0.0
          %1738 = vmatpush1.msra.mxu0 %v1260
          %1739 = vmatprep.subr.mxu0 0.0
          %1740 = vmatpush1.msra.mxu0 %v1263
          %1741 = vmatprep.subr.mxu0 0.0
          %1742 = vmatpush1.msra.mxu0 %v1266
          %1743 = vmatprep.subr.mxu0 0.0
          %1744 = vmatpush1.msra.mxu0 %v1269
          %1745 = vmatprep.subr.mxu0 0.0
          %1746 = vmatpush1.msra.mxu0 %v1272
          %1747 = vmatprep.subr.mxu0 0.0
          %1748 = vmatpush1.msra.mxu0 %v1275
          %1749 = vmatprep.subr.mxu0 0.0
          %1750 = vmatpush1.msra.mxu0 %v1278
          %1751 = vmatprep.subr.mxu0 0.0
          %1752 = vmatpush1.msra.mxu0 %v1281
          %1753 = vmatprep.subr.mxu0 0.0
          %1754 = vmatpush1.msra.mxu0 %v1284
          %1755 = vmatprep.subr.mxu0 0.0
          %1756 = vmatpush1.msra.mxu0 %v1287
          %1757 = vmatprep.subr.mxu0 0.0
          %1758 = vmatpush1.msra.mxu0 %v1290
          %1759 = vmatprep.subr.mxu0 0.0
          %1760 = vmatpush1.msra.mxu0 %v1293
          %1761 = vmatprep.subr.mxu0 0.0
          %1762 = vmatpush1.msra.mxu0 %v1296
          %1763 = vmatprep.subr.mxu0 0.0
          %1764 = vmatpush1.msra.mxu0 %v1299
          %1765 = vmatprep.subr.mxu0 0.0
          %1766 = vmatpush1.msra.mxu0 %v1302
          %1767 = vmatprep.subr.mxu0 0.0
          %1768 = vmatpush1.msra.mxu0 %v1305
          %1769 = vmatprep.subr.mxu0 0.0
          %1770 = vmatpush1.msra.mxu0 %v1308
          %1771 = vmatprep.subr.mxu0 0.0
          %1772 = vmatpush1.msra.mxu0 %v1311
          %1773 = vmatprep.subr.mxu0 0.0
          %1774 = vmatpush1.msra.mxu0 %v1314
          %1775 = vmatprep.subr.mxu0 0.0
          %1776 = vmatpush1.msra.mxu0 %v1317
          %1777 = vmatprep.subr.mxu0 0.0
          %1778 = vmatpush1.msra.mxu0 %v1320
          %1779 = vmatprep.subr.mxu0 0.0
          %1780 = vmatpush1.msra.mxu0 %v1323
          %1781 = vmatprep.subr.mxu0 0.0
          %1782 = vmatpush1.msra.mxu0 %v1326
          %1783 = vmatprep.subr.mxu0 0.0
          %1784 = vmatpush1.msra.mxu0 %v1329
          %1785 = vmatprep.subr.mxu0 0.0
          %1786 = vmatpush1.msra.mxu0 %v1332
          %1787 = vmatprep.mubr.f32.mxu0 %v1125
          %1788 = vmatmul.mubr.f32.gmra.mrb[0].mxu0 %v1124
          %v1789 = vpop.f32.mrb[0].mxu0
          %v1790 = vadd.f32 %v1606, %v1789
          %v1791 = vpop.f32.mrb[0].mxu0
          %1792 = vmatprep.mubr.f32.mxu0 %v1127
          %1793 = vmatmul.mubr.f32.gmra.mrb[0].mxu0 %v1126
          %v1794 = vpop.f32.mrb[0].mxu0
          %v1795 = vadd.f32 %v1606, %v1794
          %v1796 = vpop.f32.mrb[0].mxu0
          %1797 = vmatprep.mubr.f32.mxu0 %v1129
          %1798 = vmatmul.mubr.f32.gmra.mrb[0].mxu0 %v1128
          %v1799 = vpop.f32.mrb[0].mxu0
          %v1800 = vadd.f32 %v1606, %v1799
          %v1801 = vpop.f32.mrb[0].mxu0
          %1802 = vmatprep.mubr.f32.mxu0 %v1131
          %1803 = vmatmul.mubr.f32.gmra.mrb[0].mxu0 %v1130
          %v1804 = vpop.f32.mrb[0].mxu0
          %v1805 = vadd.f32 %v1606, %v1804
          %v1806 = vpop.f32.mrb[0].mxu0
          %1807 = vmatprep.mubr.f32.mxu0 %v1133
          %1808 = vmatmul.mubr.f32.gmra.mrb[0].mxu0 %v1132
          %v1809 = vpop.f32.mrb[0].mxu0
          %v1810 = vadd.f32 %v1606, %v1809
          %v1811 = vpop.f32.mrb[0].mxu0
          %1812 = vmatprep.mubr.f32.mxu0 %v1135
          %1813 = vmatmul.mubr.f32.gmra.mrb[0].mxu0 %v1134
          %v1814 = vpop.f32.mrb[0].mxu0
          %v1815 = vadd.f32 %v1606, %v1814
          %v1816 = vpop.f32.mrb[0].mxu0
          %1817 = vmatprep.mubr.f32.mxu0 %v1137
          %1818 = vmatmul.mubr.f32.gmra.mrb[0].mxu0 %v1136
          %v1819 = vpop.f32.mrb[0].mxu0
          %v1820 = vadd.f32 %v1606, %v1819
          %v1821 = vpop.f32.mrb[0].mxu0
          %1822 = vmatprep.mubr.f32.mxu0 %v1139
          %1823 = vmatmul.mubr.f32.gmra.mrb[0].mxu0 %v1138
          %v1824 = vpop.f32.mrb[0].mxu0
          %v1825 = vadd.f32 %v1606, %v1824
          %v1826 = vpop.f32.mrb[0].mxu0
          %1827 = vdwg.mxu0
          %1828 = vst [vmem:[#allocation4] sm:$0xff] %v1677
          %1829 = vst [vmem:[#allocation4 + $0x8] sm:$0xff] %v1679
          %1830 = vst [vmem:[#allocation4 + $0x10] sm:$0xff] %v1790
          %1831 = vst [vmem:[#allocation4 + $0x18] sm:$0xff] %v1683
          %1832 = vst [vmem:[#allocation4 + $0x20] sm:$0xff] %v1685
          %1833 = vst [vmem:[#allocation4 + $0x28] sm:$0xff] %v1795
          %1834 = vst [vmem:[#allocation4 + $0x30] sm:$0xff] %v1689
          %1835 = vst [vmem:[#allocation4 + $0x38] sm:$0xff] %v1691
          %1836 = vst [vmem:[#allocation4 + $0x40] sm:$0xff] %v1800
          %1837 = vst [vmem:[#allocation4 + $0x48] sm:$0xff] %v1695
          %1838 = vst [vmem:[#allocation4 + $0x50] sm:$0xff] %v1697
          %1839 = vst [vmem:[#allocation4 + $0x58] sm:$0xff] %v1805
          %1840 = vst [vmem:[#allocation4 + $0x60] sm:$0xff] %v1701
          %1841 = vst [vmem:[#allocation4 + $0x68] sm:$0xff] %v1703
          %1842 = vst [vmem:[#allocation4 + $0x70] sm:$0xff] %v1810
          %1843 = vst [vmem:[#allocation4 + $0x78] sm:$0xff] %v1707
          %1844 = vst [vmem:[#allocation4 + $0x80] sm:$0xff] %v1709
          %1845 = vst [vmem:[#allocation4 + $0x88] sm:$0xff] %v1815
          %1846 = vst [vmem:[#allocation4 + $0x90] sm:$0xff] %v1713
          %1847 = vst [vmem:[#allocation4 + $0x98] sm:$0xff] %v1715
          %1848 = vst [vmem:[#allocation4 + $0xa0] sm:$0xff] %v1820
          %1849 = vst [vmem:[#allocation4 + $0xa8] sm:$0xff] %v1719
          %1850 = vst [vmem:[#allocation4 + $0xb0] sm:$0xff] %v1721
          %1851 = vst [vmem:[#allocation4 + $0xb8] sm:$0xff] %v1825
        $region64: #{dialogue_net_forward.1} parent=39 // pred_fallthru
          _
        %v1852 = vld [vmem:[%s320] sm:$0xff]
        %v1853 = vld [vmem:[%s320 + $0x8] sm:$0xff]
        %v1854 = vld [vmem:[%s320 + $0x10] sm:$0xff]
        %v1855 = vld [vmem:[%s320 + $0x18] sm:$0xff]
        %v1856 = vld [vmem:[%s320 + $0x20] sm:$0xff]
        %v1857 = vld [vmem:[%s320 + $0x28] sm:$0xff]
        %v1858 = vld [vmem:[%s320 + $0x30] sm:$0xff]
        %v1859 = vld [vmem:[%s320 + $0x38] sm:$0xff]
        %v1860 = vld [vmem:[%s320 + $0x40] sm:$0xff]
        %v1861 = vld [vmem:[%s320 + $0x48] sm:$0xff]
        %v1862 = vld [vmem:[%s320 + $0x50] sm:$0xff]
        %v1863 = vld [vmem:[%s320 + $0x58] sm:$0xff]
        %v1864 = vld [vmem:[%s320 + $0x60] sm:$0xff]
        %v1865 = vld [vmem:[%s320 + $0x68] sm:$0xff]
        %v1866 = vld [vmem:[%s320 + $0x70] sm:$0xff]
        %v1867 = vld [vmem:[%s320 + $0x78] sm:$0xff]
        %v1868 = vld [vmem:[%s320 + $0x80] sm:$0xff]
        %v1869 = vld [vmem:[%s320 + $0x88] sm:$0xff]
        %v1870 = vld [vmem:[%s320 + $0x90] sm:$0xff]
        %v1871 = vld [vmem:[%s320 + $0x98] sm:$0xff]
        %v1872 = vld [vmem:[%s320 + $0xa0] sm:$0xff]
        %v1873 = vld [vmem:[%s320 + $0xa8] sm:$0xff]
        %v1874 = vld [vmem:[%s320 + $0xb0] sm:$0xff]
        %v1875 = vld [vmem:[%s320 + $0xb8] sm:$0xff]
        %v1876 = vld [vmem:[%s320 + $0xc0] sm:$0xff]
        %v1877 = vld [vmem:[%s320 + $0xc8] sm:$0xff]
        %v1878 = vld [vmem:[%s320 + $0xd0] sm:$0xff]
        %v1879 = vld [vmem:[%s320 + $0xd8] sm:$0xff]
        %v1880 = vld [vmem:[%s320 + $0xe0] sm:$0xff]
        %v1881 = vld [vmem:[%s320 + $0xe8] sm:$0xff]
        %v1882 = vld [vmem:[%s320 + $0xf0] sm:$0xff]
        %v1883 = vld [vmem:[%s320 + $0xf8] sm:$0xff]
        %v1884 = vld [vmem:[%s320 + $0x100] sm:$0xff]
        %v1885 = vld [vmem:[%s320 + $0x108] sm:$0xff]
        %v1886 = vld [vmem:[%s320 + $0x110] sm:$0xff]
        %v1887 = vld [vmem:[%s320 + $0x118] sm:$0xff]
        %v1888 = vld [vmem:[%s320 + $0x120] sm:$0xff]
        %v1889 = vld [vmem:[%s320 + $0x128] sm:$0xff]
        %v1890 = vld [vmem:[%s320 + $0x130] sm:$0xff]
        %v1891 = vld [vmem:[%s320 + $0x138] sm:$0xff]
        %v1892 = vld [vmem:[%s320 + $0x140] sm:$0xff]
        %v1893 = vld [vmem:[%s320 + $0x148] sm:$0xff]
        %v1894 = vld [vmem:[%s320 + $0x150] sm:$0xff]
        %v1895 = vld [vmem:[%s320 + $0x158] sm:$0xff]
        %v1896 = vld [vmem:[%s320 + $0x160] sm:$0xff]
        %v1897 = vld [vmem:[%s320 + $0x168] sm:$0xff]
        %v1898 = vld [vmem:[%s320 + $0x170] sm:$0xff]
        %v1899 = vld [vmem:[%s320 + $0x178] sm:$0xff]
        %v1900 = vld [vmem:[%s320 + $0x180] sm:$0xff]
        %v1901 = vld [vmem:[%s320 + $0x188] sm:$0xff]
        %v1902 = vld [vmem:[%s320 + $0x190] sm:$0xff]
        %v1903 = vld [vmem:[%s320 + $0x198] sm:$0xff]
        %v1904 = vld [vmem:[%s320 + $0x1a0] sm:$0xff]
        %v1905 = vld [vmem:[%s320 + $0x1a8] sm:$0xff]
        %v1906 = vld [vmem:[%s320 + $0x1b0] sm:$0xff]
        %v1907 = vld [vmem:[%s320 + $0x1b8] sm:$0xff]
        %v1908 = vld [vmem:[%s320 + $0x1c0] sm:$0xff]
        %v1909 = vld [vmem:[%s320 + $0x1c8] sm:$0xff]
        %v1910 = vld [vmem:[%s320 + $0x1d0] sm:$0xff]
        %v1911 = vld [vmem:[%s320 + $0x1d8] sm:$0xff]
        %v1912 = vld [vmem:[%s320 + $0x1e0] sm:$0xff]
        %v1913 = vld [vmem:[%s320 + $0x1e8] sm:$0xff]
        %v1914 = vld [vmem:[%s320 + $0x1f0] sm:$0xff]
        %v1915 = vld [vmem:[%s320 + $0x1f8] sm:$0xff]
        %v1916 = vld [vmem:[%s320 + $0x200] sm:$0xff]
        %v1917 = vld [vmem:[%s320 + $0x208] sm:$0xff]
        %v1918 = vld [vmem:[%s320 + $0x210] sm:$0xff]
        %v1919 = vld [vmem:[%s320 + $0x218] sm:$0xff]
        %v1920 = vld [vmem:[%s320 + $0x220] sm:$0xff]
        %v1921 = vld [vmem:[%s320 + $0x228] sm:$0xff]
        %v1922 = vld [vmem:[%s320 + $0x230] sm:$0xff]
        %v1923 = vld [vmem:[%s320 + $0x238] sm:$0xff]
        %v1924 = vld [vmem:[%s320 + $0x240] sm:$0xff]
        %v1925 = vld [vmem:[%s320 + $0x248] sm:$0xff]
        %v1926 = vld [vmem:[%s320 + $0x250] sm:$0xff]
        %v1927 = vld [vmem:[%s320 + $0x258] sm:$0xff]
        %v1928 = vld [vmem:[%s320 + $0x260] sm:$0xff]
        %v1929 = vld [vmem:[%s320 + $0x268] sm:$0xff]
        %v1930 = vld [vmem:[%s320 + $0x270] sm:$0xff]
        %v1931 = vld [vmem:[%s320 + $0x278] sm:$0xff]
        %v1932 = vld [vmem:[%s320 + $0x280] sm:$0xff]
        %v1933 = vld [vmem:[%s320 + $0x288] sm:$0xff]
        %v1934 = vld [vmem:[%s320 + $0x290] sm:$0xff]
        %v1935 = vld [vmem:[%s320 + $0x298] sm:$0xff]
        %v1936 = vld [vmem:[%s320 + $0x2a0] sm:$0xff]
        %v1937 = vld [vmem:[%s320 + $0x2a8] sm:$0xff]
        %v1938 = vld [vmem:[%s320 + $0x2b0] sm:$0xff]
        %v1939 = vld [vmem:[%s320 + $0x2b8] sm:$0xff]
        %v1940 = vld [vmem:[%s320 + $0x2c0] sm:$0xff]
        %v1941 = vld [vmem:[%s320 + $0x2c8] sm:$0xff]
        %v1942 = vld [vmem:[%s320 + $0x2d0] sm:$0xff]
        %v1943 = vld [vmem:[%s320 + $0x2d8] sm:$0xff]
        %v1944 = vld [vmem:[%s320 + $0x2e0] sm:$0xff]
        %v1945 = vld [vmem:[%s320 + $0x2e8] sm:$0xff]
        %v1946 = vld [vmem:[%s320 + $0x2f0] sm:$0xff]
        %v1947 = vld [vmem:[%s320 + $0x2f8] sm:$0xff]
        %v1948 = vld [vmem:[%s338] sm:$0x7]
        %s1949 = scalar_lea.vmem %s338, 3 [#allocation10]
        %v1950 = vld [vmem:[%s1949] sm:$0x7]
        %1951 = vmatprep.subr.mxu0 %v1853
        %1952 = vmatpush1.msra.mxu0 %v1852
        %1953 = vmatprep.subr.mxu0 %v1856
        %1954 = vmatpush1.msra.mxu0 %v1855
        %1955 = vmatprep.subr.mxu0 %v1859
        %1956 = vmatpush1.msra.mxu0 %v1858
        %1957 = vmatprep.subr.mxu0 %v1862
        %1958 = vmatpush1.msra.mxu0 %v1861
        %1959 = vmatprep.subr.mxu0 %v1865
        %1960 = vmatpush1.msra.mxu0 %v1864
        %1961 = vmatprep.subr.mxu0 %v1868
        %1962 = vmatpush1.msra.mxu0 %v1867
        %1963 = vmatprep.subr.mxu0 %v1871
        %1964 = vmatpush1.msra.mxu0 %v1870
        %1965 = vmatprep.subr.mxu0 %v1874
        %1966 = vmatpush1.msra.mxu0 %v1873
        %1967 = vmatprep.subr.mxu0 %v1877
        %1968 = vmatpush1.msra.mxu0 %v1876
        %1969 = vmatprep.subr.mxu0 %v1880
        %1970 = vmatpush1.msra.mxu0 %v1879
        %1971 = vmatprep.subr.mxu0 %v1883
        %1972 = vmatpush1.msra.mxu0 %v1882
        %1973 = vmatprep.subr.mxu0 %v1886
        %1974 = vmatpush1.msra.mxu0 %v1885
        %1975 = vmatprep.subr.mxu0 %v1889
        %1976 = vmatpush1.msra.mxu0 %v1888
        %1977 = vmatprep.subr.mxu0 %v1892
        %1978 = vmatpush1.msra.mxu0 %v1891
        %1979 = vmatprep.subr.mxu0 %v1895
        %1980 = vmatpush1.msra.mxu0 %v1894
        %1981 = vmatprep.subr.mxu0 %v1898
        %1982 = vmatpush1.msra.mxu0 %v1897
        %1983 = vmatprep.subr.mxu0 %v1901
        %1984 = vmatpush1.msra.mxu0 %v1900
        %1985 = vmatprep.subr.mxu0 %v1904
        %1986 = vmatpush1.msra.mxu0 %v1903
        %1987 = vmatprep.subr.mxu0 %v1907
        %1988 = vmatpush1.msra.mxu0 %v1906
        %1989 = vmatprep.subr.mxu0 %v1910
        %1990 = vmatpush1.msra.mxu0 %v1909
        %1991 = vmatprep.subr.mxu0 %v1913
        %1992 = vmatpush1.msra.mxu0 %v1912
        %1993 = vmatprep.subr.mxu0 %v1916
        %1994 = vmatpush1.msra.mxu0 %v1915
        %1995 = vmatprep.subr.mxu0 %v1919
        %1996 = vmatpush1.msra.mxu0 %v1918
        %1997 = vmatprep.subr.mxu0 %v1922
        %1998 = vmatpush1.msra.mxu0 %v1921
        %1999 = vmatprep.subr.mxu0 %v1925
        %2000 = vmatpush1.msra.mxu0 %v1924
        %2001 = vmatprep.subr.mxu0 %v1928
        %2002 = vmatpush1.msra.mxu0 %v1927
        %2003 = vmatprep.subr.mxu0 %v1931
        %2004 = vmatpush1.msra.mxu0 %v1930
        %2005 = vmatprep.subr.mxu0 %v1934
        %2006 = vmatpush1.msra.mxu0 %v1933
        %2007 = vmatprep.subr.mxu0 %v1937
        %2008 = vmatpush1.msra.mxu0 %v1936
        %2009 = vmatprep.subr.mxu0 %v1940
        %2010 = vmatpush1.msra.mxu0 %v1939
        %2011 = vmatprep.subr.mxu0 %v1943
        %2012 = vmatpush1.msra.mxu0 %v1942
        %2013 = vmatprep.subr.mxu0 %v1946
        %2014 = vmatpush1.msra.mxu0 %v1945
        %2015 = vmatprep.mubr.f32.mxu0 0.0
        %2016 = vmatmul.mubr.f32.gmra.mrb[0].mxu0 0.0
        %v2017 = vpop.f32.mrb[0].mxu0
        %v2018 = vadd.f32 0.0, %v2017
        %v2019 = vpop.f32.mrb[0].mxu0
        %v2020 = vadd.f32 0.0, %v2019
        %2021 = vmatprep.mubr.f32.mxu0 0.0
        %2022 = vmatmul.mubr.f32.gmra.mrb[0].mxu0 0.0
        %v2023 = vpop.f32.mrb[0].mxu0
        %v2024 = vadd.f32 0.0, %v2023
        %v2025 = vpop.f32.mrb[0].mxu0
        %v2026 = vadd.f32 0.0, %v2025
        %2027 = vdwg.mxu0
        %2028 = vmatprep.subr.mxu0 0.0
        %2029 = vmatpush1.msra.mxu0 %v1854
        %2030 = vmatprep.subr.mxu0 0.0
        %2031 = vmatpush1.msra.mxu0 %v1857
        %2032 = vmatprep.subr.mxu0 0.0
        %2033 = vmatpush1.msra.mxu0 %v1860
        %2034 = vmatprep.subr.mxu0 0.0
        %2035 = vmatpush1.msra.mxu0 %v1863
        %2036 = vmatprep.subr.mxu0 0.0
        %2037 = vmatpush1.msra.mxu0 %v1866
        %2038 = vmatprep.subr.mxu0 0.0
        %2039 = vmatpush1.msra.mxu0 %v1869
        %2040 = vmatprep.subr.mxu0 0.0
        %2041 = vmatpush1.msra.mxu0 %v1872
        %2042 = vmatprep.subr.mxu0 0.0
        %2043 = vmatpush1.msra.mxu0 %v1875
        %2044 = vmatprep.subr.mxu0 0.0
        %2045 = vmatpush1.msra.mxu0 %v1878
        %2046 = vmatprep.subr.mxu0 0.0
        %2047 = vmatpush1.msra.mxu0 %v1881
        %2048 = vmatprep.subr.mxu0 0.0
        %2049 = vmatpush1.msra.mxu0 %v1884
        %2050 = vmatprep.subr.mxu0 0.0
        %2051 = vmatpush1.msra.mxu0 %v1887
        %2052 = vmatprep.subr.mxu0 0.0
        %2053 = vmatpush1.msra.mxu0 %v1890
        %2054 = vmatprep.subr.mxu0 0.0
        %2055 = vmatpush1.msra.mxu0 %v1893
        %2056 = vmatprep.subr.mxu0 0.0
        %2057 = vmatpush1.msra.mxu0 %v1896
        %2058 = vmatprep.subr.mxu0 0.0
        %2059 = vmatpush1.msra.mxu0 %v1899
        %2060 = vmatprep.subr.mxu0 0.0
        %2061 = vmatpush1.msra.mxu0 %v1902
        %2062 = vmatprep.subr.mxu0 0.0
        %2063 = vmatpush1.msra.mxu0 %v1905
        %2064 = vmatprep.subr.mxu0 0.0
        %2065 = vmatpush1.msra.mxu0 %v1908
        %2066 = vmatprep.subr.mxu0 0.0
        %2067 = vmatpush1.msra.mxu0 %v1911
        %2068 = vmatprep.subr.mxu0 0.0
        %2069 = vmatpush1.msra.mxu0 %v1914
        %2070 = vmatprep.subr.mxu0 0.0
        %2071 = vmatpush1.msra.mxu0 %v1917
        %2072 = vmatprep.subr.mxu0 0.0
        %2073 = vmatpush1.msra.mxu0 %v1920
        %2074 = vmatprep.subr.mxu0 0.0
        %2075 = vmatpush1.msra.mxu0 %v1923
        %2076 = vmatprep.subr.mxu0 0.0
        %2077 = vmatpush1.msra.mxu0 %v1926
        %2078 = vmatprep.subr.mxu0 0.0
        %2079 = vmatpush1.msra.mxu0 %v1929
        %2080 = vmatprep.subr.mxu0 0.0
        %2081 = vmatpush1.msra.mxu0 %v1932
        %2082 = vmatprep.subr.mxu0 0.0
        %2083 = vmatpush1.msra.mxu0 %v1935
        %2084 = vmatprep.subr.mxu0 0.0
        %2085 = vmatpush1.msra.mxu0 %v1938
        %2086 = vmatprep.subr.mxu0 0.0
        %2087 = vmatpush1.msra.mxu0 %v1941
        %2088 = vmatprep.subr.mxu0 0.0
        %2089 = vmatpush1.msra.mxu0 %v1944
        %2090 = vmatprep.subr.mxu0 0.0
        %2091 = vmatpush1.msra.mxu0 %v1947
        %2092 = vmatprep.mubr.f32.mxu0 0.0
        %2093 = vmatmul.mubr.f32.gmra.mrb[0].mxu0 0.0
        %v2094 = vpop.f32.mrb[0].mxu0
        %v2095 = vadd.f32 0.0, %v2094
        %v2096 = vpop.f32.mrb[0].mxu0
        %2097 = vmatprep.mubr.f32.mxu0 0.0
        %2098 = vmatmul.mubr.f32.gmra.mrb[0].mxu0 0.0
        %v2099 = vpop.f32.mrb[0].mxu0
        %v2100 = vadd.f32 0.0, %v2099
        %v2101 = vpop.f32.mrb[0].mxu0
        %2102 = vdwg.mxu0
        %v2103 = vld [vmem:[#allocation3] sm:$0xff]
        %v2104 = vld [vmem:[#allocation3 + $0x8] sm:$0xff]
        %v2105 = vld [vmem:[#allocation3 + $0x10] sm:$0xff]
        %v2107 = vlaneseq
        %v2108 = vshrl.u32 %v2107, 7
        %v2109 = vsub.s32 0, %v2108
        %v2110 = vrot.slane %v1948, %v2109
        %v2111 = vlaneseq
        %v2112 = vshrl.u32 %v2111, 7
        %v2113 = vsub.s32 1, %v2112
        %v2114 = vrot.slane %v1948, %v2113
        %v2115 = vlaneseq
        %v2116 = vshrl.u32 %v2115, 7
        %v2117 = vsub.s32 2, %v2116
        %v2118 = vrot.slane %v1948, %v2117
        %v2122 = vadd.f32 %v2018, %v2110
        %v2123 = vadd.f32 %v2020, %v2114
        %v2124 = vadd.f32 %v2095, %v2118
        %v2125 = vadd.f32 %v2103, %v2122
        %v2126 = vxor.u32 %v2125, 2147483648
        %v2127 = vmul.f32 %v2126, 1.442695
        %v2128 = vpow.pop %v2127
        %v2129 = vadd.f32 %v2128, 1.0
        %v2130 = vrcp.pop %v2129
        %v2131 = vmul.f32 1.0, %v2130
        %v2132 = vadd.f32 %v2104, %v2123
        %v2133 = vxor.u32 %v2132, 2147483648
        %v2134 = vmul.f32 %v2133, 1.442695
        %v2135 = vpow.pop %v2134
        %v2136 = vadd.f32 %v2135, 1.0
        %v2137 = vrcp.pop %v2136
        %v2138 = vmul.f32 1.0, %v2137
        %v2139 = vmul.f32 %v2131, %v2124
        %v2140 = vadd.f32 %v2105, %v2139
        %v2141 = vtanh.pop %v2140
        %v2142 = vsub.f32 1.0, %v2138
        %v2143 = vmul.f32 %v2142, %v2141
        %v2144 = vmul.f32 %v2138, 0.0
        %v2145 = vadd.f32 %v2143, %v2144
        %s2146 = scalar_lea.vmem [#allocation4], 168
        %v2147 = vld [vmem:[%s2146] sm:$0xff]
        %v2148 = vld [vmem:[%s2146 + $0x8] sm:$0xff]
        %v2149 = vld [vmem:[%s2146 + $0x10] sm:$0xff]
        %v2151 = vlaneseq
        %v2152 = vshrl.u32 %v2151, 7
        %v2153 = vsub.s32 0, %v2152
        %v2154 = vrot.slane %v1950, %v2153
        %v2155 = vlaneseq
        %v2156 = vshrl.u32 %v2155, 7
        %v2157 = vsub.s32 1, %v2156
        %v2158 = vrot.slane %v1950, %v2157
        %v2159 = vlaneseq
        %v2160 = vshrl.u32 %v2159, 7
        %v2161 = vsub.s32 2, %v2160
        %v2162 = vrot.slane %v1950, %v2161
        %v2166 = vadd.f32 %v2024, %v2154
        %v2167 = vadd.f32 %v2026, %v2158
        %v2168 = vadd.f32 %v2100, %v2162
        %v2169 = vadd.f32 %v2147, %v2166
        %v2170 = vxor.u32 %v2169, 2147483648
        %v2171 = vmul.f32 %v2170, 1.442695
        %v2172 = vpow.pop %v2171
        %v2173 = vadd.f32 %v2172, 1.0
        %v2174 = vrcp.pop %v2173
        %v2175 = vmul.f32 1.0, %v2174
        %v2176 = vadd.f32 %v2148, %v2167
        %v2177 = vxor.u32 %v2176, 2147483648
        %v2178 = vmul.f32 %v2177, 1.442695
        %v2179 = vpow.pop %v2178
        %v2180 = vadd.f32 %v2179, 1.0
        %v2181 = vrcp.pop %v2180
        %v2182 = vmul.f32 1.0, %v2181
        %v2183 = vmul.f32 %v2175, %v2168
        %v2184 = vadd.f32 %v2149, %v2183
        %v2185 = vtanh.pop %v2184
        %v2186 = vsub.f32 1.0, %v2182
        %v2187 = vmul.f32 %v2186, %v2185
        %v2188 = vmul.f32 %v2182, 0.0
        %v2189 = vadd.f32 %v2187, %v2188
        %2190 = vst [vmem:[#allocation2] sm:$0xff] %v2145
        %s2191 = scalar_lea.vmem [#allocation2], 112
        %2192 = vst [vmem:[%s2191 + $0x8] sm:$0xff] %v2189
        %2193 = vmatprep.subr.mxu0 %v1853
        %2194 = vmatpush1.msra.mxu0 %v1852
        %2195 = vmatprep.subr.mxu0 %v1856
        %2196 = vmatpush1.msra.mxu0 %v1855
        %2197 = vmatprep.subr.mxu0 %v1859
        %2198 = vmatpush1.msra.mxu0 %v1858
        %2199 = vmatprep.subr.mxu0 %v1862
        %2200 = vmatpush1.msra.mxu0 %v1861
        %2201 = vmatprep.subr.mxu0 %v1865
        %2202 = vmatpush1.msra.mxu0 %v1864
        %2203 = vmatprep.subr.mxu0 %v1868
        %2204 = vmatpush1.msra.mxu0 %v1867
        %2205 = vmatprep.subr.mxu0 %v1871
        %2206 = vmatpush1.msra.mxu0 %v1870
        %2207 = vmatprep.subr.mxu0 %v1874
        %2208 = vmatpush1.msra.mxu0 %v1873
        %2209 = vmatprep.subr.mxu0 %v1877
        %2210 = vmatpush1.msra.mxu0 %v1876
        %2211 = vmatprep.subr.mxu0 %v1880
        %2212 = vmatpush1.msra.mxu0 %v1879
        %2213 = vmatprep.subr.mxu0 %v1883
        %2214 = vmatpush1.msra.mxu0 %v1882
        %2215 = vmatprep.subr.mxu0 %v1886
        %2216 = vmatpush1.msra.mxu0 %v1885
        %2217 = vmatprep.subr.mxu0 %v1889
        %2218 = vmatpush1.msra.mxu0 %v1888
        %2219 = vmatprep.subr.mxu0 %v1892
        %2220 = vmatpush1.msra.mxu0 %v1891
        %2221 = vmatprep.subr.mxu0 %v1895
        %2222 = vmatpush1.msra.mxu0 %v1894
        %2223 = vmatprep.subr.mxu0 %v1898
        %2224 = vmatpush1.msra.mxu0 %v1897
        %2225 = vmatprep.subr.mxu0 %v1901
        %2226 = vmatpush1.msra.mxu0 %v1900
        %2227 = vmatprep.subr.mxu0 %v1904
        %2228 = vmatpush1.msra.mxu0 %v1903
        %2229 = vmatprep.subr.mxu0 %v1907
        %2230 = vmatpush1.msra.mxu0 %v1906
        %2231 = vmatprep.subr.mxu0 %v1910
        %2232 = vmatpush1.msra.mxu0 %v1909
        %2233 = vmatprep.subr.mxu0 %v1913
        %2234 = vmatpush1.msra.mxu0 %v1912
        %2235 = vmatprep.subr.mxu0 %v1916
        %2236 = vmatpush1.msra.mxu0 %v1915
        %2237 = vmatprep.subr.mxu0 %v1919
        %2238 = vmatpush1.msra.mxu0 %v1918
        %2239 = vmatprep.subr.mxu0 %v1922
        %2240 = vmatpush1.msra.mxu0 %v1921
        %2241 = vmatprep.subr.mxu0 %v1925
        %2242 = vmatpush1.msra.mxu0 %v1924
        %2243 = vmatprep.subr.mxu0 %v1928
        %2244 = vmatpush1.msra.mxu0 %v1927
        %2245 = vmatprep.subr.mxu0 %v1931
        %2246 = vmatpush1.msra.mxu0 %v1930
        %2247 = vmatprep.subr.mxu0 %v1934
        %2248 = vmatpush1.msra.mxu0 %v1933
        %2249 = vmatprep.subr.mxu0 %v1937
        %2250 = vmatpush1.msra.mxu0 %v1936
        %2251 = vmatprep.subr.mxu0 %v1940
        %2252 = vmatpush1.msra.mxu0 %v1939
        %2253 = vmatprep.subr.mxu0 %v1943
        %2254 = vmatpush1.msra.mxu0 %v1942
        %2255 = vmatprep.subr.mxu0 %v1946
        %2256 = vmatpush1.msra.mxu0 %v1945
        %2257 = vmatprep.mubr.f32.mxu0 0.0
        %2258 = vmatmul.mubr.f32.gmra.mrb[0].mxu0 %v2145
        %v2259 = vpop.f32.mrb[0].mxu0
        %v2260 = vadd.f32 0.0, %v2259
        %v2261 = vpop.f32.mrb[0].mxu0
        %v2262 = vadd.f32 0.0, %v2261
        %2263 = vmatprep.mubr.f32.mxu0 %v2189
        %2264 = vmatmul.mubr.f32.gmra.mrb[0].mxu0 0.0
        %v2265 = vpop.f32.mrb[0].mxu0
        %v2266 = vadd.f32 0.0, %v2265
        %v2267 = vpop.f32.mrb[0].mxu0
        %v2268 = vadd.f32 0.0, %v2267
        %2269 = vdwg.mxu0
        %2270 = vmatprep.subr.mxu0 0.0
        %2271 = vmatpush1.msra.mxu0 %v1854
        %2272 = vmatprep.subr.mxu0 0.0
        %2273 = vmatpush1.msra.mxu0 %v1857
        %2274 = vmatprep.subr.mxu0 0.0
        %2275 = vmatpush1.msra.mxu0 %v1860
        %2276 = vmatprep.subr.mxu0 0.0
        %2277 = vmatpush1.msra.mxu0 %v1863
        %2278 = vmatprep.subr.mxu0 0.0
        %2279 = vmatpush1.msra.mxu0 %v1866
        %2280 = vmatprep.subr.mxu0 0.0
        %2281 = vmatpush1.msra.mxu0 %v1869
        %2282 = vmatprep.subr.mxu0 0.0
        %2283 = vmatpush1.msra.mxu0 %v1872
        %2284 = vmatprep.subr.mxu0 0.0
        %2285 = vmatpush1.msra.mxu0 %v1875
        %2286 = vmatprep.subr.mxu0 0.0
        %2287 = vmatpush1.msra.mxu0 %v1878
        %2288 = vmatprep.subr.mxu0 0.0
        %2289 = vmatpush1.msra.mxu0 %v1881
        %2290 = vmatprep.subr.mxu0 0.0
        %2291 = vmatpush1.msra.mxu0 %v1884
        %2292 = vmatprep.subr.mxu0 0.0
        %2293 = vmatpush1.msra.mxu0 %v1887
        %2294 = vmatprep.subr.mxu0 0.0
        %2295 = vmatpush1.msra.mxu0 %v1890
        %2296 = vmatprep.subr.mxu0 0.0
        %2297 = vmatpush1.msra.mxu0 %v1893
        %2298 = vmatprep.subr.mxu0 0.0
        %2299 = vmatpush1.msra.mxu0 %v1896
        %2300 = vmatprep.subr.mxu0 0.0
        %2301 = vmatpush1.msra.mxu0 %v1899
        %2302 = vmatprep.subr.mxu0 0.0
        %2303 = vmatpush1.msra.mxu0 %v1902
        %2304 = vmatprep.subr.mxu0 0.0
        %2305 = vmatpush1.msra.mxu0 %v1905
        %2306 = vmatprep.subr.mxu0 0.0
        %2307 = vmatpush1.msra.mxu0 %v1908
        %2308 = vmatprep.subr.mxu0 0.0
        %2309 = vmatpush1.msra.mxu0 %v1911
        %2310 = vmatprep.subr.mxu0 0.0
        %2311 = vmatpush1.msra.mxu0 %v1914
        %2312 = vmatprep.subr.mxu0 0.0
        %2313 = vmatpush1.msra.mxu0 %v1917
        %2314 = vmatprep.subr.mxu0 0.0
        %2315 = vmatpush1.msra.mxu0 %v1920
        %2316 = vmatprep.subr.mxu0 0.0
        %2317 = vmatpush1.msra.mxu0 %v1923
        %2318 = vmatprep.subr.mxu0 0.0
        %2319 = vmatpush1.msra.mxu0 %v1926
        %2320 = vmatprep.subr.mxu0 0.0
        %2321 = vmatpush1.msra.mxu0 %v1929
        %2322 = vmatprep.subr.mxu0 0.0
        %2323 = vmatpush1.msra.mxu0 %v1932
        %2324 = vmatprep.subr.mxu0 0.0
        %2325 = vmatpush1.msra.mxu0 %v1935
        %2326 = vmatprep.subr.mxu0 0.0
        %2327 = vmatpush1.msra.mxu0 %v1938
        %2328 = vmatprep.subr.mxu0 0.0
        %2329 = vmatpush1.msra.mxu0 %v1941
        %2330 = vmatprep.subr.mxu0 0.0
        %2331 = vmatpush1.msra.mxu0 %v1944
        %2332 = vmatprep.subr.mxu0 0.0
        %2333 = vmatpush1.msra.mxu0 %v1947
        %2334 = vmatprep.mubr.f32.mxu0 0.0
        %2335 = vmatmul.mubr.f32.gmra.mrb[0].mxu0 %v2145
        %v2336 = vpop.f32.mrb[0].mxu0
        %v2337 = vadd.f32 0.0, %v2336
        %v2338 = vpop.f32.mrb[0].mxu0
        %2339 = vmatprep.mubr.f32.mxu0 %v2189
        %2340 = vmatmul.mubr.f32.gmra.mrb[0].mxu0 0.0
        %v2341 = vpop.f32.mrb[0].mxu0
        %v2342 = vadd.f32 0.0, %v2341
        %v2343 = vpop.f32.mrb[0].mxu0
        %2344 = vdwg.mxu0
        %s2345 = scalar_lea.vmem [#allocation3], 24
        %v2346 = vld [vmem:[%s2345] sm:$0xff]
        %v2347 = vld [vmem:[%s2345 + $0x8] sm:$0xff]
        %v2348 = vld [vmem:[%s2345 + $0x10] sm:$0xff]
        %v2349 = vadd.f32 %v2260, %v2110
        %v2350 = vadd.f32 %v2262, %v2114
        %v2351 = vadd.f32 %v2337, %v2118
        %v2352 = vadd.f32 %v2346, %v2349
        %v2353 = vxor.u32 %v2352, 2147483648
        %v2354 = vmul.f32 %v2353, 1.442695
        %v2355 = vpow.pop %v2354
        %v2356 = vadd.f32 %v2355, 1.0
        %v2357 = vrcp.pop %v2356
        %v2358 = vmul.f32 1.0, %v2357
        %v2359 = vadd.f32 %v2347, %v2350
        %v2360 = vxor.u32 %v2359, 2147483648
        %v2361 = vmul.f32 %v2360, 1.442695
        %v2362 = vpow.pop %v2361
        %v2363 = vadd.f32 %v2362, 1.0
        %v2364 = vrcp.pop %v2363
        %v2365 = vmul.f32 1.0, %v2364
        %v2366 = vmul.f32 %v2358, %v2351
        %v2367 = vadd.f32 %v2348, %v2366
        %v2368 = vtanh.pop %v2367
        %v2369 = vsub.f32 1.0, %v2365
        %v2370 = vmul.f32 %v2369, %v2368
        %v2371 = vmul.f32 %v2365, %v2145
        %v2372 = vadd.f32 %v2370, %v2371
        %s2373 = scalar_lea.vmem [#allocation4], 144
        %v2374 = vld [vmem:[%s2373] sm:$0xff]
        %v2375 = vld [vmem:[%s2373 + $0x8] sm:$0xff]
        %v2376 = vld [vmem:[%s2373 + $0x10] sm:$0xff]
        %v2377 = vadd.f32 %v2266, %v2154
        %v2378 = vadd.f32 %v2268, %v2158
        %v2379 = vadd.f32 %v2342, %v2162
        %v2380 = vadd.f32 %v2374, %v2377
        %v2381 = vxor.u32 %v2380, 2147483648
        %v2382 = vmul.f32 %v2381, 1.442695
        %v2383 = vpow.pop %v2382
        %v2384 = vadd.f32 %v2383, 1.0
        %v2385 = vrcp.pop %v2384
        %v2386 = vmul.f32 1.0, %v2385
        %v2387 = vadd.f32 %v2375, %v2378
        %v2388 = vxor.u32 %v2387, 2147483648
        %v2389 = vmul.f32 %v2388, 1.442695
        %v2390 = vpow.pop %v2389
        %v2391 = vadd.f32 %v2390, 1.0
        %v2392 = vrcp.pop %v2391
        %v2393 = vmul.f32 1.0, %v2392
        %v2394 = vmul.f32 %v2386, %v2379
        %v2395 = vadd.f32 %v2376, %v2394
        %v2396 = vtanh.pop %v2395
        %v2397 = vsub.f32 1.0, %v2393
        %v2398 = vmul.f32 %v2397, %v2396
        %v2399 = vmul.f32 %v2393, %v2189
        %v2400 = vadd.f32 %v2398, %v2399
        %s2401 = scalar_lea.vmem [#allocation2], 16
        %2402 = vst [vmem:[%s2401] sm:$0xff] %v2372
        %s2403 = scalar_lea.vmem [#allocation2], 96
        %2404 = vst [vmem:[%s2403 + $0x8] sm:$0xff] %v2400
        %v2405 = vmax.f32 %v2145, %v2372
        %v2406 = vmax.f32 %v2189, %v2400
        %2407 = vmatprep.subr.mxu0 %v1853
        %2408 = vmatpush1.msra.mxu0 %v1852
        %2409 = vmatprep.subr.mxu0 %v1856
        %2410 = vmatpush1.msra.mxu0 %v1855
        %2411 = vmatprep.subr.mxu0 %v1859
        %2412 = vmatpush1.msra.mxu0 %v1858
        %2413 = vmatprep.subr.mxu0 %v1862
        %2414 = vmatpush1.msra.mxu0 %v1861
        %2415 = vmatprep.subr.mxu0 %v1865
        %2416 = vmatpush1.msra.mxu0 %v1864
        %2417 = vmatprep.subr.mxu0 %v1868
        %2418 = vmatpush1.msra.mxu0 %v1867
        %2419 = vmatprep.subr.mxu0 %v1871
        %2420 = vmatpush1.msra.mxu0 %v1870
        %2421 = vmatprep.subr.mxu0 %v1874
        %2422 = vmatpush1.msra.mxu0 %v1873
        %2423 = vmatprep.subr.mxu0 %v1877
        %2424 = vmatpush1.msra.mxu0 %v1876
        %2425 = vmatprep.subr.mxu0 %v1880
        %2426 = vmatpush1.msra.mxu0 %v1879
        %2427 = vmatprep.subr.mxu0 %v1883
        %2428 = vmatpush1.msra.mxu0 %v1882
        %2429 = vmatprep.subr.mxu0 %v1886
        %2430 = vmatpush1.msra.mxu0 %v1885
        %2431 = vmatprep.subr.mxu0 %v1889
        %2432 = vmatpush1.msra.mxu0 %v1888
        %2433 = vmatprep.subr.mxu0 %v1892
        %2434 = vmatpush1.msra.mxu0 %v1891
        %2435 = vmatprep.subr.mxu0 %v1895
        %2436 = vmatpush1.msra.mxu0 %v1894
        %2437 = vmatprep.subr.mxu0 %v1898
        %2438 = vmatpush1.msra.mxu0 %v1897
        %2439 = vmatprep.subr.mxu0 %v1901
        %2440 = vmatpush1.msra.mxu0 %v1900
        %2441 = vmatprep.subr.mxu0 %v1904
        %2442 = vmatpush1.msra.mxu0 %v1903
        %2443 = vmatprep.subr.mxu0 %v1907
        %2444 = vmatpush1.msra.mxu0 %v1906
        %2445 = vmatprep.subr.mxu0 %v1910
        %2446 = vmatpush1.msra.mxu0 %v1909
        %2447 = vmatprep.subr.mxu0 %v1913
        %2448 = vmatpush1.msra.mxu0 %v1912
        %2449 = vmatprep.subr.mxu0 %v1916
        %2450 = vmatpush1.msra.mxu0 %v1915
        %2451 = vmatprep.subr.mxu0 %v1919
        %2452 = vmatpush1.msra.mxu0 %v1918
        %2453 = vmatprep.subr.mxu0 %v1922
        %2454 = vmatpush1.msra.mxu0 %v1921
        %2455 = vmatprep.subr.mxu0 %v1925
        %2456 = vmatpush1.msra.mxu0 %v1924
        %2457 = vmatprep.subr.mxu0 %v1928
        %2458 = vmatpush1.msra.mxu0 %v1927
        %2459 = vmatprep.subr.mxu0 %v1931
        %2460 = vmatpush1.msra.mxu0 %v1930
        %2461 = vmatprep.subr.mxu0 %v1934
        %2462 = vmatpush1.msra.mxu0 %v1933
        %2463 = vmatprep.subr.mxu0 %v1937
        %2464 = vmatpush1.msra.mxu0 %v1936
        %2465 = vmatprep.subr.mxu0 %v1940
        %2466 = vmatpush1.msra.mxu0 %v1939
        %2467 = vmatprep.subr.mxu0 %v1943
        %2468 = vmatpush1.msra.mxu0 %v1942
        %2469 = vmatprep.subr.mxu0 %v1946
        %2470 = vmatpush1.msra.mxu0 %v1945
        %2471 = vmatprep.mubr.f32.mxu0 0.0
        %2472 = vmatmul.mubr.f32.gmra.mrb[0].mxu0 %v2372
        %v2473 = vpop.f32.mrb[0].mxu0
        %v2474 = vadd.f32 0.0, %v2473
        %v2475 = vpop.f32.mrb[0].mxu0
        %v2476 = vadd.f32 0.0, %v2475
        %2477 = vmatprep.mubr.f32.mxu0 %v2400
        %2478 = vmatmul.mubr.f32.gmra.mrb[0].mxu0 0.0
        %v2479 = vpop.f32.mrb[0].mxu0
        %v2480 = vadd.f32 0.0, %v2479
        %v2481 = vpop.f32.mrb[0].mxu0
        %v2482 = vadd.f32 0.0, %v2481
        %2483 = vdwg.mxu0
        %2484 = vmatprep.subr.mxu0 0.0
        %2485 = vmatpush1.msra.mxu0 %v1854
        %2486 = vmatprep.subr.mxu0 0.0
        %2487 = vmatpush1.msra.mxu0 %v1857
        %2488 = vmatprep.subr.mxu0 0.0
        %2489 = vmatpush1.msra.mxu0 %v1860
        %2490 = vmatprep.subr.mxu0 0.0
        %2491 = vmatpush1.msra.mxu0 %v1863
        %2492 = vmatprep.subr.mxu0 0.0
        %2493 = vmatpush1.msra.mxu0 %v1866
        %2494 = vmatprep.subr.mxu0 0.0
        %2495 = vmatpush1.msra.mxu0 %v1869
        %2496 = vmatprep.subr.mxu0 0.0
        %2497 = vmatpush1.msra.mxu0 %v1872
        %2498 = vmatprep.subr.mxu0 0.0
        %2499 = vmatpush1.msra.mxu0 %v1875
        %2500 = vmatprep.subr.mxu0 0.0
        %2501 = vmatpush1.msra.mxu0 %v1878
        %2502 = vmatprep.subr.mxu0 0.0
        %2503 = vmatpush1.msra.mxu0 %v1881
        %2504 = vmatprep.subr.mxu0 0.0
        %2505 = vmatpush1.msra.mxu0 %v1884
        %2506 = vmatprep.subr.mxu0 0.0
        %2507 = vmatpush1.msra.mxu0 %v1887
        %2508 = vmatprep.subr.mxu0 0.0
        %2509 = vmatpush1.msra.mxu0 %v1890
        %2510 = vmatprep.subr.mxu0 0.0
        %2511 = vmatpush1.msra.mxu0 %v1893
        %2512 = vmatprep.subr.mxu0 0.0
        %2513 = vmatpush1.msra.mxu0 %v1896
        %2514 = vmatprep.subr.mxu0 0.0
        %2515 = vmatpush1.msra.mxu0 %v1899
        %2516 = vmatprep.subr.mxu0 0.0
        %2517 = vmatpush1.msra.mxu0 %v1902
        %2518 = vmatprep.subr.mxu0 0.0
        %2519 = vmatpush1.msra.mxu0 %v1905
        %2520 = vmatprep.subr.mxu0 0.0
        %2521 = vmatpush1.msra.mxu0 %v1908
        %2522 = vmatprep.subr.mxu0 0.0
        %2523 = vmatpush1.msra.mxu0 %v1911
        %2524 = vmatprep.subr.mxu0 0.0
        %2525 = vmatpush1.msra.mxu0 %v1914
        %2526 = vmatprep.subr.mxu0 0.0
        %2527 = vmatpush1.msra.mxu0 %v1917
        %2528 = vmatprep.subr.mxu0 0.0
        %2529 = vmatpush1.msra.mxu0 %v1920
        %2530 = vmatprep.subr.mxu0 0.0
        %2531 = vmatpush1.msra.mxu0 %v1923
        %2532 = vmatprep.subr.mxu0 0.0
        %2533 = vmatpush1.msra.mxu0 %v1926
        %2534 = vmatprep.subr.mxu0 0.0
        %2535 = vmatpush1.msra.mxu0 %v1929
        %2536 = vmatprep.subr.mxu0 0.0
        %2537 = vmatpush1.msra.mxu0 %v1932
        %2538 = vmatprep.subr.mxu0 0.0
        %2539 = vmatpush1.msra.mxu0 %v1935
        %2540 = vmatprep.subr.mxu0 0.0
        %2541 = vmatpush1.msra.mxu0 %v1938
        %2542 = vmatprep.subr.mxu0 0.0
        %2543 = vmatpush1.msra.mxu0 %v1941
        %2544 = vmatprep.subr.mxu0 0.0
        %2545 = vmatpush1.msra.mxu0 %v1944
        %2546 = vmatprep.subr.mxu0 0.0
        %2547 = vmatpush1.msra.mxu0 %v1947
        %2548 = vmatprep.mubr.f32.mxu0 0.0
        %2549 = vmatmul.mubr.f32.gmra.mrb[0].mxu0 %v2372
        %v2550 = vpop.f32.mrb[0].mxu0
        %v2551 = vadd.f32 0.0, %v2550
        %v2552 = vpop.f32.mrb[0].mxu0
        %2553 = vmatprep.mubr.f32.mxu0 %v2400
        %2554 = vmatmul.mubr.f32.gmra.mrb[0].mxu0 0.0
        %v2555 = vpop.f32.mrb[0].mxu0
        %v2556 = vadd.f32 0.0, %v2555
        %v2557 = vpop.f32.mrb[0].mxu0
        %2558 = vdwg.mxu0
        %s2559 = scalar_lea.vmem [#allocation3], 48
        %v2560 = vld [vmem:[%s2559] sm:$0xff]
        %v2561 = vld [vmem:[%s2559 + $0x8] sm:$0xff]
        %v2562 = vld [vmem:[%s2559 + $0x10] sm:$0xff]
        %v2563 = vadd.f32 %v2474, %v2110
        %v2564 = vadd.f32 %v2476, %v2114
        %v2565 = vadd.f32 %v2551, %v2118
        %v2566 = vadd.f32 %v2560, %v2563
        %v2567 = vxor.u32 %v2566, 2147483648
        %v2568 = vmul.f32 %v2567, 1.442695
        %v2569 = vpow.pop %v2568
        %v2570 = vadd.f32 %v2569, 1.0
        %v2571 = vrcp.pop %v2570
        %v2572 = vmul.f32 1.0, %v2571
        %v2573 = vadd.f32 %v2561, %v2564
        %v2574 = vxor.u32 %v2573, 2147483648
        %v2575 = vmul.f32 %v2574, 1.442695
        %v2576 = vpow.pop %v2575
        %v2577 = vadd.f32 %v2576, 1.0
        %v2578 = vrcp.pop %v2577
        %v2579 = vmul.f32 1.0, %v2578
        %v2580 = vmul.f32 %v2572, %v2565
        %v2581 = vadd.f32 %v2562, %v2580
        %v2582 = vtanh.pop %v2581
        %v2583 = vsub.f32 1.0, %v2579
        %v2584 = vmul.f32 %v2583, %v2582
        %v2585 = vmul.f32 %v2579, %v2372
        %v2586 = vadd.f32 %v2584, %v2585
        %s2587 = scalar_lea.vmem [#allocation4], 120
        %v2588 = vld [vmem:[%s2587] sm:$0xff]
        %v2589 = vld [vmem:[%s2587 + $0x8] sm:$0xff]
        %v2590 = vld [vmem:[%s2587 + $0x10] sm:$0xff]
        %v2591 = vadd.f32 %v2480, %v2154
        %v2592 = vadd.f32 %v2482, %v2158
        %v2593 = vadd.f32 %v2556, %v2162
        %v2594 = vadd.f32 %v2588, %v2591
        %v2595 = vxor.u32 %v2594, 2147483648
        %v2596 = vmul.f32 %v2595, 1.442695
        %v2597 = vpow.pop %v2596
        %v2598 = vadd.f32 %v2597, 1.0
        %v2599 = vrcp.pop %v2598
        %v2600 = vmul.f32 1.0, %v2599
        %v2601 = vadd.f32 %v2589, %v2592
        %v2602 = vxor.u32 %v2601, 2147483648
        %v2603 = vmul.f32 %v2602, 1.442695
        %v2604 = vpow.pop %v2603
        %v2605 = vadd.f32 %v2604, 1.0
        %v2606 = vrcp.pop %v2605
        %v2607 = vmul.f32 1.0, %v2606
        %v2608 = vmul.f32 %v2600, %v2593
        %v2609 = vadd.f32 %v2590, %v2608
        %v2610 = vtanh.pop %v2609
        %v2611 = vsub.f32 1.0, %v2607
        %v2612 = vmul.f32 %v2611, %v2610
        %v2613 = vmul.f32 %v2607, %v2400
        %v2614 = vadd.f32 %v2612, %v2613
        %s2615 = scalar_lea.vmem [#allocation2], 32
        %2616 = vst [vmem:[%s2615] sm:$0xff] %v2586
        %s2617 = scalar_lea.vmem [#allocation2], 80
        %2618 = vst [vmem:[%s2617 + $0x8] sm:$0xff] %v2614
        %v2619 = vmax.f32 %v2405, %v2586
        %v2620 = vmax.f32 %v2406, %v2614
        %2621 = vmatprep.subr.mxu0 %v1853
        %2622 = vmatpush1.msra.mxu0 %v1852
        %2623 = vmatprep.subr.mxu0 %v1856
        %2624 = vmatpush1.msra.mxu0 %v1855
        %2625 = vmatprep.subr.mxu0 %v1859
        %2626 = vmatpush1.msra.mxu0 %v1858
        %2627 = vmatprep.subr.mxu0 %v1862
        %2628 = vmatpush1.msra.mxu0 %v1861
        %2629 = vmatprep.subr.mxu0 %v1865
        %2630 = vmatpush1.msra.mxu0 %v1864
        %2631 = vmatprep.subr.mxu0 %v1868
        %2632 = vmatpush1.msra.mxu0 %v1867
        %2633 = vmatprep.subr.mxu0 %v1871
        %2634 = vmatpush1.msra.mxu0 %v1870
        %2635 = vmatprep.subr.mxu0 %v1874
        %2636 = vmatpush1.msra.mxu0 %v1873
        %2637 = vmatprep.subr.mxu0 %v1877
        %2638 = vmatpush1.msra.mxu0 %v1876
        %2639 = vmatprep.subr.mxu0 %v1880
        %2640 = vmatpush1.msra.mxu0 %v1879
        %2641 = vmatprep.subr.mxu0 %v1883
        %2642 = vmatpush1.msra.mxu0 %v1882
        %2643 = vmatprep.subr.mxu0 %v1886
        %2644 = vmatpush1.msra.mxu0 %v1885
        %2645 = vmatprep.subr.mxu0 %v1889
        %2646 = vmatpush1.msra.mxu0 %v1888
        %2647 = vmatprep.subr.mxu0 %v1892
        %2648 = vmatpush1.msra.mxu0 %v1891
        %2649 = vmatprep.subr.mxu0 %v1895
        %2650 = vmatpush1.msra.mxu0 %v1894
        %2651 = vmatprep.subr.mxu0 %v1898
        %2652 = vmatpush1.msra.mxu0 %v1897
        %2653 = vmatprep.subr.mxu0 %v1901
        %2654 = vmatpush1.msra.mxu0 %v1900
        %2655 = vmatprep.subr.mxu0 %v1904
        %2656 = vmatpush1.msra.mxu0 %v1903
        %2657 = vmatprep.subr.mxu0 %v1907
        %2658 = vmatpush1.msra.mxu0 %v1906
        %2659 = vmatprep.subr.mxu0 %v1910
        %2660 = vmatpush1.msra.mxu0 %v1909
        %2661 = vmatprep.subr.mxu0 %v1913
        %2662 = vmatpush1.msra.mxu0 %v1912
        %2663 = vmatprep.subr.mxu0 %v1916
        %2664 = vmatpush1.msra.mxu0 %v1915
        %2665 = vmatprep.subr.mxu0 %v1919
        %2666 = vmatpush1.msra.mxu0 %v1918
        %2667 = vmatprep.subr.mxu0 %v1922
        %2668 = vmatpush1.msra.mxu0 %v1921
        %2669 = vmatprep.subr.mxu0 %v1925
        %2670 = vmatpush1.msra.mxu0 %v1924
        %2671 = vmatprep.subr.mxu0 %v1928
        %2672 = vmatpush1.msra.mxu0 %v1927
        %2673 = vmatprep.subr.mxu0 %v1931
        %2674 = vmatpush1.msra.mxu0 %v1930
        %2675 = vmatprep.subr.mxu0 %v1934
        %2676 = vmatpush1.msra.mxu0 %v1933
        %2677 = vmatprep.subr.mxu0 %v1937
        %2678 = vmatpush1.msra.mxu0 %v1936
        %2679 = vmatprep.subr.mxu0 %v1940
        %2680 = vmatpush1.msra.mxu0 %v1939
        %2681 = vmatprep.subr.mxu0 %v1943
        %2682 = vmatpush1.msra.mxu0 %v1942
        %2683 = vmatprep.subr.mxu0 %v1946
        %2684 = vmatpush1.msra.mxu0 %v1945
        %2685 = vmatprep.mubr.f32.mxu0 0.0
        %2686 = vmatmul.mubr.f32.gmra.mrb[0].mxu0 %v2586
        %v2687 = vpop.f32.mrb[0].mxu0
        %v2688 = vadd.f32 0.0, %v2687
        %v2689 = vpop.f32.mrb[0].mxu0
        %v2690 = vadd.f32 0.0, %v2689
        %2691 = vmatprep.mubr.f32.mxu0 %v2614
        %2692 = vmatmul.mubr.f32.gmra.mrb[0].mxu0 0.0
        %v2693 = vpop.f32.mrb[0].mxu0
        %v2694 = vadd.f32 0.0, %v2693
        %v2695 = vpop.f32.mrb[0].mxu0
        %v2696 = vadd.f32 0.0, %v2695
        %2697 = vdwg.mxu0
        %2698 = vmatprep.subr.mxu0 0.0
        %2699 = vmatpush1.msra.mxu0 %v1854
        %2700 = vmatprep.subr.mxu0 0.0
        %2701 = vmatpush1.msra.mxu0 %v1857
        %2702 = vmatprep.subr.mxu0 0.0
        %2703 = vmatpush1.msra.mxu0 %v1860
        %2704 = vmatprep.subr.mxu0 0.0
        %2705 = vmatpush1.msra.mxu0 %v1863
        %2706 = vmatprep.subr.mxu0 0.0
        %2707 = vmatpush1.msra.mxu0 %v1866
        %2708 = vmatprep.subr.mxu0 0.0
        %2709 = vmatpush1.msra.mxu0 %v1869
        %2710 = vmatprep.subr.mxu0 0.0
        %2711 = vmatpush1.msra.mxu0 %v1872
        %2712 = vmatprep.subr.mxu0 0.0
        %2713 = vmatpush1.msra.mxu0 %v1875
        %2714 = vmatprep.subr.mxu0 0.0
        %2715 = vmatpush1.msra.mxu0 %v1878
        %2716 = vmatprep.subr.mxu0 0.0
        %2717 = vmatpush1.msra.mxu0 %v1881
        %2718 = vmatprep.subr.mxu0 0.0
        %2719 = vmatpush1.msra.mxu0 %v1884
        %2720 = vmatprep.subr.mxu0 0.0
        %2721 = vmatpush1.msra.mxu0 %v1887
        %2722 = vmatprep.subr.mxu0 0.0
        %2723 = vmatpush1.msra.mxu0 %v1890
        %2724 = vmatprep.subr.mxu0 0.0
        %2725 = vmatpush1.msra.mxu0 %v1893
        %2726 = vmatprep.subr.mxu0 0.0
        %2727 = vmatpush1.msra.mxu0 %v1896
        %2728 = vmatprep.subr.mxu0 0.0
        %2729 = vmatpush1.msra.mxu0 %v1899
        %2730 = vmatprep.subr.mxu0 0.0
        %2731 = vmatpush1.msra.mxu0 %v1902
        %2732 = vmatprep.subr.mxu0 0.0
        %2733 = vmatpush1.msra.mxu0 %v1905
        %2734 = vmatprep.subr.mxu0 0.0
        %2735 = vmatpush1.msra.mxu0 %v1908
        %2736 = vmatprep.subr.mxu0 0.0
        %2737 = vmatpush1.msra.mxu0 %v1911
        %2738 = vmatprep.subr.mxu0 0.0
        %2739 = vmatpush1.msra.mxu0 %v1914
        %2740 = vmatprep.subr.mxu0 0.0
        %2741 = vmatpush1.msra.mxu0 %v1917
        %2742 = vmatprep.subr.mxu0 0.0
        %2743 = vmatpush1.msra.mxu0 %v1920
        %2744 = vmatprep.subr.mxu0 0.0
        %2745 = vmatpush1.msra.mxu0 %v1923
        %2746 = vmatprep.subr.mxu0 0.0
        %2747 = vmatpush1.msra.mxu0 %v1926
        %2748 = vmatprep.subr.mxu0 0.0
        %2749 = vmatpush1.msra.mxu0 %v1929
        %2750 = vmatprep.subr.mxu0 0.0
        %2751 = vmatpush1.msra.mxu0 %v1932
        %2752 = vmatprep.subr.mxu0 0.0
        %2753 = vmatpush1.msra.mxu0 %v1935
        %2754 = vmatprep.subr.mxu0 0.0
        %2755 = vmatpush1.msra.mxu0 %v1938
        %2756 = vmatprep.subr.mxu0 0.0
        %2757 = vmatpush1.msra.mxu0 %v1941
        %2758 = vmatprep.subr.mxu0 0.0
        %2759 = vmatpush1.msra.mxu0 %v1944
        %2760 = vmatprep.subr.mxu0 0.0
        %2761 = vmatpush1.msra.mxu0 %v1947
        %2762 = vmatprep.mubr.f32.mxu0 0.0
        %2763 = vmatmul.mubr.f32.gmra.mrb[0].mxu0 %v2586
        %v2764 = vpop.f32.mrb[0].mxu0
        %v2765 = vadd.f32 0.0, %v2764
        %v2766 = vpop.f32.mrb[0].mxu0
        %2767 = vmatprep.mubr.f32.mxu0 %v2614
        %2768 = vmatmul.mubr.f32.gmra.mrb[0].mxu0 0.0
        %v2769 = vpop.f32.mrb[0].mxu0
        %v2770 = vadd.f32 0.0, %v2769
        %v2771 = vpop.f32.mrb[0].mxu0
        %2772 = vdwg.mxu0
        %s2773 = scalar_lea.vmem [#allocation3], 72
        %v2774 = vld [vmem:[%s2773] sm:$0xff]
        %v2775 = vld [vmem:[%s2773 + $0x8] sm:$0xff]
        %v2776 = vld [vmem:[%s2773 + $0x10] sm:$0xff]
        %v2777 = vadd.f32 %v2688, %v2110
        %v2778 = vadd.f32 %v2690, %v2114
        %v2779 = vadd.f32 %v2765, %v2118
        %v2780 = vadd.f32 %v2774, %v2777
        %v2781 = vxor.u32 %v2780, 2147483648
        %v2782 = vmul.f32 %v2781, 1.442695
        %v2783 = vpow.pop %v2782
        %v2784 = vadd.f32 %v2783, 1.0
        %v2785 = vrcp.pop %v2784
        %v2786 = vmul.f32 1.0, %v2785
        %v2787 = vadd.f32 %v2775, %v2778
        %v2788 = vxor.u32 %v2787, 2147483648
        %v2789 = vmul.f32 %v2788, 1.442695
        %v2790 = vpow.pop %v2789
        %v2791 = vadd.f32 %v2790, 1.0
        %v2792 = vrcp.pop %v2791
        %v2793 = vmul.f32 1.0, %v2792
        %v2794 = vmul.f32 %v2786, %v2779
        %v2795 = vadd.f32 %v2776, %v2794
        %v2796 = vtanh.pop %v2795
        %v2797 = vsub.f32 1.0, %v2793
        %v2798 = vmul.f32 %v2797, %v2796
        %v2799 = vmul.f32 %v2793, %v2586
        %v2800 = vadd.f32 %v2798, %v2799
        %s2801 = scalar_lea.vmem [#allocation4], 96
        %v2802 = vld [vmem:[%s2801] sm:$0xff]
        %v2803 = vld [vmem:[%s2801 + $0x8] sm:$0xff]
        %v2804 = vld [vmem:[%s2801 + $0x10] sm:$0xff]
        %v2805 = vadd.f32 %v2694, %v2154
        %v2806 = vadd.f32 %v2696, %v2158
        %v2807 = vadd.f32 %v2770, %v2162
        %v2808 = vadd.f32 %v2802, %v2805
        %v2809 = vxor.u32 %v2808, 2147483648
        %v2810 = vmul.f32 %v2809, 1.442695
        %v2811 = vpow.pop %v2810
        %v2812 = vadd.f32 %v2811, 1.0
        %v2813 = vrcp.pop %v2812
        %v2814 = vmul.f32 1.0, %v2813
        %v2815 = vadd.f32 %v2803, %v2806
        %v2816 = vxor.u32 %v2815, 2147483648
        %v2817 = vmul.f32 %v2816, 1.442695
        %v2818 = vpow.pop %v2817
        %v2819 = vadd.f32 %v2818, 1.0
        %v2820 = vrcp.pop %v2819
        %v2821 = vmul.f32 1.0, %v2820
        %v2822 = vmul.f32 %v2814, %v2807
        %v2823 = vadd.f32 %v2804, %v2822
        %v2824 = vtanh.pop %v2823
        %v2825 = vsub.f32 1.0, %v2821
        %v2826 = vmul.f32 %v2825, %v2824
        %v2827 = vmul.f32 %v2821, %v2614
        %v2828 = vadd.f32 %v2826, %v2827
        %s2829 = scalar_lea.vmem [#allocation2], 48
        %2830 = vst [vmem:[%s2829] sm:$0xff] %v2800
        %s2831 = scalar_lea.vmem [#allocation2], 64
        %2832 = vst [vmem:[%s2831 + $0x8] sm:$0xff] %v2828
        %v2833 = vmax.f32 %v2619, %v2800
        %v2834 = vmax.f32 %v2620, %v2828
        %2835 = vmatprep.subr.mxu0 %v1853
        %2836 = vmatpush1.msra.mxu0 %v1852
        %2837 = vmatprep.subr.mxu0 %v1856
        %2838 = vmatpush1.msra.mxu0 %v1855
        %2839 = vmatprep.subr.mxu0 %v1859
        %2840 = vmatpush1.msra.mxu0 %v1858
        %2841 = vmatprep.subr.mxu0 %v1862
        %2842 = vmatpush1.msra.mxu0 %v1861
        %2843 = vmatprep.subr.mxu0 %v1865
        %2844 = vmatpush1.msra.mxu0 %v1864
        %2845 = vmatprep.subr.mxu0 %v1868
        %2846 = vmatpush1.msra.mxu0 %v1867
        %2847 = vmatprep.subr.mxu0 %v1871
        %2848 = vmatpush1.msra.mxu0 %v1870
        %2849 = vmatprep.subr.mxu0 %v1874
        %2850 = vmatpush1.msra.mxu0 %v1873
        %2851 = vmatprep.subr.mxu0 %v1877
        %2852 = vmatpush1.msra.mxu0 %v1876
        %2853 = vmatprep.subr.mxu0 %v1880
        %2854 = vmatpush1.msra.mxu0 %v1879
        %2855 = vmatprep.subr.mxu0 %v1883
        %2856 = vmatpush1.msra.mxu0 %v1882
        %2857 = vmatprep.subr.mxu0 %v1886
        %2858 = vmatpush1.msra.mxu0 %v1885
        %2859 = vmatprep.subr.mxu0 %v1889
        %2860 = vmatpush1.msra.mxu0 %v1888
        %2861 = vmatprep.subr.mxu0 %v1892
        %2862 = vmatpush1.msra.mxu0 %v1891
        %2863 = vmatprep.subr.mxu0 %v1895
        %2864 = vmatpush1.msra.mxu0 %v1894
        %2865 = vmatprep.subr.mxu0 %v1898
        %2866 = vmatpush1.msra.mxu0 %v1897
        %2867 = vmatprep.subr.mxu0 %v1901
        %2868 = vmatpush1.msra.mxu0 %v1900
        %2869 = vmatprep.subr.mxu0 %v1904
        %2870 = vmatpush1.msra.mxu0 %v1903
        %2871 = vmatprep.subr.mxu0 %v1907
        %2872 = vmatpush1.msra.mxu0 %v1906
        %2873 = vmatprep.subr.mxu0 %v1910
        %2874 = vmatpush1.msra.mxu0 %v1909
        %2875 = vmatprep.subr.mxu0 %v1913
        %2876 = vmatpush1.msra.mxu0 %v1912
        %2877 = vmatprep.subr.mxu0 %v1916
        %2878 = vmatpush1.msra.mxu0 %v1915
        %2879 = vmatprep.subr.mxu0 %v1919
        %2880 = vmatpush1.msra.mxu0 %v1918
        %2881 = vmatprep.subr.mxu0 %v1922
        %2882 = vmatpush1.msra.mxu0 %v1921
        %2883 = vmatprep.subr.mxu0 %v1925
        %2884 = vmatpush1.msra.mxu0 %v1924
        %2885 = vmatprep.subr.mxu0 %v1928
        %2886 = vmatpush1.msra.mxu0 %v1927
        %2887 = vmatprep.subr.mxu0 %v1931
        %2888 = vmatpush1.msra.mxu0 %v1930
        %2889 = vmatprep.subr.mxu0 %v1934
        %2890 = vmatpush1.msra.mxu0 %v1933
        %2891 = vmatprep.subr.mxu0 %v1937
        %2892 = vmatpush1.msra.mxu0 %v1936
        %2893 = vmatprep.subr.mxu0 %v1940
        %2894 = vmatpush1.msra.mxu0 %v1939
        %2895 = vmatprep.subr.mxu0 %v1943
        %2896 = vmatpush1.msra.mxu0 %v1942
        %2897 = vmatprep.subr.mxu0 %v1946
        %2898 = vmatpush1.msra.mxu0 %v1945
        %2899 = vmatprep.mubr.f32.mxu0 0.0
        %2900 = vmatmul.mubr.f32.gmra.mrb[0].mxu0 %v2800
        %v2901 = vpop.f32.mrb[0].mxu0
        %v2902 = vadd.f32 0.0, %v2901
        %v2903 = vpop.f32.mrb[0].mxu0
        %v2904 = vadd.f32 0.0, %v2903
        %2905 = vmatprep.mubr.f32.mxu0 %v2828
        %2906 = vmatmul.mubr.f32.gmra.mrb[0].mxu0 0.0
        %v2907 = vpop.f32.mrb[0].mxu0
        %v2908 = vadd.f32 0.0, %v2907
        %v2909 = vpop.f32.mrb[0].mxu0
        %v2910 = vadd.f32 0.0, %v2909
        %2911 = vdwg.mxu0
        %2912 = vmatprep.subr.mxu0 0.0
        %2913 = vmatpush1.msra.mxu0 %v1854
        %2914 = vmatprep.subr.mxu0 0.0
        %2915 = vmatpush1.msra.mxu0 %v1857
        %2916 = vmatprep.subr.mxu0 0.0
        %2917 = vmatpush1.msra.mxu0 %v1860
        %2918 = vmatprep.subr.mxu0 0.0
        %2919 = vmatpush1.msra.mxu0 %v1863
        %2920 = vmatprep.subr.mxu0 0.0
        %2921 = vmatpush1.msra.mxu0 %v1866
        %2922 = vmatprep.subr.mxu0 0.0
        %2923 = vmatpush1.msra.mxu0 %v1869
        %2924 = vmatprep.subr.mxu0 0.0
        %2925 = vmatpush1.msra.mxu0 %v1872
        %2926 = vmatprep.subr.mxu0 0.0
        %2927 = vmatpush1.msra.mxu0 %v1875
        %2928 = vmatprep.subr.mxu0 0.0
        %2929 = vmatpush1.msra.mxu0 %v1878
        %2930 = vmatprep.subr.mxu0 0.0
        %2931 = vmatpush1.msra.mxu0 %v1881
        %2932 = vmatprep.subr.mxu0 0.0
        %2933 = vmatpush1.msra.mxu0 %v1884
        %2934 = vmatprep.subr.mxu0 0.0
        %2935 = vmatpush1.msra.mxu0 %v1887
        %2936 = vmatprep.subr.mxu0 0.0
        %2937 = vmatpush1.msra.mxu0 %v1890
        %2938 = vmatprep.subr.mxu0 0.0
        %2939 = vmatpush1.msra.mxu0 %v1893
        %2940 = vmatprep.subr.mxu0 0.0
        %2941 = vmatpush1.msra.mxu0 %v1896
        %2942 = vmatprep.subr.mxu0 0.0
        %2943 = vmatpush1.msra.mxu0 %v1899
        %2944 = vmatprep.subr.mxu0 0.0
        %2945 = vmatpush1.msra.mxu0 %v1902
        %2946 = vmatprep.subr.mxu0 0.0
        %2947 = vmatpush1.msra.mxu0 %v1905
        %2948 = vmatprep.subr.mxu0 0.0
        %2949 = vmatpush1.msra.mxu0 %v1908
        %2950 = vmatprep.subr.mxu0 0.0
        %2951 = vmatpush1.msra.mxu0 %v1911
        %2952 = vmatprep.subr.mxu0 0.0
        %2953 = vmatpush1.msra.mxu0 %v1914
        %2954 = vmatprep.subr.mxu0 0.0
        %2955 = vmatpush1.msra.mxu0 %v1917
        %2956 = vmatprep.subr.mxu0 0.0
        %2957 = vmatpush1.msra.mxu0 %v1920
        %2958 = vmatprep.subr.mxu0 0.0
        %2959 = vmatpush1.msra.mxu0 %v1923
        %2960 = vmatprep.subr.mxu0 0.0
        %2961 = vmatpush1.msra.mxu0 %v1926
        %2962 = vmatprep.subr.mxu0 0.0
        %2963 = vmatpush1.msra.mxu0 %v1929
        %2964 = vmatprep.subr.mxu0 0.0
        %2965 = vmatpush1.msra.mxu0 %v1932
        %2966 = vmatprep.subr.mxu0 0.0
        %2967 = vmatpush1.msra.mxu0 %v1935
        %2968 = vmatprep.subr.mxu0 0.0
        %2969 = vmatpush1.msra.mxu0 %v1938
        %2970 = vmatprep.subr.mxu0 0.0
        %2971 = vmatpush1.msra.mxu0 %v1941
        %2972 = vmatprep.subr.mxu0 0.0
        %2973 = vmatpush1.msra.mxu0 %v1944
        %2974 = vmatprep.subr.mxu0 0.0
        %2975 = vmatpush1.msra.mxu0 %v1947
        %2976 = vmatprep.mubr.f32.mxu0 0.0
        %2977 = vmatmul.mubr.f32.gmra.mrb[0].mxu0 %v2800
        %v2978 = vpop.f32.mrb[0].mxu0
        %v2979 = vadd.f32 0.0, %v2978
        %v2980 = vpop.f32.mrb[0].mxu0
        %2981 = vmatprep.mubr.f32.mxu0 %v2828
        %2982 = vmatmul.mubr.f32.gmra.mrb[0].mxu0 0.0
        %v2983 = vpop.f32.mrb[0].mxu0
        %v2984 = vadd.f32 0.0, %v2983
        %v2985 = vpop.f32.mrb[0].mxu0
        %2986 = vdwg.mxu0
        %s2987 = scalar_lea.vmem [#allocation3], 96
        %v2988 = vld [vmem:[%s2987] sm:$0xff]
        %v2989 = vld [vmem:[%s2987 + $0x8] sm:$0xff]
        %v2990 = vld [vmem:[%s2987 + $0x10] sm:$0xff]
        %v2991 = vadd.f32 %v2902, %v2110
        %v2992 = vadd.f32 %v2904, %v2114
        %v2993 = vadd.f32 %v2979, %v2118
        %v2994 = vadd.f32 %v2988, %v2991
        %v2995 = vxor.u32 %v2994, 2147483648
        %v2996 = vmul.f32 %v2995, 1.442695
        %v2997 = vpow.pop %v2996
        %v2998 = vadd.f32 %v2997, 1.0
        %v2999 = vrcp.pop %v2998
        %v3000 = vmul.f32 1.0, %v2999
        %v3001 = vadd.f32 %v2989, %v2992
        %v3002 = vxor.u32 %v3001, 2147483648
        %v3003 = vmul.f32 %v3002, 1.442695
        %v3004 = vpow.pop %v3003
        %v3005 = vadd.f32 %v3004, 1.0
        %v3006 = vrcp.pop %v3005
        %v3007 = vmul.f32 1.0, %v3006
        %v3008 = vmul.f32 %v3000, %v2993
        %v3009 = vadd.f32 %v2990, %v3008
        %v3010 = vtanh.pop %v3009
        %v3011 = vsub.f32 1.0, %v3007
        %v3012 = vmul.f32 %v3011, %v3010
        %v3013 = vmul.f32 %v3007, %v2800
        %v3014 = vadd.f32 %v3012, %v3013
        %s3015 = scalar_lea.vmem [#allocation4], 72
        %v3016 = vld [vmem:[%s3015] sm:$0xff]
        %v3017 = vld [vmem:[%s3015 + $0x8] sm:$0xff]
        %v3018 = vld [vmem:[%s3015 + $0x10] sm:$0xff]
        %v3019 = vadd.f32 %v2908, %v2154
        %v3020 = vadd.f32 %v2910, %v2158
        %v3021 = vadd.f32 %v2984, %v2162
        %v3022 = vadd.f32 %v3016, %v3019
        %v3023 = vxor.u32 %v3022, 2147483648
        %v3024 = vmul.f32 %v3023, 1.442695
        %v3025 = vpow.pop %v3024
        %v3026 = vadd.f32 %v3025, 1.0
        %v3027 = vrcp.pop %v3026
        %v3028 = vmul.f32 1.0, %v3027
        %v3029 = vadd.f32 %v3017, %v3020
        %v3030 = vxor.u32 %v3029, 2147483648
        %v3031 = vmul.f32 %v3030, 1.442695
        %v3032 = vpow.pop %v3031
        %v3033 = vadd.f32 %v3032, 1.0
        %v3034 = vrcp.pop %v3033
        %v3035 = vmul.f32 1.0, %v3034
        %v3036 = vmul.f32 %v3028, %v3021
        %v3037 = vadd.f32 %v3018, %v3036
        %v3038 = vtanh.pop %v3037
        %v3039 = vsub.f32 1.0, %v3035
        %v3040 = vmul.f32 %v3039, %v3038
        %v3041 = vmul.f32 %v3035, %v2828
        %v3042 = vadd.f32 %v3040, %v3041
        %3043 = vst [vmem:[%s2831] sm:$0xff] %v3014
        %3044 = vst [vmem:[%s2829 + $0x8] sm:$0xff] %v3042
        %v3045 = vmax.f32 %v2833, %v3014
        %v3046 = vmax.f32 %v2834, %v3042
        %3047 = vmatprep.subr.mxu0 %v1853
        %3048 = vmatpush1.msra.mxu0 %v1852
        %3049 = vmatprep.subr.mxu0 %v1856
        %3050 = vmatpush1.msra.mxu0 %v1855
        %3051 = vmatprep.subr.mxu0 %v1859
        %3052 = vmatpush1.msra.mxu0 %v1858
        %3053 = vmatprep.subr.mxu0 %v1862
        %3054 = vmatpush1.msra.mxu0 %v1861
        %3055 = vmatprep.subr.mxu0 %v1865
        %3056 = vmatpush1.msra.mxu0 %v1864
        %3057 = vmatprep.subr.mxu0 %v1868
        %3058 = vmatpush1.msra.mxu0 %v1867
        %3059 = vmatprep.subr.mxu0 %v1871
        %3060 = vmatpush1.msra.mxu0 %v1870
        %3061 = vmatprep.subr.mxu0 %v1874
        %3062 = vmatpush1.msra.mxu0 %v1873
        %3063 = vmatprep.subr.mxu0 %v1877
        %3064 = vmatpush1.msra.mxu0 %v1876
        %3065 = vmatprep.subr.mxu0 %v1880
        %3066 = vmatpush1.msra.mxu0 %v1879
        %3067 = vmatprep.subr.mxu0 %v1883
        %3068 = vmatpush1.msra.mxu0 %v1882
        %3069 = vmatprep.subr.mxu0 %v1886
        %3070 = vmatpush1.msra.mxu0 %v1885
        %3071 = vmatprep.subr.mxu0 %v1889
        %3072 = vmatpush1.msra.mxu0 %v1888
        %3073 = vmatprep.subr.mxu0 %v1892
        %3074 = vmatpush1.msra.mxu0 %v1891
        %3075 = vmatprep.subr.mxu0 %v1895
        %3076 = vmatpush1.msra.mxu0 %v1894
        %3077 = vmatprep.subr.mxu0 %v1898
        %3078 = vmatpush1.msra.mxu0 %v1897
        %3079 = vmatprep.subr.mxu0 %v1901
        %3080 = vmatpush1.msra.mxu0 %v1900
        %3081 = vmatprep.subr.mxu0 %v1904
        %3082 = vmatpush1.msra.mxu0 %v1903
        %3083 = vmatprep.subr.mxu0 %v1907
        %3084 = vmatpush1.msra.mxu0 %v1906
        %3085 = vmatprep.subr.mxu0 %v1910
        %3086 = vmatpush1.msra.mxu0 %v1909
        %3087 = vmatprep.subr.mxu0 %v1913
        %3088 = vmatpush1.msra.mxu0 %v1912
        %3089 = vmatprep.subr.mxu0 %v1916
        %3090 = vmatpush1.msra.mxu0 %v1915
        %3091 = vmatprep.subr.mxu0 %v1919
        %3092 = vmatpush1.msra.mxu0 %v1918
        %3093 = vmatprep.subr.mxu0 %v1922
        %3094 = vmatpush1.msra.mxu0 %v1921
        %3095 = vmatprep.subr.mxu0 %v1925
        %3096 = vmatpush1.msra.mxu0 %v1924
        %3097 = vmatprep.subr.mxu0 %v1928
        %3098 = vmatpush1.msra.mxu0 %v1927
        %3099 = vmatprep.subr.mxu0 %v1931
        %3100 = vmatpush1.msra.mxu0 %v1930
        %3101 = vmatprep.subr.mxu0 %v1934
        %3102 = vmatpush1.msra.mxu0 %v1933
        %3103 = vmatprep.subr.mxu0 %v1937
        %3104 = vmatpush1.msra.mxu0 %v1936
        %3105 = vmatprep.subr.mxu0 %v1940
        %3106 = vmatpush1.msra.mxu0 %v1939
        %3107 = vmatprep.subr.mxu0 %v1943
        %3108 = vmatpush1.msra.mxu0 %v1942
        %3109 = vmatprep.subr.mxu0 %v1946
        %3110 = vmatpush1.msra.mxu0 %v1945
        %3111 = vmatprep.mubr.f32.mxu0 0.0
        %3112 = vmatmul.mubr.f32.gmra.mrb[0].mxu0 %v3014
        %v3113 = vpop.f32.mrb[0].mxu0
        %v3114 = vadd.f32 0.0, %v3113
        %v3115 = vpop.f32.mrb[0].mxu0
        %v3116 = vadd.f32 0.0, %v3115
        %3117 = vmatprep.mubr.f32.mxu0 %v3042
        %3118 = vmatmul.mubr.f32.gmra.mrb[0].mxu0 0.0
        %v3119 = vpop.f32.mrb[0].mxu0
        %v3120 = vadd.f32 0.0, %v3119
        %v3121 = vpop.f32.mrb[0].mxu0
        %v3122 = vadd.f32 0.0, %v3121
        %3123 = vdwg.mxu0
        %3124 = vmatprep.subr.mxu0 0.0
        %3125 = vmatpush1.msra.mxu0 %v1854
        %3126 = vmatprep.subr.mxu0 0.0
        %3127 = vmatpush1.msra.mxu0 %v1857
        %3128 = vmatprep.subr.mxu0 0.0
        %3129 = vmatpush1.msra.mxu0 %v1860
        %3130 = vmatprep.subr.mxu0 0.0
        %3131 = vmatpush1.msra.mxu0 %v1863
        %3132 = vmatprep.subr.mxu0 0.0
        %3133 = vmatpush1.msra.mxu0 %v1866
        %3134 = vmatprep.subr.mxu0 0.0
        %3135 = vmatpush1.msra.mxu0 %v1869
        %3136 = vmatprep.subr.mxu0 0.0
        %3137 = vmatpush1.msra.mxu0 %v1872
        %3138 = vmatprep.subr.mxu0 0.0
        %3139 = vmatpush1.msra.mxu0 %v1875
        %3140 = vmatprep.subr.mxu0 0.0
        %3141 = vmatpush1.msra.mxu0 %v1878
        %3142 = vmatprep.subr.mxu0 0.0
        %3143 = vmatpush1.msra.mxu0 %v1881
        %3144 = vmatprep.subr.mxu0 0.0
        %3145 = vmatpush1.msra.mxu0 %v1884
        %3146 = vmatprep.subr.mxu0 0.0
        %3147 = vmatpush1.msra.mxu0 %v1887
        %3148 = vmatprep.subr.mxu0 0.0
        %3149 = vmatpush1.msra.mxu0 %v1890
        %3150 = vmatprep.subr.mxu0 0.0
        %3151 = vmatpush1.msra.mxu0 %v1893
        %3152 = vmatprep.subr.mxu0 0.0
        %3153 = vmatpush1.msra.mxu0 %v1896
        %3154 = vmatprep.subr.mxu0 0.0
        %3155 = vmatpush1.msra.mxu0 %v1899
        %3156 = vmatprep.subr.mxu0 0.0
        %3157 = vmatpush1.msra.mxu0 %v1902
        %3158 = vmatprep.subr.mxu0 0.0
        %3159 = vmatpush1.msra.mxu0 %v1905
        %3160 = vmatprep.subr.mxu0 0.0
        %3161 = vmatpush1.msra.mxu0 %v1908
        %3162 = vmatprep.subr.mxu0 0.0
        %3163 = vmatpush1.msra.mxu0 %v1911
        %3164 = vmatprep.subr.mxu0 0.0
        %3165 = vmatpush1.msra.mxu0 %v1914
        %3166 = vmatprep.subr.mxu0 0.0
        %3167 = vmatpush1.msra.mxu0 %v1917
        %3168 = vmatprep.subr.mxu0 0.0
        %3169 = vmatpush1.msra.mxu0 %v1920
        %3170 = vmatprep.subr.mxu0 0.0
        %3171 = vmatpush1.msra.mxu0 %v1923
        %3172 = vmatprep.subr.mxu0 0.0
        %3173 = vmatpush1.msra.mxu0 %v1926
        %3174 = vmatprep.subr.mxu0 0.0
        %3175 = vmatpush1.msra.mxu0 %v1929
        %3176 = vmatprep.subr.mxu0 0.0
        %3177 = vmatpush1.msra.mxu0 %v1932
        %3178 = vmatprep.subr.mxu0 0.0
        %3179 = vmatpush1.msra.mxu0 %v1935
        %3180 = vmatprep.subr.mxu0 0.0
        %3181 = vmatpush1.msra.mxu0 %v1938
        %3182 = vmatprep.subr.mxu0 0.0
        %3183 = vmatpush1.msra.mxu0 %v1941
        %3184 = vmatprep.subr.mxu0 0.0
        %3185 = vmatpush1.msra.mxu0 %v1944
        %3186 = vmatprep.subr.mxu0 0.0
        %3187 = vmatpush1.msra.mxu0 %v1947
        %3188 = vmatprep.mubr.f32.mxu0 0.0
        %3189 = vmatmul.mubr.f32.gmra.mrb[0].mxu0 %v3014
        %v3190 = vpop.f32.mrb[0].mxu0
        %v3191 = vadd.f32 0.0, %v3190
        %v3192 = vpop.f32.mrb[0].mxu0
        %3193 = vmatprep.mubr.f32.mxu0 %v3042
        %3194 = vmatmul.mubr.f32.gmra.mrb[0].mxu0 0.0
        %v3195 = vpop.f32.mrb[0].mxu0
        %v3196 = vadd.f32 0.0, %v3195
        %v3197 = vpop.f32.mrb[0].mxu0
        %3198 = vdwg.mxu0
        %s3199 = scalar_lea.vmem [#allocation3], 120
        %v3200 = vld [vmem:[%s3199] sm:$0xff]
        %v3201 = vld [vmem:[%s3199 + $0x8] sm:$0xff]
        %v3202 = vld [vmem:[%s3199 + $0x10] sm:$0xff]
        %v3203 = vadd.f32 %v3114, %v2110
        %v3204 = vadd.f32 %v3116, %v2114
        %v3205 = vadd.f32 %v3191, %v2118
        %v3206 = vadd.f32 %v3200, %v3203
        %v3207 = vxor.u32 %v3206, 2147483648
        %v3208 = vmul.f32 %v3207, 1.442695
        %v3209 = vpow.pop %v3208
        %v3210 = vadd.f32 %v3209, 1.0
        %v3211 = vrcp.pop %v3210
        %v3212 = vmul.f32 1.0, %v3211
        %v3213 = vadd.f32 %v3201, %v3204
        %v3214 = vxor.u32 %v3213, 2147483648
        %v3215 = vmul.f32 %v3214, 1.442695
        %v3216 = vpow.pop %v3215
        %v3217 = vadd.f32 %v3216, 1.0
        %v3218 = vrcp.pop %v3217
        %v3219 = vmul.f32 1.0, %v3218
        %v3220 = vmul.f32 %v3212, %v3205
        %v3221 = vadd.f32 %v3202, %v3220
        %v3222 = vtanh.pop %v3221
        %v3223 = vsub.f32 1.0, %v3219
        %v3224 = vmul.f32 %v3223, %v3222
        %v3225 = vmul.f32 %v3219, %v3014
        %v3226 = vadd.f32 %v3224, %v3225
        %s3227 = scalar_lea.vmem [#allocation4], 48
        %v3228 = vld [vmem:[%s3227] sm:$0xff]
        %v3229 = vld [vmem:[%s3227 + $0x8] sm:$0xff]
        %v3230 = vld [vmem:[%s3227 + $0x10] sm:$0xff]
        %v3231 = vadd.f32 %v3120, %v2154
        %v3232 = vadd.f32 %v3122, %v2158
        %v3233 = vadd.f32 %v3196, %v2162
        %v3234 = vadd.f32 %v3228, %v3231
        %v3235 = vxor.u32 %v3234, 2147483648
        %v3236 = vmul.f32 %v3235, 1.442695
        %v3237 = vpow.pop %v3236
        %v3238 = vadd.f32 %v3237, 1.0
        %v3239 = vrcp.pop %v3238
        %v3240 = vmul.f32 1.0, %v3239
        %v3241 = vadd.f32 %v3229, %v3232
        %v3242 = vxor.u32 %v3241, 2147483648
        %v3243 = vmul.f32 %v3242, 1.442695
        %v3244 = vpow.pop %v3243
        %v3245 = vadd.f32 %v3244, 1.0
        %v3246 = vrcp.pop %v3245
        %v3247 = vmul.f32 1.0, %v3246
        %v3248 = vmul.f32 %v3240, %v3233
        %v3249 = vadd.f32 %v3230, %v3248
        %v3250 = vtanh.pop %v3249
        %v3251 = vsub.f32 1.0, %v3247
        %v3252 = vmul.f32 %v3251, %v3250
        %v3253 = vmul.f32 %v3247, %v3042
        %v3254 = vadd.f32 %v3252, %v3253
        %3255 = vst [vmem:[%s2617] sm:$0xff] %v3226
        %3256 = vst [vmem:[%s2615 + $0x8] sm:$0xff] %v3254
        %v3257 = vmax.f32 %v3045, %v3226
        %v3258 = vmax.f32 %v3046, %v3254
        %3259 = vmatprep.subr.mxu0 %v1853
        %3260 = vmatpush1.msra.mxu0 %v1852
        %3261 = vmatprep.subr.mxu0 %v1856
        %3262 = vmatpush1.msra.mxu0 %v1855
        %3263 = vmatprep.subr.mxu0 %v1859
        %3264 = vmatpush1.msra.mxu0 %v1858
        %3265 = vmatprep.subr.mxu0 %v1862
        %3266 = vmatpush1.msra.mxu0 %v1861
        %3267 = vmatprep.subr.mxu0 %v1865
        %3268 = vmatpush1.msra.mxu0 %v1864
        %3269 = vmatprep.subr.mxu0 %v1868
        %3270 = vmatpush1.msra.mxu0 %v1867
        %3271 = vmatprep.subr.mxu0 %v1871
        %3272 = vmatpush1.msra.mxu0 %v1870
        %3273 = vmatprep.subr.mxu0 %v1874
        %3274 = vmatpush1.msra.mxu0 %v1873
        %3275 = vmatprep.subr.mxu0 %v1877
        %3276 = vmatpush1.msra.mxu0 %v1876
        %3277 = vmatprep.subr.mxu0 %v1880
        %3278 = vmatpush1.msra.mxu0 %v1879
        %3279 = vmatprep.subr.mxu0 %v1883
        %3280 = vmatpush1.msra.mxu0 %v1882
        %3281 = vmatprep.subr.mxu0 %v1886
        %3282 = vmatpush1.msra.mxu0 %v1885
        %3283 = vmatprep.subr.mxu0 %v1889
        %3284 = vmatpush1.msra.mxu0 %v1888
        %3285 = vmatprep.subr.mxu0 %v1892
        %3286 = vmatpush1.msra.mxu0 %v1891
        %3287 = vmatprep.subr.mxu0 %v1895
        %3288 = vmatpush1.msra.mxu0 %v1894
        %3289 = vmatprep.subr.mxu0 %v1898
        %3290 = vmatpush1.msra.mxu0 %v1897
        %3291 = vmatprep.subr.mxu0 %v1901
        %3292 = vmatpush1.msra.mxu0 %v1900
        %3293 = vmatprep.subr.mxu0 %v1904
        %3294 = vmatpush1.msra.mxu0 %v1903
        %3295 = vmatprep.subr.mxu0 %v1907
        %3296 = vmatpush1.msra.mxu0 %v1906
        %3297 = vmatprep.subr.mxu0 %v1910
        %3298 = vmatpush1.msra.mxu0 %v1909
        %3299 = vmatprep.subr.mxu0 %v1913
        %3300 = vmatpush1.msra.mxu0 %v1912
        %3301 = vmatprep.subr.mxu0 %v1916
        %3302 = vmatpush1.msra.mxu0 %v1915
        %3303 = vmatprep.subr.mxu0 %v1919
        %3304 = vmatpush1.msra.mxu0 %v1918
        %3305 = vmatprep.subr.mxu0 %v1922
        %3306 = vmatpush1.msra.mxu0 %v1921
        %3307 = vmatprep.subr.mxu0 %v1925
        %3308 = vmatpush1.msra.mxu0 %v1924
        %3309 = vmatprep.subr.mxu0 %v1928
        %3310 = vmatpush1.msra.mxu0 %v1927
        %3311 = vmatprep.subr.mxu0 %v1931
        %3312 = vmatpush1.msra.mxu0 %v1930
        %3313 = vmatprep.subr.mxu0 %v1934
        %3314 = vmatpush1.msra.mxu0 %v1933
        %3315 = vmatprep.subr.mxu0 %v1937
        %3316 = vmatpush1.msra.mxu0 %v1936
        %3317 = vmatprep.subr.mxu0 %v1940
        %3318 = vmatpush1.msra.mxu0 %v1939
        %3319 = vmatprep.subr.mxu0 %v1943
        %3320 = vmatpush1.msra.mxu0 %v1942
        %3321 = vmatprep.subr.mxu0 %v1946
        %3322 = vmatpush1.msra.mxu0 %v1945
        %3323 = vmatprep.mubr.f32.mxu0 0.0
        %3324 = vmatmul.mubr.f32.gmra.mrb[0].mxu0 %v3226
        %v3325 = vpop.f32.mrb[0].mxu0
        %v3326 = vadd.f32 0.0, %v3325
        %v3327 = vpop.f32.mrb[0].mxu0
        %v3328 = vadd.f32 0.0, %v3327
        %3329 = vmatprep.mubr.f32.mxu0 %v3254
        %3330 = vmatmul.mubr.f32.gmra.mrb[0].mxu0 0.0
        %v3331 = vpop.f32.mrb[0].mxu0
        %v3332 = vadd.f32 0.0, %v3331
        %v3333 = vpop.f32.mrb[0].mxu0
        %v3334 = vadd.f32 0.0, %v3333
        %3335 = vdwg.mxu0
        %3336 = vmatprep.subr.mxu0 0.0
        %3337 = vmatpush1.msra.mxu0 %v1854
        %3338 = vmatprep.subr.mxu0 0.0
        %3339 = vmatpush1.msra.mxu0 %v1857
        %3340 = vmatprep.subr.mxu0 0.0
        %3341 = vmatpush1.msra.mxu0 %v1860
        %3342 = vmatprep.subr.mxu0 0.0
        %3343 = vmatpush1.msra.mxu0 %v1863
        %3344 = vmatprep.subr.mxu0 0.0
        %3345 = vmatpush1.msra.mxu0 %v1866
        %3346 = vmatprep.subr.mxu0 0.0
        %3347 = vmatpush1.msra.mxu0 %v1869
        %3348 = vmatprep.subr.mxu0 0.0
        %3349 = vmatpush1.msra.mxu0 %v1872
        %3350 = vmatprep.subr.mxu0 0.0
        %3351 = vmatpush1.msra.mxu0 %v1875
        %3352 = vmatprep.subr.mxu0 0.0
        %3353 = vmatpush1.msra.mxu0 %v1878
        %3354 = vmatprep.subr.mxu0 0.0
        %3355 = vmatpush1.msra.mxu0 %v1881
        %3356 = vmatprep.subr.mxu0 0.0
        %3357 = vmatpush1.msra.mxu0 %v1884
        %3358 = vmatprep.subr.mxu0 0.0
        %3359 = vmatpush1.msra.mxu0 %v1887
        %3360 = vmatprep.subr.mxu0 0.0
        %3361 = vmatpush1.msra.mxu0 %v1890
        %3362 = vmatprep.subr.mxu0 0.0
        %3363 = vmatpush1.msra.mxu0 %v1893
        %3364 = vmatprep.subr.mxu0 0.0
        %3365 = vmatpush1.msra.mxu0 %v1896
        %3366 = vmatprep.subr.mxu0 0.0
        %3367 = vmatpush1.msra.mxu0 %v1899
        %3368 = vmatprep.subr.mxu0 0.0
        %3369 = vmatpush1.msra.mxu0 %v1902
        %3370 = vmatprep.subr.mxu0 0.0
        %3371 = vmatpush1.msra.mxu0 %v1905
        %3372 = vmatprep.subr.mxu0 0.0
        %3373 = vmatpush1.msra.mxu0 %v1908
        %3374 = vmatprep.subr.mxu0 0.0
        %3375 = vmatpush1.msra.mxu0 %v1911
        %3376 = vmatprep.subr.mxu0 0.0
        %3377 = vmatpush1.msra.mxu0 %v1914
        %3378 = vmatprep.subr.mxu0 0.0
        %3379 = vmatpush1.msra.mxu0 %v1917
        %3380 = vmatprep.subr.mxu0 0.0
        %3381 = vmatpush1.msra.mxu0 %v1920
        %3382 = vmatprep.subr.mxu0 0.0
        %3383 = vmatpush1.msra.mxu0 %v1923
        %3384 = vmatprep.subr.mxu0 0.0
        %3385 = vmatpush1.msra.mxu0 %v1926
        %3386 = vmatprep.subr.mxu0 0.0
        %3387 = vmatpush1.msra.mxu0 %v1929
        %3388 = vmatprep.subr.mxu0 0.0
        %3389 = vmatpush1.msra.mxu0 %v1932
        %3390 = vmatprep.subr.mxu0 0.0
        %3391 = vmatpush1.msra.mxu0 %v1935
        %3392 = vmatprep.subr.mxu0 0.0
        %3393 = vmatpush1.msra.mxu0 %v1938
        %3394 = vmatprep.subr.mxu0 0.0
        %3395 = vmatpush1.msra.mxu0 %v1941
        %3396 = vmatprep.subr.mxu0 0.0
        %3397 = vmatpush1.msra.mxu0 %v1944
        %3398 = vmatprep.subr.mxu0 0.0
        %3399 = vmatpush1.msra.mxu0 %v1947
        %3400 = vmatprep.mubr.f32.mxu0 0.0
        %3401 = vmatmul.mubr.f32.gmra.mrb[0].mxu0 %v3226
        %v3402 = vpop.f32.mrb[0].mxu0
        %v3403 = vadd.f32 0.0, %v3402
        %v3404 = vpop.f32.mrb[0].mxu0
        %3405 = vmatprep.mubr.f32.mxu0 %v3254
        %3406 = vmatmul.mubr.f32.gmra.mrb[0].mxu0 0.0
        %v3407 = vpop.f32.mrb[0].mxu0
        %v3408 = vadd.f32 0.0, %v3407
        %v3409 = vpop.f32.mrb[0].mxu0
        %3410 = vdwg.mxu0
        %s3411 = scalar_lea.vmem [#allocation3], 144
        %v3412 = vld [vmem:[%s3411] sm:$0xff]
        %v3413 = vld [vmem:[%s3411 + $0x8] sm:$0xff]
        %v3414 = vld [vmem:[%s3411 + $0x10] sm:$0xff]
        %v3415 = vadd.f32 %v3326, %v2110
        %v3416 = vadd.f32 %v3328, %v2114
        %v3417 = vadd.f32 %v3403, %v2118
        %v3418 = vadd.f32 %v3412, %v3415
        %v3419 = vxor.u32 %v3418, 2147483648
        %v3420 = vmul.f32 %v3419, 1.442695
        %v3421 = vpow.pop %v3420
        %v3422 = vadd.f32 %v3421, 1.0
        %v3423 = vrcp.pop %v3422
        %v3424 = vmul.f32 1.0, %v3423
        %v3425 = vadd.f32 %v3413, %v3416
        %v3426 = vxor.u32 %v3425, 2147483648
        %v3427 = vmul.f32 %v3426, 1.442695
        %v3428 = vpow.pop %v3427
        %v3429 = vadd.f32 %v3428, 1.0
        %v3430 = vrcp.pop %v3429
        %v3431 = vmul.f32 1.0, %v3430
        %v3432 = vmul.f32 %v3424, %v3417
        %v3433 = vadd.f32 %v3414, %v3432
        %v3434 = vtanh.pop %v3433
        %v3435 = vsub.f32 1.0, %v3431
        %v3436 = vmul.f32 %v3435, %v3434
        %v3437 = vmul.f32 %v3431, %v3226
        %v3438 = vadd.f32 %v3436, %v3437
        %s3439 = scalar_lea.vmem [#allocation4], 24
        %v3440 = vld [vmem:[%s3439] sm:$0xff]
        %v3441 = vld [vmem:[%s3439 + $0x8] sm:$0xff]
        %v3442 = vld [vmem:[%s3439 + $0x10] sm:$0xff]
        %v3443 = vadd.f32 %v3332, %v2154
        %v3444 = vadd.f32 %v3334, %v2158
        %v3445 = vadd.f32 %v3408, %v2162
        %v3446 = vadd.f32 %v3440, %v3443
        %v3447 = vxor.u32 %v3446, 2147483648
        %v3448 = vmul.f32 %v3447, 1.442695
        %v3449 = vpow.pop %v3448
        %v3450 = vadd.f32 %v3449, 1.0
        %v3451 = vrcp.pop %v3450
        %v3452 = vmul.f32 1.0, %v3451
        %v3453 = vadd.f32 %v3441, %v3444
        %v3454 = vxor.u32 %v3453, 2147483648
        %v3455 = vmul.f32 %v3454, 1.442695
        %v3456 = vpow.pop %v3455
        %v3457 = vadd.f32 %v3456, 1.0
        %v3458 = vrcp.pop %v3457
        %v3459 = vmul.f32 1.0, %v3458
        %v3460 = vmul.f32 %v3452, %v3445
        %v3461 = vadd.f32 %v3442, %v3460
        %v3462 = vtanh.pop %v3461
        %v3463 = vsub.f32 1.0, %v3459
        %v3464 = vmul.f32 %v3463, %v3462
        %v3465 = vmul.f32 %v3459, %v3254
        %v3466 = vadd.f32 %v3464, %v3465
        %3467 = vst [vmem:[%s2403] sm:$0xff] %v3438
        %3468 = vst [vmem:[%s2401 + $0x8] sm:$0xff] %v3466
        %v3469 = vmax.f32 %v3257, %v3438
        %v3470 = vmax.f32 %v3258, %v3466
        %3471 = vmatprep.subr.mxu0 %v1853
        %3472 = vmatpush1.msra.mxu0 %v1852
        %3473 = vmatprep.subr.mxu0 %v1856
        %3474 = vmatpush1.msra.mxu0 %v1855
        %3475 = vmatprep.subr.mxu0 %v1859
        %3476 = vmatpush1.msra.mxu0 %v1858
        %3477 = vmatprep.subr.mxu0 %v1862
        %3478 = vmatpush1.msra.mxu0 %v1861
        %3479 = vmatprep.subr.mxu0 %v1865
        %3480 = vmatpush1.msra.mxu0 %v1864
        %3481 = vmatprep.subr.mxu0 %v1868
        %3482 = vmatpush1.msra.mxu0 %v1867
        %3483 = vmatprep.subr.mxu0 %v1871
        %3484 = vmatpush1.msra.mxu0 %v1870
        %3485 = vmatprep.subr.mxu0 %v1874
        %3486 = vmatpush1.msra.mxu0 %v1873
        %3487 = vmatprep.subr.mxu0 %v1877
        %3488 = vmatpush1.msra.mxu0 %v1876
        %3489 = vmatprep.subr.mxu0 %v1880
        %3490 = vmatpush1.msra.mxu0 %v1879
        %3491 = vmatprep.subr.mxu0 %v1883
        %3492 = vmatpush1.msra.mxu0 %v1882
        %3493 = vmatprep.subr.mxu0 %v1886
        %3494 = vmatpush1.msra.mxu0 %v1885
        %3495 = vmatprep.subr.mxu0 %v1889
        %3496 = vmatpush1.msra.mxu0 %v1888
        %3497 = vmatprep.subr.mxu0 %v1892
        %3498 = vmatpush1.msra.mxu0 %v1891
        %3499 = vmatprep.subr.mxu0 %v1895
        %3500 = vmatpush1.msra.mxu0 %v1894
        %3501 = vmatprep.subr.mxu0 %v1898
        %3502 = vmatpush1.msra.mxu0 %v1897
        %3503 = vmatprep.subr.mxu0 %v1901
        %3504 = vmatpush1.msra.mxu0 %v1900
        %3505 = vmatprep.subr.mxu0 %v1904
        %3506 = vmatpush1.msra.mxu0 %v1903
        %3507 = vmatprep.subr.mxu0 %v1907
        %3508 = vmatpush1.msra.mxu0 %v1906
        %3509 = vmatprep.subr.mxu0 %v1910
        %3510 = vmatpush1.msra.mxu0 %v1909
        %3511 = vmatprep.subr.mxu0 %v1913
        %3512 = vmatpush1.msra.mxu0 %v1912
        %3513 = vmatprep.subr.mxu0 %v1916
        %3514 = vmatpush1.msra.mxu0 %v1915
        %3515 = vmatprep.subr.mxu0 %v1919
        %3516 = vmatpush1.msra.mxu0 %v1918
        %3517 = vmatprep.subr.mxu0 %v1922
        %3518 = vmatpush1.msra.mxu0 %v1921
        %3519 = vmatprep.subr.mxu0 %v1925
        %3520 = vmatpush1.msra.mxu0 %v1924
        %3521 = vmatprep.subr.mxu0 %v1928
        %3522 = vmatpush1.msra.mxu0 %v1927
        %3523 = vmatprep.subr.mxu0 %v1931
        %3524 = vmatpush1.msra.mxu0 %v1930
        %3525 = vmatprep.subr.mxu0 %v1934
        %3526 = vmatpush1.msra.mxu0 %v1933
        %3527 = vmatprep.subr.mxu0 %v1937
        %3528 = vmatpush1.msra.mxu0 %v1936
        %3529 = vmatprep.subr.mxu0 %v1940
        %3530 = vmatpush1.msra.mxu0 %v1939
        %3531 = vmatprep.subr.mxu0 %v1943
        %3532 = vmatpush1.msra.mxu0 %v1942
        %3533 = vmatprep.subr.mxu0 %v1946
        %3534 = vmatpush1.msra.mxu0 %v1945
        %3535 = vmatprep.mubr.f32.mxu0 0.0
        %3536 = vmatmul.mubr.f32.gmra.mrb[0].mxu0 %v3438
        %v3537 = vpop.f32.mrb[0].mxu0
        %v3538 = vadd.f32 0.0, %v3537
        %v3539 = vpop.f32.mrb[0].mxu0
        %v3540 = vadd.f32 0.0, %v3539
        %3541 = vmatprep.mubr.f32.mxu0 %v3466
        %3542 = vmatmul.mubr.f32.gmra.mrb[0].mxu0 0.0
        %v3543 = vpop.f32.mrb[0].mxu0
        %v3544 = vadd.f32 0.0, %v3543
        %v3545 = vpop.f32.mrb[0].mxu0
        %v3546 = vadd.f32 0.0, %v3545
        %3547 = vdwg.mxu0
        %3548 = vmatprep.subr.mxu0 0.0
        %3549 = vmatpush1.msra.mxu0 %v1854
        %3550 = vmatprep.subr.mxu0 0.0
        %3551 = vmatpush1.msra.mxu0 %v1857
        %3552 = vmatprep.subr.mxu0 0.0
        %3553 = vmatpush1.msra.mxu0 %v1860
        %3554 = vmatprep.subr.mxu0 0.0
        %3555 = vmatpush1.msra.mxu0 %v1863
        %3556 = vmatprep.subr.mxu0 0.0
        %3557 = vmatpush1.msra.mxu0 %v1866
        %3558 = vmatprep.subr.mxu0 0.0
        %3559 = vmatpush1.msra.mxu0 %v1869
        %3560 = vmatprep.subr.mxu0 0.0
        %3561 = vmatpush1.msra.mxu0 %v1872
        %3562 = vmatprep.subr.mxu0 0.0
        %3563 = vmatpush1.msra.mxu0 %v1875
        %3564 = vmatprep.subr.mxu0 0.0
        %3565 = vmatpush1.msra.mxu0 %v1878
        %3566 = vmatprep.subr.mxu0 0.0
        %3567 = vmatpush1.msra.mxu0 %v1881
        %3568 = vmatprep.subr.mxu0 0.0
        %3569 = vmatpush1.msra.mxu0 %v1884
        %3570 = vmatprep.subr.mxu0 0.0
        %3571 = vmatpush1.msra.mxu0 %v1887
        %3572 = vmatprep.subr.mxu0 0.0
        %3573 = vmatpush1.msra.mxu0 %v1890
        %3574 = vmatprep.subr.mxu0 0.0
        %3575 = vmatpush1.msra.mxu0 %v1893
        %3576 = vmatprep.subr.mxu0 0.0
        %3577 = vmatpush1.msra.mxu0 %v1896
        %3578 = vmatprep.subr.mxu0 0.0
        %3579 = vmatpush1.msra.mxu0 %v1899
        %3580 = vmatprep.subr.mxu0 0.0
        %3581 = vmatpush1.msra.mxu0 %v1902
        %3582 = vmatprep.subr.mxu0 0.0
        %3583 = vmatpush1.msra.mxu0 %v1905
        %3584 = vmatprep.subr.mxu0 0.0
        %3585 = vmatpush1.msra.mxu0 %v1908
        %3586 = vmatprep.subr.mxu0 0.0
        %3587 = vmatpush1.msra.mxu0 %v1911
        %3588 = vmatprep.subr.mxu0 0.0
        %3589 = vmatpush1.msra.mxu0 %v1914
        %3590 = vmatprep.subr.mxu0 0.0
        %3591 = vmatpush1.msra.mxu0 %v1917
        %3592 = vmatprep.subr.mxu0 0.0
        %3593 = vmatpush1.msra.mxu0 %v1920
        %3594 = vmatprep.subr.mxu0 0.0
        %3595 = vmatpush1.msra.mxu0 %v1923
        %3596 = vmatprep.subr.mxu0 0.0
        %3597 = vmatpush1.msra.mxu0 %v1926
        %3598 = vmatprep.subr.mxu0 0.0
        %3599 = vmatpush1.msra.mxu0 %v1929
        %3600 = vmatprep.subr.mxu0 0.0
        %3601 = vmatpush1.msra.mxu0 %v1932
        %3602 = vmatprep.subr.mxu0 0.0
        %3603 = vmatpush1.msra.mxu0 %v1935
        %3604 = vmatprep.subr.mxu0 0.0
        %3605 = vmatpush1.msra.mxu0 %v1938
        %3606 = vmatprep.subr.mxu0 0.0
        %3607 = vmatpush1.msra.mxu0 %v1941
        %3608 = vmatprep.subr.mxu0 0.0
        %3609 = vmatpush1.msra.mxu0 %v1944
        %3610 = vmatprep.subr.mxu0 0.0
        %3611 = vmatpush1.msra.mxu0 %v1947
        %3612 = vmatprep.mubr.f32.mxu0 0.0
        %3613 = vmatmul.mubr.f32.gmra.mrb[0].mxu0 %v3438
        %v3614 = vpop.f32.mrb[0].mxu0
        %v3615 = vadd.f32 0.0, %v3614
        %v3616 = vpop.f32.mrb[0].mxu0
        %3617 = vmatprep.mubr.f32.mxu0 %v3466
        %3618 = vmatmul.mubr.f32.gmra.mrb[0].mxu0 0.0
        %v3619 = vpop.f32.mrb[0].mxu0
        %v3620 = vadd.f32 0.0, %v3619
        %v3621 = vpop.f32.mrb[0].mxu0
        %3622 = vdwg.mxu0
        %s3623 = scalar_lea.vmem [#allocation3], 168
        %v3624 = vld [vmem:[%s3623] sm:$0xff]
        %v3625 = vld [vmem:[%s3623 + $0x8] sm:$0xff]
        %v3626 = vld [vmem:[%s3623 + $0x10] sm:$0xff]
        %v3627 = vadd.f32 %v3538, %v2110
        %v3628 = vadd.f32 %v3540, %v2114
        %v3629 = vadd.f32 %v3615, %v2118
        %v3630 = vadd.f32 %v3624, %v3627
        %v3631 = vxor.u32 %v3630, 2147483648
        %v3632 = vmul.f32 %v3631, 1.442695
        %v3633 = vpow.pop %v3632
        %v3634 = vadd.f32 %v3633, 1.0
        %v3635 = vrcp.pop %v3634
        %v3636 = vmul.f32 1.0, %v3635
        %v3637 = vadd.f32 %v3625, %v3628
        %v3638 = vxor.u32 %v3637, 2147483648
        %v3639 = vmul.f32 %v3638, 1.442695
        %v3640 = vpow.pop %v3639
        %v3641 = vadd.f32 %v3640, 1.0
        %v3642 = vrcp.pop %v3641
        %v3643 = vmul.f32 1.0, %v3642
        %v3644 = vmul.f32 %v3636, %v3629
        %v3645 = vadd.f32 %v3626, %v3644
        %v3646 = vtanh.pop %v3645
        %v3647 = vsub.f32 1.0, %v3643
        %v3648 = vmul.f32 %v3647, %v3646
        %v3649 = vmul.f32 %v3643, %v3438
        %v3650 = vadd.f32 %v3648, %v3649
        %v3651 = vld [vmem:[#allocation4] sm:$0xff]
        %v3652 = vld [vmem:[#allocation4 + $0x8] sm:$0xff]
        %v3653 = vld [vmem:[#allocation4 + $0x10] sm:$0xff]
        %v3654 = vadd.f32 %v3544, %v2154
        %v3655 = vadd.f32 %v3546, %v2158
        %v3656 = vadd.f32 %v3620, %v2162
        %v3657 = vadd.f32 %v3651, %v3654
        %v3658 = vxor.u32 %v3657, 2147483648
        %v3659 = vmul.f32 %v3658, 1.442695
        %v3660 = vpow.pop %v3659
        %v3661 = vadd.f32 %v3660, 1.0
        %v3662 = vrcp.pop %v3661
        %v3663 = vmul.f32 1.0, %v3662
        %v3664 = vadd.f32 %v3652, %v3655
        %v3665 = vxor.u32 %v3664, 2147483648
        %v3666 = vmul.f32 %v3665, 1.442695
        %v3667 = vpow.pop %v3666
        %v3668 = vadd.f32 %v3667, 1.0
        %v3669 = vrcp.pop %v3668
        %v3670 = vmul.f32 1.0, %v3669
        %v3671 = vmul.f32 %v3663, %v3656
        %v3672 = vadd.f32 %v3653, %v3671
        %v3673 = vtanh.pop %v3672
        %v3674 = vsub.f32 1.0, %v3670
        %v3675 = vmul.f32 %v3674, %v3673
        %v3676 = vmul.f32 %v3670, %v3466
        %v3677 = vadd.f32 %v3675, %v3676
        %3678 = vst [vmem:[%s2191] sm:$0xff] %v3650
        %3679 = vst [vmem:[#allocation2 + $0x8] sm:$0xff] %v3677
        %v3680 = vmax.f32 %v3469, %v3650
        %v3681 = vmax.f32 %v3470, %v3677
        %3682 = vst [vmem:[%s386] sm:$0xff] %v3650
        %s3683 = scalar_lea.vmem %s386, 8
        %3684 = vst [vmem:[%s3683] sm:$0xff] %v3677
        %p3685 = scmp.eq.s32.totalorder %s27, 1
        // Predicated region
        $region65: #{dialogue_net_forward.1} parent=39 // pred_check
          %p3686 = pneg %p3685
        $region66: #{dialogue_net_forward.1} parent=39 // pred_check_branch
          %3688 = sbr.rel (%p3686) target = $region68
        $region67: #{dialogue_net_forward.1} parent=39 // pred_region
          %v3689 = vtanh.pop %v3680
          %v3690 = vtanh.pop %v3689
          %3691 = vst [vmem:[%s5] sm:$0xff] %v3690
          %v3692 = vtanh.pop %v3681
          %v3693 = vtanh.pop %v3692
          %3694 = vst [vmem:[%s5 + $0x8] sm:$0xff] %v3693
        $region68: #{dialogue_net_forward.1} parent=39 // pred_fallthru
          _
        %s3695 = smul.u32 2, %s27
        %p3696 = scmp.lt.s32.totalorder %s3695, 3
        %s3697 = scalar_select %p3696, %s3695, 3
        %s3698 = smul.addr %s3697, 8
        %s3699 = scalar_lea.vmem %s6, %s3698
        // Predicated region
        $region69: #{dialogue_net_forward.1} parent=39 // pred_check
          %p3700 = pneg %p165
        $region70: #{dialogue_net_forward.1} parent=39 // pred_check_branch
          %3702 = sbr.rel (%p3700) target = $region72
        $region71: #{dialogue_net_forward.1} parent=39 // pred_region
          _
        $region72: #{dialogue_net_forward.1} parent=39 // pred_fallthru
          _
        // Predicated region
        $region73: #{dialogue_net_forward.1} parent=39 // pred_check
          %p3703 = pneg %p191
        $region74: #{dialogue_net_forward.1} parent=39 // pred_check_branch
          %3705 = sbr.rel (%p3703) target = $region76
        $region75: #{dialogue_net_forward.1} parent=39 // pred_region
          %s3706 = smul.u32 2, %s27
        $region76: #{dialogue_net_forward.1} parent=39 // pred_fallthru
          _
        // Predicated region
        $region77: #{dialogue_net_forward.1} parent=39 // pred_check
          %p3707 = pneg %p165
        $region78: #{dialogue_net_forward.1} parent=39 // pred_check_branch
          %3709 = sbr.rel (%p3707) target = $region80
        $region79: #{dialogue_net_forward.1} parent=39 // pred_region
          _
        $region80: #{dialogue_net_forward.1} parent=39 // pred_fallthru
          _
      $region40: #{dialogue_net_forward.1} parent=5 // pred_fallthru
        _
      %p3710 = scmp.le.s32.totalorder 2, %s22
      // Predicated region
      $region81: #{dialogue_net_forward.1} parent=5 // pred_check
        %p3711 = pneg %p3710
      $region82: #{dialogue_net_forward.1} parent=5 // pred_check_branch
        %3713 = sbr.rel (%p3711) target = $region84
      $region83: #{dialogue_net_forward.1} parent=5 // pred_region
        %s3714 = ssub.s32 %s22, 2
        // Predicated region
        $region85: #{dialogue_net_forward.1} parent=83 // pred_check
          %p3715 = pneg %p197
        $region86: #{dialogue_net_forward.1} parent=83 // pred_check_branch
          %3717 = sbr.rel (%p3715) target = $region88
        $region87: #{dialogue_net_forward.1} parent=83 // pred_region
          %s3718 = smul.u32 2, %s28
          %p3719 = scmp.lt.s32.totalorder %s3718, 3
          %s3720 = scalar_select %p3719, %s3718, 3
          %s3721 = smul.addr %s3720, 8
          %s3722 = scalar_lea.vmem %s6, %s3721
        $region88: #{dialogue_net_forward.1} parent=83 // pred_fallthru
          _
      $region84: #{dialogue_net_forward.1} parent=5 // pred_fallthru
        _
    $region6: #{dialogue_net_forward.1} parent=1 // loop_footer
      %s26 = sadd.s32 1, %s22
    $region7: #{dialogue_net_forward.1} parent=1 // loop_footer_branch
      %21 = sbr.rel target = $region3
    $region8: #{dialogue_net_forward.1} parent=1 // loop_exit
      _
    %3723 = vsyncpa [#allocation6], 1
    %s3724 = scalar_lea.sflag [#allocation6], 1
    %3725 = vsyncpa %s3724, 1
    %3726 = vsyncpa [#allocation8], 1
    %s3727 = scalar_lea.sflag [#allocation8], 1
    %3728 = vsyncpa %s3727, 1
    %3729 = vsyncpa [#allocation11], 1
    %s3730 = scalar_lea.sflag [#allocation11], 1
    %3731 = vsyncpa %s3730, 1

</llo_original>
